<compile_context>
chip_gen: v5e
topology: v5e:2x2
jax: 0.10.0
libtpu: 0.0.40
codegen_flags: <defaults>
</compile_context>

<pallas_src>
import functools

import jax
import jax.numpy as jnp
from jax.experimental import pallas as pl
from jax.experimental.pallas import tpu as pltpu

PAD = 128  # lane-dense feature padding (one full vreg lane group)


def _round_up(x, m):
    return ((x + m - 1) // m) * m


def _default_bf16_elementwise():
    """bf16 tanh/elementwise only on generations with bf16 VPU/EUP (v6e, v7x)."""
    try:
        kind = jax.devices()[0].device_kind.lower()
    except Exception:
        return False
    return ("v6" in kind) or ("v7" in kind)


# ----------------------------------------------------------------------------
# Fused kernel: full MultilevelNet forward for one batch tile.
# ----------------------------------------------------------------------------
def make_fused_kernel(layer_counts, bf16_elementwise):
    """Ref order: x, then for every level lvl=0..L-1 its (W_j, b_j) pairs in
    layer order, then the single (1, tb) output ref."""
    num_levels = len(layer_counts)
    ew_dtype = jnp.bfloat16 if bf16_elementwise else jnp.float32

    def kernel(*refs):
        idx = 0
        x_ref = refs[idx]; idx += 1
        level_params = []
        for n_lin in layer_counts:
            lp = []
            for _ in range(n_lin):
                lp.append((refs[idx], refs[idx + 1]))
                idx += 2
            level_params.append(lp)
        out_ref = refs[idx]

        x = x_ref[...]                        # (tb, dim_in) float32, un-padded lanes
        dim_in = x.shape[1]

        res = None  # residuals produced by the previously processed (higher) level
        for lvl in reversed(range(num_levels)):
            layers = level_params[lvl]
            n_lin = len(layers)

            # Entry layer y = x @ W0 + b0 on the VPU (K = dim_in is tiny): a few
            # broadcast-FMAs, f32 everywhere, bias folded into the accumulation.
            W0_ref, b0_ref = layers[0]
            W0 = W0_ref[...]                  # (dim_in, PAD) float32
            h = x[:, 0:1] * W0[0:1, :] + b0_ref[...]
            for k in range(1, dim_in):
                h = h + x[:, k:k + 1] * W0[k:k + 1, :]

            outs = []
            for i in range(n_lin - 1):
                Wi, bi = layers[i + 1]        # (PAD, PAD) bf16, (1, PAD) f32
                a = jnp.tanh(h.astype(ew_dtype))   # bf16 EUP on v6e/v7x, f32 on v5e
                h = jnp.dot(a.astype(jnp.bfloat16), Wi[...],
                            preferred_element_type=jnp.float32) + bi[...]
                if res is not None:
                    h = h + res[i]            # residuals stay in VMEM/vregs
                if (i % 2) or (lvl == 0):
                    outs.append(h)
            res = outs

        # Only column 0 of the final tensor is meaningful (padded cols are exactly
        # zero). Transpose once (XLU) and store a lane-dense (1, tb) row: the HBM
        # writeback is tb*4 bytes instead of tb*PAD*4.
        final_t = jnp.transpose(res[-1])      # (PAD, tb) f32
        out_ref[...] = final_t[0:1, :].astype(out_ref.dtype)

    return kernel


# ----------------------------------------------------------------------------
# Wrapper: one pallas_call for the whole network.
# ----------------------------------------------------------------------------
def multilevel_forward(x, padded_params, *, tb=512, bf16_elementwise=None):
    """x: (B, dim_in) f32. padded_params: per level ([W0 f32 (dim_in,PAD),
    Wi bf16 (PAD,PAD)...], [b f32 (1,PAD)...]). Returns (B, 1) f32."""
    B, dim_in = x.shape
    if bf16_elementwise is None:
        bf16_elementwise = _default_bf16_elementwise()
    layer_counts = tuple(len(Ws) for Ws, _ in padded_params)

    # Batch tile: lane/sublane friendly; pad the batch (only) so tiles are full.
    tb = max(128, min(tb, _round_up(B, 128)))
    tb = _round_up(tb, 128)
    B_pad = _round_up(B, tb)
    if B_pad != B:
        x_p = jnp.concatenate([x, jnp.zeros((B_pad - B, dim_in), x.dtype)], axis=0)
    else:
        x_p = x

    grid = (B_pad // tb,)

    in_specs = [pl.BlockSpec((tb, dim_in), lambda i: (i, 0))]
    operands = [x_p]
    for Ws, bs in padded_params:
        for W, b in zip(Ws, bs):
            # Constant-index blocks -> fetched once, resident across all grid steps.
            in_specs.append(pl.BlockSpec(W.shape, lambda i: (0, 0)))
            in_specs.append(pl.BlockSpec(b.shape, lambda i: (0, 0)))
            operands.append(W)
            operands.append(b)

    # Lane-dense (1, B_pad) output: one tb-wide row chunk per grid step.
    out_shape = jax.ShapeDtypeStruct((1, B_pad), jnp.float32)
    out_specs = pl.BlockSpec((1, tb), lambda i: (0, i))

    # Advisory cost estimate + explicit VMEM budget.
    flops = 0
    transcendentals = 0
    for c in layer_counts:
        flops += 2 * B_pad * dim_in * PAD + 2 * B_pad * PAD * PAD * (c - 1)
        transcendentals += B_pad * PAD * (c - 1)
    weight_bytes = sum(int(op.size) * op.dtype.itemsize for op in operands[1:])
    bytes_accessed = int(x_p.size) * x_p.dtype.itemsize + weight_bytes + B_pad * 4

    work_bytes = 8 * tb * PAD * 4                 # live h/a/res value headroom
    vmem_needed = (2 * weight_bytes               # resident params (double-buffered)
                   + 2 * (tb * PAD * 4)           # x block (VMEM tile-padded), 2 bufs
                   + 2 * (tb * 4)                 # out block, 2 bufs
                   + work_bytes)
    vmem_limit = int(min(max(2 * vmem_needed, 32 * 1024 * 1024), 64 * 1024 * 1024))

    kernel = make_fused_kernel(layer_counts, bf16_elementwise)

    out = pl.pallas_call(
        kernel,
        out_shape=out_shape,
        grid_spec=pltpu.PrefetchScalarGridSpec(
            num_scalar_prefetch=0,
            grid=grid,
            in_specs=in_specs,
            out_specs=out_specs,
        ),
        compiler_params=pltpu.CompilerParams(
            dimension_semantics=("parallel",),
            vmem_limit_bytes=vmem_limit,
        ),
        cost_estimate=pl.CostEstimate(
            flops=int(flops),
            transcendentals=int(transcendentals),
            bytes_accessed=int(bytes_accessed),
        ),
    )(*operands)

    return out[0, :B][:, None]


# ----------------------------------------------------------------------------
# Deterministic parameter init (PyTorch Linear-style uniform, shapes from __init__)
# and zero-padding: entry W -> (dim_in, PAD) f32; other W -> (PAD, PAD) bf16;
# b -> (1, PAD) f32. Padding is exact (zero rows/cols/biases, tanh(0)=0).
# ----------------------------------------------------------------------------
def init_multilevel_params(key, dim_in, factor, level):
    dim = factor * dim_in
    params = []
    for lvl in range(level):
        n_mid = 2 ** lvl - 1
        shapes = [(dim_in, dim)] + [(dim, dim)] * n_mid + [(dim, 1)]
        Ws, bs = [], []
        for shp in shapes:
            key, k1, k2 = jax.random.split(key, 3)
            bound = 1.0 / float(shp[0]) ** 0.5
            Ws.append(jax.random.uniform(k1, shp, jnp.float32, -bound, bound))
            bs.append(jax.random.uniform(k2, (1, shp[1]), jnp.float32, -bound, bound))
        params.append((Ws, bs))
    return params


def pad_params(params, dim_in):
    padded = []
    for Ws, bs in params:
        pW, pb = [], []
        for j, (W, b) in enumerate(zip(Ws, bs)):
            k_dim, n = W.shape
            if j == 0:
                Wp = jnp.zeros((dim_in, PAD), jnp.float32).at[:k_dim, :n].set(W)
            else:
                Wp = (jnp.zeros((PAD, PAD), jnp.float32).at[:k_dim, :n].set(W)
                      .astype(jnp.bfloat16))
            bp = jnp.zeros((1, PAD), jnp.float32).at[:, :n].set(b)
            pW.append(Wp)
            pb.append(bp)
        padded.append((pW, pb))
    return padded


# ----------------------------------------------------------------------------
# References:
#   * multilevel_ref_policy mirrors the kernel's precision policy (f32 entry,
#     ew-dtype tanh, bf16 matmul operands, f32 accum) -> tight structural check.
#   * multilevel_ref_f32 is a pure-f32 translation of the PyTorch module,
#     independent of the kernel's precision policy -> looser check.
# ----------------------------------------------------------------------------
def multilevel_ref_policy(x, params, bf16_elementwise):
    ew = jnp.bfloat16 if bf16_elementwise else jnp.float32
    res = None
    for lvl in reversed(range(len(params))):
        Ws, bs = params[lvl]
        h = jnp.dot(x, Ws[0]) + bs[0]
        outs = []
        for i in range(len(Ws) - 1):
            a = jnp.tanh(h.astype(ew))
            h = jnp.dot(a.astype(jnp.bfloat16), Ws[i + 1].astype(jnp.bfloat16),
                        preferred_element_type=jnp.float32) + bs[i + 1]
            if res is not None:
                h = h + res[i]
            if (i % 2) or (lvl == 0):
                outs.append(h)
        res = outs
    return res[-1]


def multilevel_ref_f32(x, params):
    res = None
    for lvl in reversed(range(len(params))):
        Ws, bs = params[lvl]
        h = jnp.dot(x, Ws[0]) + bs[0]
        outs = []
        for i in range(len(Ws) - 1):
            a = jnp.tanh(h)
            h = jnp.dot(a, Ws[i + 1]) + bs[i + 1]
            if res is not None:
                h = h + res[i]
            if (i % 2) or (lvl == 0):
                outs.append(h)
        res = outs
    return res[-1]


# ----------------------------------------------------------------------------
if __name__ == "__main__":
    # dim_in=4, factor=8 -> hidden dim 32, 3 levels (10 linear layers total).
    # B=2048, tb=512 -> 4 parallel grid steps (>=2 per TensorCore on v7x).
    dim_in, factor, level = 4, 8, 3
    B, TB = 2048, 512

    key = jax.random.PRNGKey(0)
    params = init_multilevel_params(key, dim_in, factor, level)
    padded = pad_params(params, dim_in)

    x = jax.random.normal(jax.random.PRNGKey(1), (B, dim_in), dtype=jnp.float32)

    bf16_ew = _default_bf16_elementwise()
    fwd = jax.jit(functools.partial(multilevel_forward, tb=TB,
                                    bf16_elementwise=bf16_ew))
    out = jax.block_until_ready(fwd(x, padded))
    assert out.shape == (B, 1), out.shape

    ref_policy = multilevel_ref_policy(x, params, bf16_ew)
    ref_f32 = multilevel_ref_f32(x, params)
    err_policy = float(jnp.max(jnp.abs(out - ref_policy)))
    err_f32 = float(jnp.max(jnp.abs(out - ref_f32)))
    assert jnp.allclose(out, ref_policy, atol=3e-2, rtol=3e-2), (
        "Pallas output mismatch vs precision-mirrored reference: max abs err = "
        + str(err_policy))
    assert jnp.allclose(out, ref_f32, atol=1e-1, rtol=1e-1), (
        "Pallas output mismatch vs pure-f32 PyTorch-faithful reference: "
        "max abs err = " + str(err_f32))

    print("KERNEL_OK")
</pallas_src>

<mosaic_0001>
module attributes {stable_mosaic.version = 11 : i64} {
  func.func @kernel(%arg0: i32, %arg1: memref<512x4xf32, #tpu.memory_space<vmem>>, %arg2: memref<4x128xf32, #tpu.memory_space<vmem>>, %arg3: memref<1x128xf32, #tpu.memory_space<vmem>>, %arg4: memref<128x128xbf16, #tpu.memory_space<vmem>>, %arg5: memref<1x128xf32, #tpu.memory_space<vmem>>, %arg6: memref<4x128xf32, #tpu.memory_space<vmem>>, %arg7: memref<1x128xf32, #tpu.memory_space<vmem>>, %arg8: memref<128x128xbf16, #tpu.memory_space<vmem>>, %arg9: memref<1x128xf32, #tpu.memory_space<vmem>>, %arg10: memref<128x128xbf16, #tpu.memory_space<vmem>>, %arg11: memref<1x128xf32, #tpu.memory_space<vmem>>, %arg12: memref<4x128xf32, #tpu.memory_space<vmem>>, %arg13: memref<1x128xf32, #tpu.memory_space<vmem>>, %arg14: memref<128x128xbf16, #tpu.memory_space<vmem>>, %arg15: memref<1x128xf32, #tpu.memory_space<vmem>>, %arg16: memref<128x128xbf16, #tpu.memory_space<vmem>>, %arg17: memref<1x128xf32, #tpu.memory_space<vmem>>, %arg18: memref<128x128xbf16, #tpu.memory_space<vmem>>, %arg19: memref<1x128xf32, #tpu.memory_space<vmem>>, %arg20: memref<128x128xbf16, #tpu.memory_space<vmem>>, %arg21: memref<1x128xf32, #tpu.memory_space<vmem>>, %arg22: memref<1x512xf32, #tpu.memory_space<vmem>>) attributes {dimension_semantics = [#tpu.dimension_semantics<parallel>], iteration_bounds = array<i64: 4>, scalar_prefetch = 0 : i64, scratch_operands = 0 : i64, tpu.core_type = #tpu.core_type<tc>, window_params = [{transform_indices = @transform_0, window_bounds = array<i64: 512, 4>}, {pipeline_mode = #tpu.pipeline_mode<synchronous>, transform_indices = @transform_1, window_bounds = array<i64: 4, 128>}, {pipeline_mode = #tpu.pipeline_mode<synchronous>, transform_indices = @transform_2, window_bounds = array<i64: 1, 128>}, {pipeline_mode = #tpu.pipeline_mode<synchronous>, transform_indices = @transform_3, window_bounds = array<i64: 128, 128>}, {pipeline_mode = #tpu.pipeline_mode<synchronous>, transform_indices = @transform_4, window_bounds = array<i64: 1, 128>}, {pipeline_mode = #tpu.pipeline_mode<synchronous>, transform_indices = @transform_5, window_bounds = array<i64: 4, 128>}, {pipeline_mode = #tpu.pipeline_mode<synchronous>, transform_indices = @transform_6, window_bounds = array<i64: 1, 128>}, {pipeline_mode = #tpu.pipeline_mode<synchronous>, transform_indices = @transform_7, window_bounds = array<i64: 128, 128>}, {pipeline_mode = #tpu.pipeline_mode<synchronous>, transform_indices = @transform_8, window_bounds = array<i64: 1, 128>}, {pipeline_mode = #tpu.pipeline_mode<synchronous>, transform_indices = @transform_9, window_bounds = array<i64: 128, 128>}, {pipeline_mode = #tpu.pipeline_mode<synchronous>, transform_indices = @transform_10, window_bounds = array<i64: 1, 128>}, {pipeline_mode = #tpu.pipeline_mode<synchronous>, transform_indices = @transform_11, window_bounds = array<i64: 4, 128>}, {pipeline_mode = #tpu.pipeline_mode<synchronous>, transform_indices = @transform_12, window_bounds = array<i64: 1, 128>}, {pipeline_mode = #tpu.pipeline_mode<synchronous>, transform_indices = @transform_13, window_bounds = array<i64: 128, 128>}, {pipeline_mode = #tpu.pipeline_mode<synchronous>, transform_indices = @transform_14, window_bounds = array<i64: 1, 128>}, {pipeline_mode = #tpu.pipeline_mode<synchronous>, transform_indices = @transform_15, window_bounds = array<i64: 128, 128>}, {pipeline_mode = #tpu.pipeline_mode<synchronous>, transform_indices = @transform_16, window_bounds = array<i64: 1, 128>}, {pipeline_mode = #tpu.pipeline_mode<synchronous>, transform_indices = @transform_17, window_bounds = array<i64: 128, 128>}, {pipeline_mode = #tpu.pipeline_mode<synchronous>, transform_indices = @transform_18, window_bounds = array<i64: 1, 128>}, {pipeline_mode = #tpu.pipeline_mode<synchronous>, transform_indices = @transform_19, window_bounds = array<i64: 128, 128>}, {pipeline_mode = #tpu.pipeline_mode<synchronous>, transform_indices = @transform_20, window_bounds = array<i64: 1, 128>}, {transform_indices = @transform_21, window_bounds = array<i64: 1, 512>}]} {
    %c0 = arith.constant 0 : index
    %c0_0 = arith.constant 0 : index
    %0 = vector.load %arg1[%c0, %c0_0] : memref<512x4xf32, #tpu.memory_space<vmem>>, vector<512x4xf32>
    %c0_1 = arith.constant 0 : index
    %c0_2 = arith.constant 0 : index
    %1 = vector.load %arg12[%c0_1, %c0_2] : memref<4x128xf32, #tpu.memory_space<vmem>>, vector<4x128xf32>
    %2 = vector.extract_strided_slice %0 {offsets = [0, 0], sizes = [512, 1], strides = [1, 1]} : vector<512x4xf32> to vector<512x1xf32>
    %3 = vector.extract_strided_slice %1 {offsets = [0, 0], sizes = [1, 128], strides = [1, 1]} : vector<4x128xf32> to vector<1x128xf32>
    %4 = vector.broadcast %2 : vector<512x1xf32> to vector<512x128xf32>
    %5 = vector.broadcast %3 : vector<1x128xf32> to vector<512x128xf32>
    %6 = arith.mulf %4, %5 : vector<512x128xf32>
    %c0_3 = arith.constant 0 : index
    %c0_4 = arith.constant 0 : index
    %7 = vector.load %arg13[%c0_3, %c0_4] : memref<1x128xf32, #tpu.memory_space<vmem>>, vector<1x128xf32>
    %8 = vector.broadcast %7 : vector<1x128xf32> to vector<512x128xf32>
    %9 = arith.addf %6, %8 : vector<512x128xf32>
    %10 = vector.extract_strided_slice %0 {offsets = [0, 1], sizes = [512, 1], strides = [1, 1]} : vector<512x4xf32> to vector<512x1xf32>
    %11 = vector.extract_strided_slice %1 {offsets = [1, 0], sizes = [1, 128], strides = [1, 1]} : vector<4x128xf32> to vector<1x128xf32>
    %12 = vector.broadcast %10 : vector<512x1xf32> to vector<512x128xf32>
    %13 = vector.broadcast %11 : vector<1x128xf32> to vector<512x128xf32>
    %14 = arith.mulf %12, %13 : vector<512x128xf32>
    %15 = arith.addf %9, %14 : vector<512x128xf32>
    %16 = vector.extract_strided_slice %0 {offsets = [0, 2], sizes = [512, 1], strides = [1, 1]} : vector<512x4xf32> to vector<512x1xf32>
    %17 = vector.extract_strided_slice %1 {offsets = [2, 0], sizes = [1, 128], strides = [1, 1]} : vector<4x128xf32> to vector<1x128xf32>
    %18 = vector.broadcast %16 : vector<512x1xf32> to vector<512x128xf32>
    %19 = vector.broadcast %17 : vector<1x128xf32> to vector<512x128xf32>
    %20 = arith.mulf %18, %19 : vector<512x128xf32>
    %21 = arith.addf %15, %20 : vector<512x128xf32>
    %22 = vector.extract_strided_slice %0 {offsets = [0, 3], sizes = [512, 1], strides = [1, 1]} : vector<512x4xf32> to vector<512x1xf32>
    %23 = vector.extract_strided_slice %1 {offsets = [3, 0], sizes = [1, 128], strides = [1, 1]} : vector<4x128xf32> to vector<1x128xf32>
    %24 = vector.broadcast %22 : vector<512x1xf32> to vector<512x128xf32>
    %25 = vector.broadcast %23 : vector<1x128xf32> to vector<512x128xf32>
    %26 = arith.mulf %24, %25 : vector<512x128xf32>
    %27 = arith.addf %21, %26 : vector<512x128xf32>
    %28 = math.tanh %27 : vector<512x128xf32>
    %29 = arith.truncf %28 : vector<512x128xf32> to vector<512x128xbf16>
    %c0_5 = arith.constant 0 : index
    %c0_6 = arith.constant 0 : index
    %30 = vector.load %arg14[%c0_5, %c0_6] : memref<128x128xbf16, #tpu.memory_space<vmem>>, vector<128x128xbf16>
    %cst = arith.constant dense<0.000000e+00> : vector<512x128xf32>
    %31 = tpu.matmul %29, %30, %cst {dimension_numbers = #tpu.dot_dimension_numbers<[1], [0], [0], [1], [0, 0, 1, 1], [], []>} : vector<512x128xbf16>, vector<128x128xbf16>, vector<512x128xf32> -> vector<512x128xf32>
    %c0_7 = arith.constant 0 : index
    %c0_8 = arith.constant 0 : index
    %32 = vector.load %arg15[%c0_7, %c0_8] : memref<1x128xf32, #tpu.memory_space<vmem>>, vector<1x128xf32>
    %33 = vector.broadcast %32 : vector<1x128xf32> to vector<512x128xf32>
    %34 = arith.addf %31, %33 : vector<512x128xf32>
    %35 = math.tanh %34 : vector<512x128xf32>
    %36 = arith.truncf %35 : vector<512x128xf32> to vector<512x128xbf16>
    %c0_9 = arith.constant 0 : index
    %c0_10 = arith.constant 0 : index
    %37 = vector.load %arg16[%c0_9, %c0_10] : memref<128x128xbf16, #tpu.memory_space<vmem>>, vector<128x128xbf16>
    %cst_11 = arith.constant dense<0.000000e+00> : vector<512x128xf32>
    %38 = tpu.matmul %36, %37, %cst_11 {dimension_numbers = #tpu.dot_dimension_numbers<[1], [0], [0], [1], [0, 0, 1, 1], [], []>} : vector<512x128xbf16>, vector<128x128xbf16>, vector<512x128xf32> -> vector<512x128xf32>
    %c0_12 = arith.constant 0 : index
    %c0_13 = arith.constant 0 : index
    %39 = vector.load %arg17[%c0_12, %c0_13] : memref<1x128xf32, #tpu.memory_space<vmem>>, vector<1x128xf32>
    %40 = vector.broadcast %39 : vector<1x128xf32> to vector<512x128xf32>
    %41 = arith.addf %38, %40 : vector<512x128xf32>
    %42 = math.tanh %41 : vector<512x128xf32>
    %43 = arith.truncf %42 : vector<512x128xf32> to vector<512x128xbf16>
    %c0_14 = arith.constant 0 : index
    %c0_15 = arith.constant 0 : index
    %44 = vector.load %arg18[%c0_14, %c0_15] : memref<128x128xbf16, #tpu.memory_space<vmem>>, vector<128x128xbf16>
    %cst_16 = arith.constant dense<0.000000e+00> : vector<512x128xf32>
    %45 = tpu.matmul %43, %44, %cst_16 {dimension_numbers = #tpu.dot_dimension_numbers<[1], [0], [0], [1], [0, 0, 1, 1], [], []>} : vector<512x128xbf16>, vector<128x128xbf16>, vector<512x128xf32> -> vector<512x128xf32>
    %c0_17 = arith.constant 0 : index
    %c0_18 = arith.constant 0 : index
    %46 = vector.load %arg19[%c0_17, %c0_18] : memref<1x128xf32, #tpu.memory_space<vmem>>, vector<1x128xf32>
    %47 = vector.broadcast %46 : vector<1x128xf32> to vector<512x128xf32>
    %48 = arith.addf %45, %47 : vector<512x128xf32>
    %49 = math.tanh %48 : vector<512x128xf32>
    %50 = arith.truncf %49 : vector<512x128xf32> to vector<512x128xbf16>
    %c0_19 = arith.constant 0 : index
    %c0_20 = arith.constant 0 : index
    %51 = vector.load %arg20[%c0_19, %c0_20] : memref<128x128xbf16, #tpu.memory_space<vmem>>, vector<128x128xbf16>
    %cst_21 = arith.constant dense<0.000000e+00> : vector<512x128xf32>
    %52 = tpu.matmul %50, %51, %cst_21 {dimension_numbers = #tpu.dot_dimension_numbers<[1], [0], [0], [1], [0, 0, 1, 1], [], []>} : vector<512x128xbf16>, vector<128x128xbf16>, vector<512x128xf32> -> vector<512x128xf32>
    %c0_22 = arith.constant 0 : index
    %c0_23 = arith.constant 0 : index
    %53 = vector.load %arg21[%c0_22, %c0_23] : memref<1x128xf32, #tpu.memory_space<vmem>>, vector<1x128xf32>
    %54 = vector.broadcast %53 : vector<1x128xf32> to vector<512x128xf32>
    %55 = arith.addf %52, %54 : vector<512x128xf32>
    %c0_24 = arith.constant 0 : index
    %c0_25 = arith.constant 0 : index
    %56 = vector.load %arg6[%c0_24, %c0_25] : memref<4x128xf32, #tpu.memory_space<vmem>>, vector<4x128xf32>
    %57 = vector.extract_strided_slice %0 {offsets = [0, 0], sizes = [512, 1], strides = [1, 1]} : vector<512x4xf32> to vector<512x1xf32>
    %58 = vector.extract_strided_slice %56 {offsets = [0, 0], sizes = [1, 128], strides = [1, 1]} : vector<4x128xf32> to vector<1x128xf32>
    %59 = vector.broadcast %57 : vector<512x1xf32> to vector<512x128xf32>
    %60 = vector.broadcast %58 : vector<1x128xf32> to vector<512x128xf32>
    %61 = arith.mulf %59, %60 : vector<512x128xf32>
    %c0_26 = arith.constant 0 : index
    %c0_27 = arith.constant 0 : index
    %62 = vector.load %arg7[%c0_26, %c0_27] : memref<1x128xf32, #tpu.memory_space<vmem>>, vector<1x128xf32>
    %63 = vector.broadcast %62 : vector<1x128xf32> to vector<512x128xf32>
    %64 = arith.addf %61, %63 : vector<512x128xf32>
    %65 = vector.extract_strided_slice %0 {offsets = [0, 1], sizes = [512, 1], strides = [1, 1]} : vector<512x4xf32> to vector<512x1xf32>
    %66 = vector.extract_strided_slice %56 {offsets = [1, 0], sizes = [1, 128], strides = [1, 1]} : vector<4x128xf32> to vector<1x128xf32>
    %67 = vector.broadcast %65 : vector<512x1xf32> to vector<512x128xf32>
    %68 = vector.broadcast %66 : vector<1x128xf32> to vector<512x128xf32>
    %69 = arith.mulf %67, %68 : vector<512x128xf32>
    %70 = arith.addf %64, %69 : vector<512x128xf32>
    %71 = vector.extract_strided_slice %0 {offsets = [0, 2], sizes = [512, 1], strides = [1, 1]} : vector<512x4xf32> to vector<512x1xf32>
    %72 = vector.extract_strided_slice %56 {offsets = [2, 0], sizes = [1, 128], strides = [1, 1]} : vector<4x128xf32> to vector<1x128xf32>
    %73 = vector.broadcast %71 : vector<512x1xf32> to vector<512x128xf32>
    %74 = vector.broadcast %72 : vector<1x128xf32> to vector<512x128xf32>
    %75 = arith.mulf %73, %74 : vector<512x128xf32>
    %76 = arith.addf %70, %75 : vector<512x128xf32>
    %77 = vector.extract_strided_slice %0 {offsets = [0, 3], sizes = [512, 1], strides = [1, 1]} : vector<512x4xf32> to vector<512x1xf32>
    %78 = vector.extract_strided_slice %56 {offsets = [3, 0], sizes = [1, 128], strides = [1, 1]} : vector<4x128xf32> to vector<1x128xf32>
    %79 = vector.broadcast %77 : vector<512x1xf32> to vector<512x128xf32>
    %80 = vector.broadcast %78 : vector<1x128xf32> to vector<512x128xf32>
    %81 = arith.mulf %79, %80 : vector<512x128xf32>
    %82 = arith.addf %76, %81 : vector<512x128xf32>
    %83 = math.tanh %82 : vector<512x128xf32>
    %84 = arith.truncf %83 : vector<512x128xf32> to vector<512x128xbf16>
    %c0_28 = arith.constant 0 : index
    %c0_29 = arith.constant 0 : index
    %85 = vector.load %arg8[%c0_28, %c0_29] : memref<128x128xbf16, #tpu.memory_space<vmem>>, vector<128x128xbf16>
    %cst_30 = arith.constant dense<0.000000e+00> : vector<512x128xf32>
    %86 = tpu.matmul %84, %85, %cst_30 {dimension_numbers = #tpu.dot_dimension_numbers<[1], [0], [0], [1], [0, 0, 1, 1], [], []>} : vector<512x128xbf16>, vector<128x128xbf16>, vector<512x128xf32> -> vector<512x128xf32>
    %c0_31 = arith.constant 0 : index
    %c0_32 = arith.constant 0 : index
    %87 = vector.load %arg9[%c0_31, %c0_32] : memref<1x128xf32, #tpu.memory_space<vmem>>, vector<1x128xf32>
    %88 = vector.broadcast %87 : vector<1x128xf32> to vector<512x128xf32>
    %89 = arith.addf %86, %88 : vector<512x128xf32>
    %90 = arith.addf %89, %41 : vector<512x128xf32>
    %91 = math.tanh %90 : vector<512x128xf32>
    %92 = arith.truncf %91 : vector<512x128xf32> to vector<512x128xbf16>
    %c0_33 = arith.constant 0 : index
    %c0_34 = arith.constant 0 : index
    %93 = vector.load %arg10[%c0_33, %c0_34] : memref<128x128xbf16, #tpu.memory_space<vmem>>, vector<128x128xbf16>
    %cst_35 = arith.constant dense<0.000000e+00> : vector<512x128xf32>
    %94 = tpu.matmul %92, %93, %cst_35 {dimension_numbers = #tpu.dot_dimension_numbers<[1], [0], [0], [1], [0, 0, 1, 1], [], []>} : vector<512x128xbf16>, vector<128x128xbf16>, vector<512x128xf32> -> vector<512x128xf32>
    %c0_36 = arith.constant 0 : index
    %c0_37 = arith.constant 0 : index
    %95 = vector.load %arg11[%c0_36, %c0_37] : memref<1x128xf32, #tpu.memory_space<vmem>>, vector<1x128xf32>
    %96 = vector.broadcast %95 : vector<1x128xf32> to vector<512x128xf32>
    %97 = arith.addf %94, %96 : vector<512x128xf32>
    %98 = arith.addf %97, %55 : vector<512x128xf32>
    %c0_38 = arith.constant 0 : index
    %c0_39 = arith.constant 0 : index
    %99 = vector.load %arg2[%c0_38, %c0_39] : memref<4x128xf32, #tpu.memory_space<vmem>>, vector<4x128xf32>
    %100 = vector.extract_strided_slice %0 {offsets = [0, 0], sizes = [512, 1], strides = [1, 1]} : vector<512x4xf32> to vector<512x1xf32>
    %101 = vector.extract_strided_slice %99 {offsets = [0, 0], sizes = [1, 128], strides = [1, 1]} : vector<4x128xf32> to vector<1x128xf32>
    %102 = vector.broadcast %100 : vector<512x1xf32> to vector<512x128xf32>
    %103 = vector.broadcast %101 : vector<1x128xf32> to vector<512x128xf32>
    %104 = arith.mulf %102, %103 : vector<512x128xf32>
    %c0_40 = arith.constant 0 : index
    %c0_41 = arith.constant 0 : index
    %105 = vector.load %arg3[%c0_40, %c0_41] : memref<1x128xf32, #tpu.memory_space<vmem>>, vector<1x128xf32>
    %106 = vector.broadcast %105 : vector<1x128xf32> to vector<512x128xf32>
    %107 = arith.addf %104, %106 : vector<512x128xf32>
    %108 = vector.extract_strided_slice %0 {offsets = [0, 1], sizes = [512, 1], strides = [1, 1]} : vector<512x4xf32> to vector<512x1xf32>
    %109 = vector.extract_strided_slice %99 {offsets = [1, 0], sizes = [1, 128], strides = [1, 1]} : vector<4x128xf32> to vector<1x128xf32>
    %110 = vector.broadcast %108 : vector<512x1xf32> to vector<512x128xf32>
    %111 = vector.broadcast %109 : vector<1x128xf32> to vector<512x128xf32>
    %112 = arith.mulf %110, %111 : vector<512x128xf32>
    %113 = arith.addf %107, %112 : vector<512x128xf32>
    %114 = vector.extract_strided_slice %0 {offsets = [0, 2], sizes = [512, 1], strides = [1, 1]} : vector<512x4xf32> to vector<512x1xf32>
    %115 = vector.extract_strided_slice %99 {offsets = [2, 0], sizes = [1, 128], strides = [1, 1]} : vector<4x128xf32> to vector<1x128xf32>
    %116 = vector.broadcast %114 : vector<512x1xf32> to vector<512x128xf32>
    %117 = vector.broadcast %115 : vector<1x128xf32> to vector<512x128xf32>
    %118 = arith.mulf %116, %117 : vector<512x128xf32>
    %119 = arith.addf %113, %118 : vector<512x128xf32>
    %120 = vector.extract_strided_slice %0 {offsets = [0, 3], sizes = [512, 1], strides = [1, 1]} : vector<512x4xf32> to vector<512x1xf32>
    %121 = vector.extract_strided_slice %99 {offsets = [3, 0], sizes = [1, 128], strides = [1, 1]} : vector<4x128xf32> to vector<1x128xf32>
    %122 = vector.broadcast %120 : vector<512x1xf32> to vector<512x128xf32>
    %123 = vector.broadcast %121 : vector<1x128xf32> to vector<512x128xf32>
    %124 = arith.mulf %122, %123 : vector<512x128xf32>
    %125 = arith.addf %119, %124 : vector<512x128xf32>
    %126 = math.tanh %125 : vector<512x128xf32>
    %127 = arith.truncf %126 : vector<512x128xf32> to vector<512x128xbf16>
    %c0_42 = arith.constant 0 : index
    %c0_43 = arith.constant 0 : index
    %128 = vector.load %arg4[%c0_42, %c0_43] : memref<128x128xbf16, #tpu.memory_space<vmem>>, vector<128x128xbf16>
    %cst_44 = arith.constant dense<0.000000e+00> : vector<512x128xf32>
    %129 = tpu.matmul %127, %128, %cst_44 {dimension_numbers = #tpu.dot_dimension_numbers<[1], [0], [0], [1], [0, 0, 1, 1], [], []>} : vector<512x128xbf16>, vector<128x128xbf16>, vector<512x128xf32> -> vector<512x128xf32>
    %c0_45 = arith.constant 0 : index
    %c0_46 = arith.constant 0 : index
    %130 = vector.load %arg5[%c0_45, %c0_46] : memref<1x128xf32, #tpu.memory_space<vmem>>, vector<1x128xf32>
    %131 = vector.broadcast %130 : vector<1x128xf32> to vector<512x128xf32>
    %132 = arith.addf %129, %131 : vector<512x128xf32>
    %133 = arith.addf %132, %98 : vector<512x128xf32>
    %134 = tpu.transpose %133, [1, 0] : vector<512x128xf32> -> vector<128x512xf32>
    %135 = vector.extract_strided_slice %134 {offsets = [0, 0], sizes = [1, 512], strides = [1, 1]} : vector<128x512xf32> to vector<1x512xf32>
    %c0_47 = arith.constant 0 : index
    %c0_48 = arith.constant 0 : index
    %136 = vector.load %arg22[%c0_47, %c0_48] : memref<1x512xf32, #tpu.memory_space<vmem>>, vector<1x512xf32>
    tpu.vector_store %arg22[%c0_47, %c0_48], %135 {strides = array<i32>} : memref<1x512xf32, #tpu.memory_space<vmem>>, vector<1x512xf32>,
    return
  }
  func.func @transform_0(%arg0: i32) -> (i32, i32) {
    %c0_i32 = arith.constant 0 : i32
    %c0_i32_0 = arith.constant 0 : i32
    return %arg0, %c0_i32 : i32, i32
  }
  func.func @transform_1(%arg0: i32) -> (i32, i32) {
    %c0_i32 = arith.constant 0 : i32
    %c0_i32_0 = arith.constant 0 : i32
    %c0_i32_1 = arith.constant 0 : i32
    return %c0_i32, %c0_i32_0 : i32, i32
  }
  func.func @transform_2(%arg0: i32) -> (i32, i32) {
    %c0_i32 = arith.constant 0 : i32
    %c0_i32_0 = arith.constant 0 : i32
    %c0_i32_1 = arith.constant 0 : i32
    return %c0_i32, %c0_i32_0 : i32, i32
  }
  func.func @transform_3(%arg0: i32) -> (i32, i32) {
    %c0_i32 = arith.constant 0 : i32
    %c0_i32_0 = arith.constant 0 : i32
    %c0_i32_1 = arith.constant 0 : i32
    return %c0_i32, %c0_i32_0 : i32, i32
  }
  func.func @transform_4(%arg0: i32) -> (i32, i32) {
    %c0_i32 = arith.constant 0 : i32
    %c0_i32_0 = arith.constant 0 : i32
    %c0_i32_1 = arith.constant 0 : i32
    return %c0_i32, %c0_i32_0 : i32, i32
  }
  func.func @transform_5(%arg0: i32) -> (i32, i32) {
    %c0_i32 = arith.constant 0 : i32
    %c0_i32_0 = arith.constant 0 : i32
    %c0_i32_1 = arith.constant 0 : i32
    return %c0_i32, %c0_i32_0 : i32, i32
  }
  func.func @transform_6(%arg0: i32) -> (i32, i32) {
    %c0_i32 = arith.constant 0 : i32
    %c0_i32_0 = arith.constant 0 : i32
    %c0_i32_1 = arith.constant 0 : i32
    return %c0_i32, %c0_i32_0 : i32, i32
  }
  func.func @transform_7(%arg0: i32) -> (i32, i32) {
    %c0_i32 = arith.constant 0 : i32
    %c0_i32_0 = arith.constant 0 : i32
    %c0_i32_1 = arith.constant 0 : i32
    return %c0_i32, %c0_i32_0 : i32, i32
  }
  func.func @transform_8(%arg0: i32) -> (i32, i32) {
    %c0_i32 = arith.constant 0 : i32
    %c0_i32_0 = arith.constant 0 : i32
    %c0_i32_1 = arith.constant 0 : i32
    return %c0_i32, %c0_i32_0 : i32, i32
  }
  func.func @transform_9(%arg0: i32) -> (i32, i32) {
    %c0_i32 = arith.constant 0 : i32
    %c0_i32_0 = arith.constant 0 : i32
    %c0_i32_1 = arith.constant 0 : i32
    return %c0_i32, %c0_i32_0 : i32, i32
  }
  func.func @transform_10(%arg0: i32) -> (i32, i32) {
    %c0_i32 = arith.constant 0 : i32
    %c0_i32_0 = arith.constant 0 : i32
    %c0_i32_1 = arith.constant 0 : i32
    return %c0_i32, %c0_i32_0 : i32, i32
  }
  func.func @transform_11(%arg0: i32) -> (i32, i32) {
    %c0_i32 = arith.constant 0 : i32
    %c0_i32_0 = arith.constant 0 : i32
    %c0_i32_1 = arith.constant 0 : i32
    return %c0_i32, %c0_i32_0 : i32, i32
  }
  func.func @transform_12(%arg0: i32) -> (i32, i32) {
    %c0_i32 = arith.constant 0 : i32
    %c0_i32_0 = arith.constant 0 : i32
    %c0_i32_1 = arith.constant 0 : i32
    return %c0_i32, %c0_i32_0 : i32, i32
  }
  func.func @transform_13(%arg0: i32) -> (i32, i32) {
    %c0_i32 = arith.constant 0 : i32
    %c0_i32_0 = arith.constant 0 : i32
    %c0_i32_1 = arith.constant 0 : i32
    return %c0_i32, %c0_i32_0 : i32, i32
  }
  func.func @transform_14(%arg0: i32) -> (i32, i32) {
    %c0_i32 = arith.constant 0 : i32
    %c0_i32_0 = arith.constant 0 : i32
    %c0_i32_1 = arith.constant 0 : i32
    return %c0_i32, %c0_i32_0 : i32, i32
  }
  func.func @transform_15(%arg0: i32) -> (i32, i32) {
    %c0_i32 = arith.constant 0 : i32
    %c0_i32_0 = arith.constant 0 : i32
    %c0_i32_1 = arith.constant 0 : i32
    return %c0_i32, %c0_i32_0 : i32, i32
  }
  func.func @transform_16(%arg0: i32) -> (i32, i32) {
    %c0_i32 = arith.constant 0 : i32
    %c0_i32_0 = arith.constant 0 : i32
    %c0_i32_1 = arith.constant 0 : i32
    return %c0_i32, %c0_i32_0 : i32, i32
  }
  func.func @transform_17(%arg0: i32) -> (i32, i32) {
    %c0_i32 = arith.constant 0 : i32
    %c0_i32_0 = arith.constant 0 : i32
    %c0_i32_1 = arith.constant 0 : i32
    return %c0_i32, %c0_i32_0 : i32, i32
  }
  func.func @transform_18(%arg0: i32) -> (i32, i32) {
    %c0_i32 = arith.constant 0 : i32
    %c0_i32_0 = arith.constant 0 : i32
    %c0_i32_1 = arith.constant 0 : i32
    return %c0_i32, %c0_i32_0 : i32, i32
  }
  func.func @transform_19(%arg0: i32) -> (i32, i32) {
    %c0_i32 = arith.constant 0 : i32
    %c0_i32_0 = arith.constant 0 : i32
    %c0_i32_1 = arith.constant 0 : i32
    return %c0_i32, %c0_i32_0 : i32, i32
  }
  func.func @transform_20(%arg0: i32) -> (i32, i32) {
    %c0_i32 = arith.constant 0 : i32
    %c0_i32_0 = arith.constant 0 : i32
    %c0_i32_1 = arith.constant 0 : i32
    return %c0_i32, %c0_i32_0 : i32, i32
  }
  func.func @transform_21(%arg0: i32) -> (i32, i32) {
    %c0_i32 = arith.constant 0 : i32
    %c0_i32_0 = arith.constant 0 : i32
    return %c0_i32, %arg0 : i32, i32
  }
}

</mosaic_0001>

<llo_original>
// kernel: multilevel_forward.1
$region0: #{multilevel_forward.1}
  #allocation0 [shape = 'u32[]', space=smem, size = 0x4, offset = 0x4, fixed_abs, tag = 'smem constant byte address 0x4 - core index']
  #allocation1 [shape = 'u32[72,128]{1,0:T(1,128)}', space=vmem, size = 0x9000, scoped, tag = 'internal scratch']
  %s0 = inlined_call_operand.vmem [shape: f32[2048,4], index: 0, kind: input, shape index: {}]
  %s1 = inlined_call_operand.vmem [shape: f32[4,128], index: 1, kind: input, shape index: {}]
  %s2 = inlined_call_operand.vmem [shape: f32[1,128], index: 2, kind: input, shape index: {}]
  %s3 = inlined_call_operand.vmem [shape: bf16[128,128], index: 3, kind: input, shape index: {}]
  %s4 = inlined_call_operand.vmem [shape: f32[1,128], index: 4, kind: input, shape index: {}]
  %s5 = inlined_call_operand.vmem [shape: f32[4,128], index: 5, kind: input, shape index: {}]
  %s6 = inlined_call_operand.vmem [shape: f32[1,128], index: 6, kind: input, shape index: {}]
  %s7 = inlined_call_operand.vmem [shape: bf16[128,128], index: 7, kind: input, shape index: {}]
  %s8 = inlined_call_operand.vmem [shape: f32[1,128], index: 8, kind: input, shape index: {}]
  %s9 = inlined_call_operand.vmem [shape: bf16[128,128], index: 9, kind: input, shape index: {}]
  %s10 = inlined_call_operand.vmem [shape: f32[1,128], index: 10, kind: input, shape index: {}]
  %s11 = inlined_call_operand.vmem [shape: f32[4,128], index: 11, kind: input, shape index: {}]
  %s12 = inlined_call_operand.vmem [shape: f32[1,128], index: 12, kind: input, shape index: {}]
  %s13 = inlined_call_operand.vmem [shape: bf16[128,128], index: 13, kind: input, shape index: {}]
  %s14 = inlined_call_operand.vmem [shape: f32[1,128], index: 14, kind: input, shape index: {}]
  %s15 = inlined_call_operand.vmem [shape: bf16[128,128], index: 15, kind: input, shape index: {}]
  %s16 = inlined_call_operand.vmem [shape: f32[1,128], index: 16, kind: input, shape index: {}]
  %s17 = inlined_call_operand.vmem [shape: bf16[128,128], index: 17, kind: input, shape index: {}]
  %s18 = inlined_call_operand.vmem [shape: f32[1,128], index: 18, kind: input, shape index: {}]
  %s19 = inlined_call_operand.vmem [shape: bf16[128,128], index: 19, kind: input, shape index: {}]
  %s20 = inlined_call_operand.vmem [shape: f32[1,128], index: 20, kind: input, shape index: {}]
  %s21 = inlined_call_operand.hbm [shape: f32[1,2048], index: 21, kind: output, shape index: {}]
  %s22 = sld [smem:[#allocation0]]
  $region117: #{multilevel_forward.1} parent=0
    _
  %s24 = ssub.s32 1, %s22
  %s25 = scalar_select 0, %s24, %s22
  $region1: #{multilevel_forward.1} parent=0
    #allocation2 [shape = 'u8[4096]{0}', space=vmem, size = 0x1000, scoped, tag = 'output window, operand 0']
    #allocation3 [shape = 's32[2]{0}', space=sflag, size = 0x8, scoped, tag = 'scoped memory for multilevel_forward.1']
    %26 = vsyncpa [#allocation3], 0
    %s27 = scalar_lea.sflag [#allocation3], 1
    %28 = vsyncpa %s27, 0
    loop: start=0, step=1, limit=6
    $region2: #{multilevel_forward.1} parent=1 // loop_pre_header
      _
    $region3: #{multilevel_forward.1} parent=1 // loop_header
      %s30 = sphi 0, %s34
      %p31 = scmp.ge.s32.totalorder %s30, 6
      %s40 = sphi 0, %s42
      %s43 = sphi 0, %s40
      %s44 = sphi 0, %s43
      %s60 = sphi 0, %s44
      %s64 = sphi 0, %s64
      %s66 = sphi 0, %s64
      %s67 = sphi 0, %s66
      %s81 = sphi 0, %s67
      %s85 = sphi 0, %s85
      %s87 = sphi 0, %s85
      %s88 = sphi 0, %s87
      %s102 = sphi 0, %s88
      %s106 = sphi 0, %s106
      %s108 = sphi 0, %s106
      %s109 = sphi 0, %s108
      %s123 = sphi 0, %s109
      %s127 = sphi 0, %s127
      %s129 = sphi 0, %s127
      %s130 = sphi 0, %s129
      %s144 = sphi 0, %s130
      %s148 = sphi 0, %s148
      %s150 = sphi 0, %s148
      %s151 = sphi 0, %s150
      %s165 = sphi 0, %s151
      %s169 = sphi 0, %s169
      %s171 = sphi 0, %s169
      %s172 = sphi 0, %s171
      %s186 = sphi 0, %s172
      %s190 = sphi 0, %s190
      %s192 = sphi 0, %s190
      %s193 = sphi 0, %s192
      %s207 = sphi 0, %s193
      %s211 = sphi 0, %s211
      %s213 = sphi 0, %s211
      %s214 = sphi 0, %s213
      %s228 = sphi 0, %s214
      %s232 = sphi 0, %s232
      %s234 = sphi 0, %s232
      %s235 = sphi 0, %s234
      %s249 = sphi 0, %s235
      %s253 = sphi 0, %s253
      %s255 = sphi 0, %s253
      %s256 = sphi 0, %s255
      %s270 = sphi 0, %s256
      %s274 = sphi 0, %s274
      %s276 = sphi 0, %s274
      %s277 = sphi 0, %s276
      %s291 = sphi 0, %s277
      %s295 = sphi 0, %s295
      %s297 = sphi 0, %s295
      %s298 = sphi 0, %s297
      %s312 = sphi 0, %s298
      %s316 = sphi 0, %s316
      %s318 = sphi 0, %s316
      %s319 = sphi 0, %s318
      %s333 = sphi 0, %s319
      %s337 = sphi 0, %s337
      %s339 = sphi 0, %s337
      %s340 = sphi 0, %s339
      %s354 = sphi 0, %s340
      %s358 = sphi 0, %s358
      %s360 = sphi 0, %s358
      %s361 = sphi 0, %s360
      %s375 = sphi 0, %s361
      %s379 = sphi 0, %s379
      %s381 = sphi 0, %s379
      %s382 = sphi 0, %s381
      %s396 = sphi 0, %s382
      %s400 = sphi 0, %s400
      %s402 = sphi 0, %s400
      %s403 = sphi 0, %s402
      %s417 = sphi 0, %s403
      %s421 = sphi 0, %s421
      %s423 = sphi 0, %s421
      %s424 = sphi 0, %s423
      %s438 = sphi 0, %s424
      %s442 = sphi 0, %s442
      %s444 = sphi 0, %s442
      %s445 = sphi 0, %s444
      %s459 = sphi 0, %s445
      %s463 = sphi 0, %s463
      %s465 = sphi 0, %s463
      %s466 = sphi 0, %s465
      %s480 = sphi 0, %s466
      %s486 = sphi 0, %s488
      %s489 = sphi 0, %s486
      %s490 = sphi 0, %s489
      %s506 = sphi 0, %s490
    $region4: #{multilevel_forward.1} parent=1 // loop_header_branch
      %33 = sbr.rel (%p31) target = $region8
    $region5: #{multilevel_forward.1} parent=1 // loop_body
      %s35 = ssub.s32 %s30, 1
      %s36 = ssub.s32 %s30, 2
      %s37 = sadd.s32 %s30, 1
      %s38 = ssub.s32 %s30, %s37
      %p39 = scmp.eq.s32.totalorder %s38, 0
      %s41 = sadd.s32 %s40, 1
      %s42 = scalar_select %p39, %s40, %s41
      %p45 = pneg %p39
      %p46 = scmp.eq.s32.totalorder %s30, 3
      %p47 = por %p45, %p46
      %p48 = scmp.ne.s32.totalorder %s40, %s43
      %p49 = scmp.eq.s32.totalorder %s30, 0
      %p50 = por %p48, %p49
      %p51 = scmp.ne.s32.totalorder %s40, %s43
      %p52 = scmp.eq.s32.totalorder %s35, 3
      %p53 = por %p51, %p52
      %p54 = scmp.ne.s32.totalorder %s43, %s44
      %p55 = scmp.eq.s32.totalorder %s35, 0
      %p56 = por %p54, %p55
      %p57 = scmp.ne.s32.totalorder %s43, %s44
      %p58 = scmp.eq.s32.totalorder %s36, 3
      %p59 = por %p57, %p58
      %p61 = scmp.ne.s32.totalorder %s44, %s60
      %p62 = scmp.eq.s32.totalorder %s36, 0
      %p63 = por %p61, %p62
      %s65 = sadd.s32 %s64, 1
      %p68 = scmp.eq.s32.totalorder %s30, 3
      %p69 = scmp.ne.s32.totalorder %s64, %s66
      %p70 = scmp.eq.s32.totalorder %s30, 0
      %p71 = por %p69, %p70
      %p72 = scmp.ne.s32.totalorder %s64, %s66
      %p73 = scmp.eq.s32.totalorder %s35, 3
      %p74 = por %p72, %p73
      %p75 = scmp.ne.s32.totalorder %s66, %s67
      %p76 = scmp.eq.s32.totalorder %s35, 0
      %p77 = por %p75, %p76
      %p78 = scmp.ne.s32.totalorder %s66, %s67
      %p79 = scmp.eq.s32.totalorder %s36, 3
      %p80 = por %p78, %p79
      %p82 = scmp.ne.s32.totalorder %s67, %s81
      %p83 = scmp.eq.s32.totalorder %s36, 0
      %p84 = por %p82, %p83
      %s86 = sadd.s32 %s85, 1
      %p89 = scmp.eq.s32.totalorder %s30, 3
      %p90 = scmp.ne.s32.totalorder %s85, %s87
      %p91 = scmp.eq.s32.totalorder %s30, 0
      %p92 = por %p90, %p91
      %p93 = scmp.ne.s32.totalorder %s85, %s87
      %p94 = scmp.eq.s32.totalorder %s35, 3
      %p95 = por %p93, %p94
      %p96 = scmp.ne.s32.totalorder %s87, %s88
      %p97 = scmp.eq.s32.totalorder %s35, 0
      %p98 = por %p96, %p97
      %p99 = scmp.ne.s32.totalorder %s87, %s88
      %p100 = scmp.eq.s32.totalorder %s36, 3
      %p101 = por %p99, %p100
      %p103 = scmp.ne.s32.totalorder %s88, %s102
      %p104 = scmp.eq.s32.totalorder %s36, 0
      %p105 = por %p103, %p104
      %s107 = sadd.s32 %s106, 1
      %p110 = scmp.eq.s32.totalorder %s30, 3
      %p111 = scmp.ne.s32.totalorder %s106, %s108
      %p112 = scmp.eq.s32.totalorder %s30, 0
      %p113 = por %p111, %p112
      %p114 = scmp.ne.s32.totalorder %s106, %s108
      %p115 = scmp.eq.s32.totalorder %s35, 3
      %p116 = por %p114, %p115
      %p117 = scmp.ne.s32.totalorder %s108, %s109
      %p118 = scmp.eq.s32.totalorder %s35, 0
      %p119 = por %p117, %p118
      %p120 = scmp.ne.s32.totalorder %s108, %s109
      %p121 = scmp.eq.s32.totalorder %s36, 3
      %p122 = por %p120, %p121
      %p124 = scmp.ne.s32.totalorder %s109, %s123
      %p125 = scmp.eq.s32.totalorder %s36, 0
      %p126 = por %p124, %p125
      %s128 = sadd.s32 %s127, 1
      %p131 = scmp.eq.s32.totalorder %s30, 3
      %p132 = scmp.ne.s32.totalorder %s127, %s129
      %p133 = scmp.eq.s32.totalorder %s30, 0
      %p134 = por %p132, %p133
      %p135 = scmp.ne.s32.totalorder %s127, %s129
      %p136 = scmp.eq.s32.totalorder %s35, 3
      %p137 = por %p135, %p136
      %p138 = scmp.ne.s32.totalorder %s129, %s130
      %p139 = scmp.eq.s32.totalorder %s35, 0
      %p140 = por %p138, %p139
      %p141 = scmp.ne.s32.totalorder %s129, %s130
      %p142 = scmp.eq.s32.totalorder %s36, 3
      %p143 = por %p141, %p142
      %p145 = scmp.ne.s32.totalorder %s130, %s144
      %p146 = scmp.eq.s32.totalorder %s36, 0
      %p147 = por %p145, %p146
      %s149 = sadd.s32 %s148, 1
      %p152 = scmp.eq.s32.totalorder %s30, 3
      %p153 = scmp.ne.s32.totalorder %s148, %s150
      %p154 = scmp.eq.s32.totalorder %s30, 0
      %p155 = por %p153, %p154
      %p156 = scmp.ne.s32.totalorder %s148, %s150
      %p157 = scmp.eq.s32.totalorder %s35, 3
      %p158 = por %p156, %p157
      %p159 = scmp.ne.s32.totalorder %s150, %s151
      %p160 = scmp.eq.s32.totalorder %s35, 0
      %p161 = por %p159, %p160
      %p162 = scmp.ne.s32.totalorder %s150, %s151
      %p163 = scmp.eq.s32.totalorder %s36, 3
      %p164 = por %p162, %p163
      %p166 = scmp.ne.s32.totalorder %s151, %s165
      %p167 = scmp.eq.s32.totalorder %s36, 0
      %p168 = por %p166, %p167
      %s170 = sadd.s32 %s169, 1
      %p173 = scmp.eq.s32.totalorder %s30, 3
      %p174 = scmp.ne.s32.totalorder %s169, %s171
      %p175 = scmp.eq.s32.totalorder %s30, 0
      %p176 = por %p174, %p175
      %p177 = scmp.ne.s32.totalorder %s169, %s171
      %p178 = scmp.eq.s32.totalorder %s35, 3
      %p179 = por %p177, %p178
      %p180 = scmp.ne.s32.totalorder %s171, %s172
      %p181 = scmp.eq.s32.totalorder %s35, 0
      %p182 = por %p180, %p181
      %p183 = scmp.ne.s32.totalorder %s171, %s172
      %p184 = scmp.eq.s32.totalorder %s36, 3
      %p185 = por %p183, %p184
      %p187 = scmp.ne.s32.totalorder %s172, %s186
      %p188 = scmp.eq.s32.totalorder %s36, 0
      %p189 = por %p187, %p188
      %s191 = sadd.s32 %s190, 1
      %p194 = scmp.eq.s32.totalorder %s30, 3
      %p195 = scmp.ne.s32.totalorder %s190, %s192
      %p196 = scmp.eq.s32.totalorder %s30, 0
      %p197 = por %p195, %p196
      %p198 = scmp.ne.s32.totalorder %s190, %s192
      %p199 = scmp.eq.s32.totalorder %s35, 3
      %p200 = por %p198, %p199
      %p201 = scmp.ne.s32.totalorder %s192, %s193
      %p202 = scmp.eq.s32.totalorder %s35, 0
      %p203 = por %p201, %p202
      %p204 = scmp.ne.s32.totalorder %s192, %s193
      %p205 = scmp.eq.s32.totalorder %s36, 3
      %p206 = por %p204, %p205
      %p208 = scmp.ne.s32.totalorder %s193, %s207
      %p209 = scmp.eq.s32.totalorder %s36, 0
      %p210 = por %p208, %p209
      %s212 = sadd.s32 %s211, 1
      %p215 = scmp.eq.s32.totalorder %s30, 3
      %p216 = scmp.ne.s32.totalorder %s211, %s213
      %p217 = scmp.eq.s32.totalorder %s30, 0
      %p218 = por %p216, %p217
      %p219 = scmp.ne.s32.totalorder %s211, %s213
      %p220 = scmp.eq.s32.totalorder %s35, 3
      %p221 = por %p219, %p220
      %p222 = scmp.ne.s32.totalorder %s213, %s214
      %p223 = scmp.eq.s32.totalorder %s35, 0
      %p224 = por %p222, %p223
      %p225 = scmp.ne.s32.totalorder %s213, %s214
      %p226 = scmp.eq.s32.totalorder %s36, 3
      %p227 = por %p225, %p226
      %p229 = scmp.ne.s32.totalorder %s214, %s228
      %p230 = scmp.eq.s32.totalorder %s36, 0
      %p231 = por %p229, %p230
      %s233 = sadd.s32 %s232, 1
      %p236 = scmp.eq.s32.totalorder %s30, 3
      %p237 = scmp.ne.s32.totalorder %s232, %s234
      %p238 = scmp.eq.s32.totalorder %s30, 0
      %p239 = por %p237, %p238
      %p240 = scmp.ne.s32.totalorder %s232, %s234
      %p241 = scmp.eq.s32.totalorder %s35, 3
      %p242 = por %p240, %p241
      %p243 = scmp.ne.s32.totalorder %s234, %s235
      %p244 = scmp.eq.s32.totalorder %s35, 0
      %p245 = por %p243, %p244
      %p246 = scmp.ne.s32.totalorder %s234, %s235
      %p247 = scmp.eq.s32.totalorder %s36, 3
      %p248 = por %p246, %p247
      %p250 = scmp.ne.s32.totalorder %s235, %s249
      %p251 = scmp.eq.s32.totalorder %s36, 0
      %p252 = por %p250, %p251
      %s254 = sadd.s32 %s253, 1
      %p257 = scmp.eq.s32.totalorder %s30, 3
      %p258 = scmp.ne.s32.totalorder %s253, %s255
      %p259 = scmp.eq.s32.totalorder %s30, 0
      %p260 = por %p258, %p259
      %p261 = scmp.ne.s32.totalorder %s253, %s255
      %p262 = scmp.eq.s32.totalorder %s35, 3
      %p263 = por %p261, %p262
      %p264 = scmp.ne.s32.totalorder %s255, %s256
      %p265 = scmp.eq.s32.totalorder %s35, 0
      %p266 = por %p264, %p265
      %p267 = scmp.ne.s32.totalorder %s255, %s256
      %p268 = scmp.eq.s32.totalorder %s36, 3
      %p269 = por %p267, %p268
      %p271 = scmp.ne.s32.totalorder %s256, %s270
      %p272 = scmp.eq.s32.totalorder %s36, 0
      %p273 = por %p271, %p272
      %s275 = sadd.s32 %s274, 1
      %p278 = scmp.eq.s32.totalorder %s30, 3
      %p279 = scmp.ne.s32.totalorder %s274, %s276
      %p280 = scmp.eq.s32.totalorder %s30, 0
      %p281 = por %p279, %p280
      %p282 = scmp.ne.s32.totalorder %s274, %s276
      %p283 = scmp.eq.s32.totalorder %s35, 3
      %p284 = por %p282, %p283
      %p285 = scmp.ne.s32.totalorder %s276, %s277
      %p286 = scmp.eq.s32.totalorder %s35, 0
      %p287 = por %p285, %p286
      %p288 = scmp.ne.s32.totalorder %s276, %s277
      %p289 = scmp.eq.s32.totalorder %s36, 3
      %p290 = por %p288, %p289
      %p292 = scmp.ne.s32.totalorder %s277, %s291
      %p293 = scmp.eq.s32.totalorder %s36, 0
      %p294 = por %p292, %p293
      %s296 = sadd.s32 %s295, 1
      %p299 = scmp.eq.s32.totalorder %s30, 3
      %p300 = scmp.ne.s32.totalorder %s295, %s297
      %p301 = scmp.eq.s32.totalorder %s30, 0
      %p302 = por %p300, %p301
      %p303 = scmp.ne.s32.totalorder %s295, %s297
      %p304 = scmp.eq.s32.totalorder %s35, 3
      %p305 = por %p303, %p304
      %p306 = scmp.ne.s32.totalorder %s297, %s298
      %p307 = scmp.eq.s32.totalorder %s35, 0
      %p308 = por %p306, %p307
      %p309 = scmp.ne.s32.totalorder %s297, %s298
      %p310 = scmp.eq.s32.totalorder %s36, 3
      %p311 = por %p309, %p310
      %p313 = scmp.ne.s32.totalorder %s298, %s312
      %p314 = scmp.eq.s32.totalorder %s36, 0
      %p315 = por %p313, %p314
      %s317 = sadd.s32 %s316, 1
      %p320 = scmp.eq.s32.totalorder %s30, 3
      %p321 = scmp.ne.s32.totalorder %s316, %s318
      %p322 = scmp.eq.s32.totalorder %s30, 0
      %p323 = por %p321, %p322
      %p324 = scmp.ne.s32.totalorder %s316, %s318
      %p325 = scmp.eq.s32.totalorder %s35, 3
      %p326 = por %p324, %p325
      %p327 = scmp.ne.s32.totalorder %s318, %s319
      %p328 = scmp.eq.s32.totalorder %s35, 0
      %p329 = por %p327, %p328
      %p330 = scmp.ne.s32.totalorder %s318, %s319
      %p331 = scmp.eq.s32.totalorder %s36, 3
      %p332 = por %p330, %p331
      %p334 = scmp.ne.s32.totalorder %s319, %s333
      %p335 = scmp.eq.s32.totalorder %s36, 0
      %p336 = por %p334, %p335
      %s338 = sadd.s32 %s337, 1
      %p341 = scmp.eq.s32.totalorder %s30, 3
      %p342 = scmp.ne.s32.totalorder %s337, %s339
      %p343 = scmp.eq.s32.totalorder %s30, 0
      %p344 = por %p342, %p343
      %p345 = scmp.ne.s32.totalorder %s337, %s339
      %p346 = scmp.eq.s32.totalorder %s35, 3
      %p347 = por %p345, %p346
      %p348 = scmp.ne.s32.totalorder %s339, %s340
      %p349 = scmp.eq.s32.totalorder %s35, 0
      %p350 = por %p348, %p349
      %p351 = scmp.ne.s32.totalorder %s339, %s340
      %p352 = scmp.eq.s32.totalorder %s36, 3
      %p353 = por %p351, %p352
      %p355 = scmp.ne.s32.totalorder %s340, %s354
      %p356 = scmp.eq.s32.totalorder %s36, 0
      %p357 = por %p355, %p356
      %s359 = sadd.s32 %s358, 1
      %p362 = scmp.eq.s32.totalorder %s30, 3
      %p363 = scmp.ne.s32.totalorder %s358, %s360
      %p364 = scmp.eq.s32.totalorder %s30, 0
      %p365 = por %p363, %p364
      %p366 = scmp.ne.s32.totalorder %s358, %s360
      %p367 = scmp.eq.s32.totalorder %s35, 3
      %p368 = por %p366, %p367
      %p369 = scmp.ne.s32.totalorder %s360, %s361
      %p370 = scmp.eq.s32.totalorder %s35, 0
      %p371 = por %p369, %p370
      %p372 = scmp.ne.s32.totalorder %s360, %s361
      %p373 = scmp.eq.s32.totalorder %s36, 3
      %p374 = por %p372, %p373
      %p376 = scmp.ne.s32.totalorder %s361, %s375
      %p377 = scmp.eq.s32.totalorder %s36, 0
      %p378 = por %p376, %p377
      %s380 = sadd.s32 %s379, 1
      %p383 = scmp.eq.s32.totalorder %s30, 3
      %p384 = scmp.ne.s32.totalorder %s379, %s381
      %p385 = scmp.eq.s32.totalorder %s30, 0
      %p386 = por %p384, %p385
      %p387 = scmp.ne.s32.totalorder %s379, %s381
      %p388 = scmp.eq.s32.totalorder %s35, 3
      %p389 = por %p387, %p388
      %p390 = scmp.ne.s32.totalorder %s381, %s382
      %p391 = scmp.eq.s32.totalorder %s35, 0
      %p392 = por %p390, %p391
      %p393 = scmp.ne.s32.totalorder %s381, %s382
      %p394 = scmp.eq.s32.totalorder %s36, 3
      %p395 = por %p393, %p394
      %p397 = scmp.ne.s32.totalorder %s382, %s396
      %p398 = scmp.eq.s32.totalorder %s36, 0
      %p399 = por %p397, %p398
      %s401 = sadd.s32 %s400, 1
      %p404 = scmp.eq.s32.totalorder %s30, 3
      %p405 = scmp.ne.s32.totalorder %s400, %s402
      %p406 = scmp.eq.s32.totalorder %s30, 0
      %p407 = por %p405, %p406
      %p408 = scmp.ne.s32.totalorder %s400, %s402
      %p409 = scmp.eq.s32.totalorder %s35, 3
      %p410 = por %p408, %p409
      %p411 = scmp.ne.s32.totalorder %s402, %s403
      %p412 = scmp.eq.s32.totalorder %s35, 0
      %p413 = por %p411, %p412
      %p414 = scmp.ne.s32.totalorder %s402, %s403
      %p415 = scmp.eq.s32.totalorder %s36, 3
      %p416 = por %p414, %p415
      %p418 = scmp.ne.s32.totalorder %s403, %s417
      %p419 = scmp.eq.s32.totalorder %s36, 0
      %p420 = por %p418, %p419
      %s422 = sadd.s32 %s421, 1
      %p425 = scmp.eq.s32.totalorder %s30, 3
      %p426 = scmp.ne.s32.totalorder %s421, %s423
      %p427 = scmp.eq.s32.totalorder %s30, 0
      %p428 = por %p426, %p427
      %p429 = scmp.ne.s32.totalorder %s421, %s423
      %p430 = scmp.eq.s32.totalorder %s35, 3
      %p431 = por %p429, %p430
      %p432 = scmp.ne.s32.totalorder %s423, %s424
      %p433 = scmp.eq.s32.totalorder %s35, 0
      %p434 = por %p432, %p433
      %p435 = scmp.ne.s32.totalorder %s423, %s424
      %p436 = scmp.eq.s32.totalorder %s36, 3
      %p437 = por %p435, %p436
      %p439 = scmp.ne.s32.totalorder %s424, %s438
      %p440 = scmp.eq.s32.totalorder %s36, 0
      %p441 = por %p439, %p440
      %s443 = sadd.s32 %s442, 1
      %p446 = scmp.eq.s32.totalorder %s30, 3
      %p447 = scmp.ne.s32.totalorder %s442, %s444
      %p448 = scmp.eq.s32.totalorder %s30, 0
      %p449 = por %p447, %p448
      %p450 = scmp.ne.s32.totalorder %s442, %s444
      %p451 = scmp.eq.s32.totalorder %s35, 3
      %p452 = por %p450, %p451
      %p453 = scmp.ne.s32.totalorder %s444, %s445
      %p454 = scmp.eq.s32.totalorder %s35, 0
      %p455 = por %p453, %p454
      %p456 = scmp.ne.s32.totalorder %s444, %s445
      %p457 = scmp.eq.s32.totalorder %s36, 3
      %p458 = por %p456, %p457
      %p460 = scmp.ne.s32.totalorder %s445, %s459
      %p461 = scmp.eq.s32.totalorder %s36, 0
      %p462 = por %p460, %p461
      %s464 = sadd.s32 %s463, 1
      %p467 = scmp.eq.s32.totalorder %s30, 3
      %p468 = scmp.ne.s32.totalorder %s463, %s465
      %p469 = scmp.eq.s32.totalorder %s30, 0
      %p470 = por %p468, %p469
      %p471 = scmp.ne.s32.totalorder %s463, %s465
      %p472 = scmp.eq.s32.totalorder %s35, 3
      %p473 = por %p471, %p472
      %p474 = scmp.ne.s32.totalorder %s465, %s466
      %p475 = scmp.eq.s32.totalorder %s35, 0
      %p476 = por %p474, %p475
      %p477 = scmp.ne.s32.totalorder %s465, %s466
      %p478 = scmp.eq.s32.totalorder %s36, 3
      %p479 = por %p477, %p478
      %p481 = scmp.ne.s32.totalorder %s466, %s480
      %p482 = scmp.eq.s32.totalorder %s36, 0
      %p483 = por %p481, %p482
      %s484 = ssub.s32 %s30, %s37
      %p485 = scmp.eq.s32.totalorder %s484, 0
      %s487 = sadd.s32 %s486, 1
      %s488 = scalar_select %p485, %s486, %s487
      %p491 = pneg %p485
      %p492 = scmp.eq.s32.totalorder %s30, 3
      %p493 = por %p491, %p492
      %p494 = scmp.ne.s32.totalorder %s486, %s489
      %p495 = scmp.eq.s32.totalorder %s30, 0
      %p496 = por %p494, %p495
      %p497 = scmp.ne.s32.totalorder %s486, %s489
      %p498 = scmp.eq.s32.totalorder %s35, 3
      %p499 = por %p497, %p498
      %p500 = scmp.ne.s32.totalorder %s489, %s490
      %p501 = scmp.eq.s32.totalorder %s35, 0
      %p502 = por %p500, %p501
      %p503 = scmp.ne.s32.totalorder %s489, %s490
      %p504 = scmp.eq.s32.totalorder %s36, 3
      %p505 = por %p503, %p504
      %p507 = scmp.ne.s32.totalorder %s490, %s506
      %p508 = scmp.eq.s32.totalorder %s36, 0
      %p509 = por %p507, %p508
      %p510 = scmp.le.s32.totalorder 1, %s30
      %p511 = scmp.lt.s32.totalorder %s30, 5
      %p512 = pnand %p510, %p511
      %p513 = pneg %p512
      // Predicated region
      $region9: #{multilevel_forward.1} parent=5 // pred_check
        _
      $region10: #{multilevel_forward.1} parent=5 // pred_check_branch
        %515 = sbr.rel (%p512) target = $region12
      $region11: #{multilevel_forward.1} parent=5 // pred_region
        %s516 = ssub.s32 %s30, 1
        // Predicated region
        $region13: #{multilevel_forward.1} parent=11 // pred_check
          %p517 = pneg %p77
        $region14: #{multilevel_forward.1} parent=11 // pred_check_branch
          %519 = sbr.rel (%p517) target = $region16
        $region15: #{multilevel_forward.1} parent=11 // pred_region
          _
        $region16: #{multilevel_forward.1} parent=11 // pred_fallthru
          _
        // Predicated region
        $region17: #{multilevel_forward.1} parent=11 // pred_check
          %p520 = pneg %p98
        $region18: #{multilevel_forward.1} parent=11 // pred_check_branch
          %522 = sbr.rel (%p520) target = $region20
        $region19: #{multilevel_forward.1} parent=11 // pred_region
          _
        $region20: #{multilevel_forward.1} parent=11 // pred_fallthru
          _
        // Predicated region
        $region21: #{multilevel_forward.1} parent=11 // pred_check
          %p523 = pneg %p119
        $region22: #{multilevel_forward.1} parent=11 // pred_check_branch
          %525 = sbr.rel (%p523) target = $region24
        $region23: #{multilevel_forward.1} parent=11 // pred_region
          _
        $region24: #{multilevel_forward.1} parent=11 // pred_fallthru
          _
        // Predicated region
        $region25: #{multilevel_forward.1} parent=11 // pred_check
          %p526 = pneg %p140
        $region26: #{multilevel_forward.1} parent=11 // pred_check_branch
          %528 = sbr.rel (%p526) target = $region28
        $region27: #{multilevel_forward.1} parent=11 // pred_region
          _
        $region28: #{multilevel_forward.1} parent=11 // pred_fallthru
          _
        // Predicated region
        $region29: #{multilevel_forward.1} parent=11 // pred_check
          %p529 = pneg %p161
        $region30: #{multilevel_forward.1} parent=11 // pred_check_branch
          %531 = sbr.rel (%p529) target = $region32
        $region31: #{multilevel_forward.1} parent=11 // pred_region
          _
        $region32: #{multilevel_forward.1} parent=11 // pred_fallthru
          _
        // Predicated region
        $region33: #{multilevel_forward.1} parent=11 // pred_check
          %p532 = pneg %p182
        $region34: #{multilevel_forward.1} parent=11 // pred_check_branch
          %534 = sbr.rel (%p532) target = $region36
        $region35: #{multilevel_forward.1} parent=11 // pred_region
          _
        $region36: #{multilevel_forward.1} parent=11 // pred_fallthru
          _
        // Predicated region
        $region37: #{multilevel_forward.1} parent=11 // pred_check
          %p535 = pneg %p203
        $region38: #{multilevel_forward.1} parent=11 // pred_check_branch
          %537 = sbr.rel (%p535) target = $region40
        $region39: #{multilevel_forward.1} parent=11 // pred_region
          _
        $region40: #{multilevel_forward.1} parent=11 // pred_fallthru
          _
        // Predicated region
        $region41: #{multilevel_forward.1} parent=11 // pred_check
          %p538 = pneg %p224
        $region42: #{multilevel_forward.1} parent=11 // pred_check_branch
          %540 = sbr.rel (%p538) target = $region44
        $region43: #{multilevel_forward.1} parent=11 // pred_region
          _
        $region44: #{multilevel_forward.1} parent=11 // pred_fallthru
          _
        // Predicated region
        $region45: #{multilevel_forward.1} parent=11 // pred_check
          %p541 = pneg %p245
        $region46: #{multilevel_forward.1} parent=11 // pred_check_branch
          %543 = sbr.rel (%p541) target = $region48
        $region47: #{multilevel_forward.1} parent=11 // pred_region
          _
        $region48: #{multilevel_forward.1} parent=11 // pred_fallthru
          _
        // Predicated region
        $region49: #{multilevel_forward.1} parent=11 // pred_check
          %p544 = pneg %p266
        $region50: #{multilevel_forward.1} parent=11 // pred_check_branch
          %546 = sbr.rel (%p544) target = $region52
        $region51: #{multilevel_forward.1} parent=11 // pred_region
          _
        $region52: #{multilevel_forward.1} parent=11 // pred_fallthru
          _
        // Predicated region
        $region53: #{multilevel_forward.1} parent=11 // pred_check
          %p547 = pneg %p287
        $region54: #{multilevel_forward.1} parent=11 // pred_check_branch
          %549 = sbr.rel (%p547) target = $region56
        $region55: #{multilevel_forward.1} parent=11 // pred_region
          _
        $region56: #{multilevel_forward.1} parent=11 // pred_fallthru
          _
        // Predicated region
        $region57: #{multilevel_forward.1} parent=11 // pred_check
          %p550 = pneg %p308
        $region58: #{multilevel_forward.1} parent=11 // pred_check_branch
          %552 = sbr.rel (%p550) target = $region60
        $region59: #{multilevel_forward.1} parent=11 // pred_region
          _
        $region60: #{multilevel_forward.1} parent=11 // pred_fallthru
          _
        // Predicated region
        $region61: #{multilevel_forward.1} parent=11 // pred_check
          %p553 = pneg %p329
        $region62: #{multilevel_forward.1} parent=11 // pred_check_branch
          %555 = sbr.rel (%p553) target = $region64
        $region63: #{multilevel_forward.1} parent=11 // pred_region
          _
        $region64: #{multilevel_forward.1} parent=11 // pred_fallthru
          _
        // Predicated region
        $region65: #{multilevel_forward.1} parent=11 // pred_check
          %p556 = pneg %p350
        $region66: #{multilevel_forward.1} parent=11 // pred_check_branch
          %558 = sbr.rel (%p556) target = $region68
        $region67: #{multilevel_forward.1} parent=11 // pred_region
          _
        $region68: #{multilevel_forward.1} parent=11 // pred_fallthru
          _
        // Predicated region
        $region69: #{multilevel_forward.1} parent=11 // pred_check
          %p559 = pneg %p371
        $region70: #{multilevel_forward.1} parent=11 // pred_check_branch
          %561 = sbr.rel (%p559) target = $region72
        $region71: #{multilevel_forward.1} parent=11 // pred_region
          _
        $region72: #{multilevel_forward.1} parent=11 // pred_fallthru
          _
        // Predicated region
        $region73: #{multilevel_forward.1} parent=11 // pred_check
          %p562 = pneg %p392
        $region74: #{multilevel_forward.1} parent=11 // pred_check_branch
          %564 = sbr.rel (%p562) target = $region76
        $region75: #{multilevel_forward.1} parent=11 // pred_region
          _
        $region76: #{multilevel_forward.1} parent=11 // pred_fallthru
          _
        // Predicated region
        $region77: #{multilevel_forward.1} parent=11 // pred_check
          %p565 = pneg %p413
        $region78: #{multilevel_forward.1} parent=11 // pred_check_branch
          %567 = sbr.rel (%p565) target = $region80
        $region79: #{multilevel_forward.1} parent=11 // pred_region
          _
        $region80: #{multilevel_forward.1} parent=11 // pred_fallthru
          _
        // Predicated region
        $region81: #{multilevel_forward.1} parent=11 // pred_check
          %p568 = pneg %p434
        $region82: #{multilevel_forward.1} parent=11 // pred_check_branch
          %570 = sbr.rel (%p568) target = $region84
        $region83: #{multilevel_forward.1} parent=11 // pred_region
          _
        $region84: #{multilevel_forward.1} parent=11 // pred_fallthru
          _
        // Predicated region
        $region85: #{multilevel_forward.1} parent=11 // pred_check
          %p571 = pneg %p455
        $region86: #{multilevel_forward.1} parent=11 // pred_check_branch
          %573 = sbr.rel (%p571) target = $region88
        $region87: #{multilevel_forward.1} parent=11 // pred_region
          _
        $region88: #{multilevel_forward.1} parent=11 // pred_fallthru
          _
        // Predicated region
        $region89: #{multilevel_forward.1} parent=11 // pred_check
          %p574 = pneg %p476
        $region90: #{multilevel_forward.1} parent=11 // pred_check_branch
          %576 = sbr.rel (%p574) target = $region92
        $region91: #{multilevel_forward.1} parent=11 // pred_region
          _
        $region92: #{multilevel_forward.1} parent=11 // pred_fallthru
          _
      $region12: #{multilevel_forward.1} parent=5 // pred_fallthru
        _
      %p577 = scmp.lt.s32.totalorder %s30, 4
      // Predicated region
      $region93: #{multilevel_forward.1} parent=5 // pred_check
        %p578 = pneg %p577
      $region94: #{multilevel_forward.1} parent=5 // pred_check_branch
        %580 = sbr.rel (%p578) target = $region96
      $region95: #{multilevel_forward.1} parent=5 // pred_region
        // Predicated region
        $region97: #{multilevel_forward.1} parent=95 // pred_check
          %p581 = pneg %p50
        $region98: #{multilevel_forward.1} parent=95 // pred_check_branch
          %583 = sbr.rel (%p581) target = $region100
        $region99: #{multilevel_forward.1} parent=95 // pred_region
          %s584 = smul.u32 64, %s30
          %p585 = scmp.lt.s32.totalorder %s584, 255
          %s586 = scalar_select %p585, %s584, 255
          %s587 = smul.addr %s586, 8
          %s588 = scalar_lea.vmem %s0, %s587
          %s589 = smul.u32 64, %s30
        $region100: #{multilevel_forward.1} parent=95 // pred_fallthru
          _
      $region96: #{multilevel_forward.1} parent=5 // pred_fallthru
        _
      %p590 = scmp.le.s32.totalorder 1, %s30
      %p591 = scmp.lt.s32.totalorder %s30, 5
      %p592 = pnand %p590, %p591
      %p593 = pneg %p592
      // Predicated region
      $region101: #{multilevel_forward.1} parent=5 // pred_check
        _
      $region102: #{multilevel_forward.1} parent=5 // pred_check_branch
        %595 = sbr.rel (%p592) target = $region104
      $region103: #{multilevel_forward.1} parent=5 // pred_region
        %s596 = ssub.s32 %s30, 1
        %s597 = smul.u32 64, %s35
        %p598 = scmp.lt.s32.totalorder %s597, 255
        %s599 = scalar_select %p598, %s597, 255
        %s600 = smul.addr %s599, 8
        %s601 = scalar_lea.vmem %s0, %s600
        %p602 = pneg %p56
        %p603 = pneg %p53
        %p604 = pneg %p77
        %p605 = pneg %p74
        %p606 = pneg %p98
        %p607 = pneg %p95
        %p608 = pneg %p119
        %p609 = pneg %p116
        %p610 = pneg %p140
        %p611 = pneg %p137
        %p612 = pneg %p161
        %p613 = pneg %p158
        %p614 = pneg %p182
        %p615 = pneg %p179
        %p616 = pneg %p203
        %p617 = pneg %p200
        %p618 = pneg %p224
        %p619 = pneg %p221
        %p620 = pneg %p245
        %p621 = pneg %p242
        %p622 = pneg %p266
        %p623 = pneg %p263
        %p624 = pneg %p287
        %p625 = pneg %p284
        %p626 = pneg %p308
        %p627 = pneg %p305
        %p628 = pneg %p329
        %p629 = pneg %p326
        %p630 = pneg %p350
        %p631 = pneg %p347
        %p632 = pneg %p371
        %p633 = pneg %p368
        %p634 = pneg %p392
        %p635 = pneg %p389
        %p636 = pneg %p413
        %p637 = pneg %p410
        %p638 = pneg %p434
        %p639 = pneg %p431
        %p640 = pneg %p455
        %p641 = pneg %p452
        %p642 = pneg %p476
        %p643 = pneg %p473
        %p644 = pneg %p502
        %p645 = pneg %p499
        %s646 = sand.u32 %s489, 1
        %s647 = scalar_lea.sflag [#allocation3], %s646
        %s648 = sand.u32 %s489, 1
        %s649 = smul.addr %s648, 4
        %s650 = scalar_lea.vmem [#allocation2], %s649
        %s651 = smul.u32 64, %s35
        %p652 = scmp.lt.s32.totalorder %s651, 255
        %s653 = scalar_select %p652, %s651, 255
        %s654 = smul.addr %s653, 8
        %s655 = scalar_lea.vmem %s0, %s654
        %s656 = smul.u32 64, %s35
        %s657 = smul.u32 4, %s35
        %v658 = vld [vmem:[%s655] sm:$0xff]
        %v659 = vld [vmem:[%s655 + $0x8] sm:$0xff]
        %v660 = vld [vmem:[%s655 + $0x10] sm:$0xff]
        %v661 = vld [vmem:[%s655 + $0x18] sm:$0xff]
        %v662 = vld [vmem:[%s655 + $0x20] sm:$0xff]
        %v663 = vld [vmem:[%s655 + $0x28] sm:$0xff]
        %v664 = vld [vmem:[%s655 + $0x30] sm:$0xff]
        %v665 = vld [vmem:[%s655 + $0x38] sm:$0xff]
        %v666 = vld [vmem:[%s655 + $0x40] sm:$0xff]
        %v667 = vld [vmem:[%s655 + $0x48] sm:$0xff]
        %v668 = vld [vmem:[%s655 + $0x50] sm:$0xff]
        %v669 = vld [vmem:[%s655 + $0x58] sm:$0xff]
        %v670 = vld [vmem:[%s655 + $0x60] sm:$0xff]
        %v671 = vld [vmem:[%s655 + $0x68] sm:$0xff]
        %v672 = vld [vmem:[%s655 + $0x70] sm:$0xff]
        %v673 = vld [vmem:[%s655 + $0x78] sm:$0xff]
        %v674 = vld [vmem:[%s655 + $0x80] sm:$0xff]
        %v675 = vld [vmem:[%s655 + $0x88] sm:$0xff]
        %v676 = vld [vmem:[%s655 + $0x90] sm:$0xff]
        %v677 = vld [vmem:[%s655 + $0x98] sm:$0xff]
        %v678 = vld [vmem:[%s655 + $0xa0] sm:$0xff]
        %v679 = vld [vmem:[%s655 + $0xa8] sm:$0xff]
        %v680 = vld [vmem:[%s655 + $0xb0] sm:$0xff]
        %v681 = vld [vmem:[%s655 + $0xb8] sm:$0xff]
        %v682 = vld [vmem:[%s655 + $0xc0] sm:$0xff]
        %v683 = vld [vmem:[%s655 + $0xc8] sm:$0xff]
        %v684 = vld [vmem:[%s655 + $0xd0] sm:$0xff]
        %v685 = vld [vmem:[%s655 + $0xd8] sm:$0xff]
        %v686 = vld [vmem:[%s655 + $0xe0] sm:$0xff]
        %v687 = vld [vmem:[%s655 + $0xe8] sm:$0xff]
        %v688 = vld [vmem:[%s655 + $0xf0] sm:$0xff]
        %v689 = vld [vmem:[%s655 + $0xf8] sm:$0xff]
        %v690 = vld [vmem:[%s655 + $0x100] sm:$0xff]
        %v691 = vld [vmem:[%s655 + $0x108] sm:$0xff]
        %v692 = vld [vmem:[%s655 + $0x110] sm:$0xff]
        %v693 = vld [vmem:[%s655 + $0x118] sm:$0xff]
        %v694 = vld [vmem:[%s655 + $0x120] sm:$0xff]
        %v695 = vld [vmem:[%s655 + $0x128] sm:$0xff]
        %v696 = vld [vmem:[%s655 + $0x130] sm:$0xff]
        %v697 = vld [vmem:[%s655 + $0x138] sm:$0xff]
        %v698 = vld [vmem:[%s655 + $0x140] sm:$0xff]
        %v699 = vld [vmem:[%s655 + $0x148] sm:$0xff]
        %v700 = vld [vmem:[%s655 + $0x150] sm:$0xff]
        %v701 = vld [vmem:[%s655 + $0x158] sm:$0xff]
        %v702 = vld [vmem:[%s655 + $0x160] sm:$0xff]
        %v703 = vld [vmem:[%s655 + $0x168] sm:$0xff]
        %v704 = vld [vmem:[%s655 + $0x170] sm:$0xff]
        %v705 = vld [vmem:[%s655 + $0x178] sm:$0xff]
        %v706 = vld [vmem:[%s655 + $0x180] sm:$0xff]
        %v707 = vld [vmem:[%s655 + $0x188] sm:$0xff]
        %v708 = vld [vmem:[%s655 + $0x190] sm:$0xff]
        %v709 = vld [vmem:[%s655 + $0x198] sm:$0xff]
        %v710 = vld [vmem:[%s655 + $0x1a0] sm:$0xff]
        %v711 = vld [vmem:[%s655 + $0x1a8] sm:$0xff]
        %v712 = vld [vmem:[%s655 + $0x1b0] sm:$0xff]
        %v713 = vld [vmem:[%s655 + $0x1b8] sm:$0xff]
        %v714 = vld [vmem:[%s655 + $0x1c0] sm:$0xff]
        %v715 = vld [vmem:[%s655 + $0x1c8] sm:$0xff]
        %v716 = vld [vmem:[%s655 + $0x1d0] sm:$0xff]
        %v717 = vld [vmem:[%s655 + $0x1d8] sm:$0xff]
        %v718 = vld [vmem:[%s655 + $0x1e0] sm:$0xff]
        %v719 = vld [vmem:[%s655 + $0x1e8] sm:$0xff]
        %v720 = vld [vmem:[%s655 + $0x1f0] sm:$0xff]
        %v721 = vld [vmem:[%s655 + $0x1f8] sm:$0xff]
        %v722 = vld [vmem:[%s11] sm:$0xf]
        %724 = vset.pattern.permute.xlu0 0
        %725 = vperm.xlu0 %724, %v658
        %v726 = vpop.permute.xlu0 %725
        %729 = vset.pattern.permute.xlu0 0
        %730 = vperm.xlu0 %729, %v659
        %v731 = vpop.permute.xlu0 %730
        %734 = vset.pattern.permute.xlu0 0
        %735 = vperm.xlu0 %734, %v660
        %v736 = vpop.permute.xlu0 %735
        %739 = vset.pattern.permute.xlu0 0
        %740 = vperm.xlu0 %739, %v661
        %v741 = vpop.permute.xlu0 %740
        %744 = vset.pattern.permute.xlu0 0
        %745 = vperm.xlu0 %744, %v662
        %v746 = vpop.permute.xlu0 %745
        %749 = vset.pattern.permute.xlu0 0
        %750 = vperm.xlu0 %749, %v663
        %v751 = vpop.permute.xlu0 %750
        %754 = vset.pattern.permute.xlu0 0
        %755 = vperm.xlu0 %754, %v664
        %v756 = vpop.permute.xlu0 %755
        %759 = vset.pattern.permute.xlu0 0
        %760 = vperm.xlu0 %759, %v665
        %v761 = vpop.permute.xlu0 %760
        %764 = vset.pattern.permute.xlu0 0
        %765 = vperm.xlu0 %764, %v666
        %v766 = vpop.permute.xlu0 %765
        %769 = vset.pattern.permute.xlu0 0
        %770 = vperm.xlu0 %769, %v667
        %v771 = vpop.permute.xlu0 %770
        %774 = vset.pattern.permute.xlu0 0
        %775 = vperm.xlu0 %774, %v668
        %v776 = vpop.permute.xlu0 %775
        %779 = vset.pattern.permute.xlu0 0
        %780 = vperm.xlu0 %779, %v669
        %v781 = vpop.permute.xlu0 %780
        %784 = vset.pattern.permute.xlu0 0
        %785 = vperm.xlu0 %784, %v670
        %v786 = vpop.permute.xlu0 %785
        %789 = vset.pattern.permute.xlu0 0
        %790 = vperm.xlu0 %789, %v671
        %v791 = vpop.permute.xlu0 %790
        %794 = vset.pattern.permute.xlu0 0
        %795 = vperm.xlu0 %794, %v672
        %v796 = vpop.permute.xlu0 %795
        %799 = vset.pattern.permute.xlu0 0
        %800 = vperm.xlu0 %799, %v673
        %v801 = vpop.permute.xlu0 %800
        %804 = vset.pattern.permute.xlu0 0
        %805 = vperm.xlu0 %804, %v674
        %v806 = vpop.permute.xlu0 %805
        %809 = vset.pattern.permute.xlu0 0
        %810 = vperm.xlu0 %809, %v675
        %v811 = vpop.permute.xlu0 %810
        %814 = vset.pattern.permute.xlu0 0
        %815 = vperm.xlu0 %814, %v676
        %v816 = vpop.permute.xlu0 %815
        %819 = vset.pattern.permute.xlu0 0
        %820 = vperm.xlu0 %819, %v677
        %v821 = vpop.permute.xlu0 %820
        %824 = vset.pattern.permute.xlu0 0
        %825 = vperm.xlu0 %824, %v678
        %v826 = vpop.permute.xlu0 %825
        %829 = vset.pattern.permute.xlu0 0
        %830 = vperm.xlu0 %829, %v679
        %v831 = vpop.permute.xlu0 %830
        %834 = vset.pattern.permute.xlu0 0
        %835 = vperm.xlu0 %834, %v680
        %v836 = vpop.permute.xlu0 %835
        %839 = vset.pattern.permute.xlu0 0
        %840 = vperm.xlu0 %839, %v681
        %v841 = vpop.permute.xlu0 %840
        %844 = vset.pattern.permute.xlu0 0
        %845 = vperm.xlu0 %844, %v682
        %v846 = vpop.permute.xlu0 %845
        %849 = vset.pattern.permute.xlu0 0
        %850 = vperm.xlu0 %849, %v683
        %v851 = vpop.permute.xlu0 %850
        %854 = vset.pattern.permute.xlu0 0
        %855 = vperm.xlu0 %854, %v684
        %v856 = vpop.permute.xlu0 %855
        %859 = vset.pattern.permute.xlu0 0
        %860 = vperm.xlu0 %859, %v685
        %v861 = vpop.permute.xlu0 %860
        %864 = vset.pattern.permute.xlu0 0
        %865 = vperm.xlu0 %864, %v686
        %v866 = vpop.permute.xlu0 %865
        %869 = vset.pattern.permute.xlu0 0
        %870 = vperm.xlu0 %869, %v687
        %v871 = vpop.permute.xlu0 %870
        %874 = vset.pattern.permute.xlu0 0
        %875 = vperm.xlu0 %874, %v688
        %v876 = vpop.permute.xlu0 %875
        %879 = vset.pattern.permute.xlu0 0
        %880 = vperm.xlu0 %879, %v689
        %v881 = vpop.permute.xlu0 %880
        %884 = vset.pattern.permute.xlu0 0
        %885 = vperm.xlu0 %884, %v690
        %v886 = vpop.permute.xlu0 %885
        %889 = vset.pattern.permute.xlu0 0
        %890 = vperm.xlu0 %889, %v691
        %v891 = vpop.permute.xlu0 %890
        %894 = vset.pattern.permute.xlu0 0
        %895 = vperm.xlu0 %894, %v692
        %v896 = vpop.permute.xlu0 %895
        %899 = vset.pattern.permute.xlu0 0
        %900 = vperm.xlu0 %899, %v693
        %v901 = vpop.permute.xlu0 %900
        %904 = vset.pattern.permute.xlu0 0
        %905 = vperm.xlu0 %904, %v694
        %v906 = vpop.permute.xlu0 %905
        %909 = vset.pattern.permute.xlu0 0
        %910 = vperm.xlu0 %909, %v695
        %v911 = vpop.permute.xlu0 %910
        %914 = vset.pattern.permute.xlu0 0
        %915 = vperm.xlu0 %914, %v696
        %v916 = vpop.permute.xlu0 %915
        %919 = vset.pattern.permute.xlu0 0
        %920 = vperm.xlu0 %919, %v697
        %v921 = vpop.permute.xlu0 %920
        %924 = vset.pattern.permute.xlu0 0
        %925 = vperm.xlu0 %924, %v698
        %v926 = vpop.permute.xlu0 %925
        %929 = vset.pattern.permute.xlu0 0
        %930 = vperm.xlu0 %929, %v699
        %v931 = vpop.permute.xlu0 %930
        %934 = vset.pattern.permute.xlu0 0
        %935 = vperm.xlu0 %934, %v700
        %v936 = vpop.permute.xlu0 %935
        %939 = vset.pattern.permute.xlu0 0
        %940 = vperm.xlu0 %939, %v701
        %v941 = vpop.permute.xlu0 %940
        %944 = vset.pattern.permute.xlu0 0
        %945 = vperm.xlu0 %944, %v702
        %v946 = vpop.permute.xlu0 %945
        %949 = vset.pattern.permute.xlu0 0
        %950 = vperm.xlu0 %949, %v703
        %v951 = vpop.permute.xlu0 %950
        %954 = vset.pattern.permute.xlu0 0
        %955 = vperm.xlu0 %954, %v704
        %v956 = vpop.permute.xlu0 %955
        %959 = vset.pattern.permute.xlu0 0
        %960 = vperm.xlu0 %959, %v705
        %v961 = vpop.permute.xlu0 %960
        %964 = vset.pattern.permute.xlu0 0
        %965 = vperm.xlu0 %964, %v706
        %v966 = vpop.permute.xlu0 %965
        %969 = vset.pattern.permute.xlu0 0
        %970 = vperm.xlu0 %969, %v707
        %v971 = vpop.permute.xlu0 %970
        %974 = vset.pattern.permute.xlu0 0
        %975 = vperm.xlu0 %974, %v708
        %v976 = vpop.permute.xlu0 %975
        %979 = vset.pattern.permute.xlu0 0
        %980 = vperm.xlu0 %979, %v709
        %v981 = vpop.permute.xlu0 %980
        %984 = vset.pattern.permute.xlu0 0
        %985 = vperm.xlu0 %984, %v710
        %v986 = vpop.permute.xlu0 %985
        %989 = vset.pattern.permute.xlu0 0
        %990 = vperm.xlu0 %989, %v711
        %v991 = vpop.permute.xlu0 %990
        %994 = vset.pattern.permute.xlu0 0
        %995 = vperm.xlu0 %994, %v712
        %v996 = vpop.permute.xlu0 %995
        %999 = vset.pattern.permute.xlu0 0
        %1000 = vperm.xlu0 %999, %v713
        %v1001 = vpop.permute.xlu0 %1000
        %1004 = vset.pattern.permute.xlu0 0
        %1005 = vperm.xlu0 %1004, %v714
        %v1006 = vpop.permute.xlu0 %1005
        %1009 = vset.pattern.permute.xlu0 0
        %1010 = vperm.xlu0 %1009, %v715
        %v1011 = vpop.permute.xlu0 %1010
        %1014 = vset.pattern.permute.xlu0 0
        %1015 = vperm.xlu0 %1014, %v716
        %v1016 = vpop.permute.xlu0 %1015
        %1019 = vset.pattern.permute.xlu0 0
        %1020 = vperm.xlu0 %1019, %v717
        %v1021 = vpop.permute.xlu0 %1020
        %1024 = vset.pattern.permute.xlu0 0
        %1025 = vperm.xlu0 %1024, %v718
        %v1026 = vpop.permute.xlu0 %1025
        %1029 = vset.pattern.permute.xlu0 0
        %1030 = vperm.xlu0 %1029, %v719
        %v1031 = vpop.permute.xlu0 %1030
        %1034 = vset.pattern.permute.xlu0 0
        %1035 = vperm.xlu0 %1034, %v720
        %v1036 = vpop.permute.xlu0 %1035
        %1039 = vset.pattern.permute.xlu0 0
        %1040 = vperm.xlu0 %1039, %v721
        %v1041 = vpop.permute.xlu0 %1040
        %v1043 = vperm.slane %v722, 0
        %v1044 = vmul.f32 %v726, %v1043
        %v1045 = vmul.f32 %v731, %v1043
        %v1046 = vmul.f32 %v736, %v1043
        %v1047 = vmul.f32 %v741, %v1043
        %v1048 = vmul.f32 %v746, %v1043
        %v1049 = vmul.f32 %v751, %v1043
        %v1050 = vmul.f32 %v756, %v1043
        %v1051 = vmul.f32 %v761, %v1043
        %v1052 = vmul.f32 %v766, %v1043
        %v1053 = vmul.f32 %v771, %v1043
        %v1054 = vmul.f32 %v776, %v1043
        %v1055 = vmul.f32 %v781, %v1043
        %v1056 = vmul.f32 %v786, %v1043
        %v1057 = vmul.f32 %v791, %v1043
        %v1058 = vmul.f32 %v796, %v1043
        %v1059 = vmul.f32 %v801, %v1043
        %v1060 = vmul.f32 %v806, %v1043
        %v1061 = vmul.f32 %v811, %v1043
        %v1062 = vmul.f32 %v816, %v1043
        %v1063 = vmul.f32 %v821, %v1043
        %v1064 = vmul.f32 %v826, %v1043
        %v1065 = vmul.f32 %v831, %v1043
        %v1066 = vmul.f32 %v836, %v1043
        %v1067 = vmul.f32 %v841, %v1043
        %v1068 = vmul.f32 %v846, %v1043
        %v1069 = vmul.f32 %v851, %v1043
        %v1070 = vmul.f32 %v856, %v1043
        %v1071 = vmul.f32 %v861, %v1043
        %v1072 = vmul.f32 %v866, %v1043
        %v1073 = vmul.f32 %v871, %v1043
        %v1074 = vmul.f32 %v876, %v1043
        %v1075 = vmul.f32 %v881, %v1043
        %v1076 = vmul.f32 %v886, %v1043
        %v1077 = vmul.f32 %v891, %v1043
        %v1078 = vmul.f32 %v896, %v1043
        %v1079 = vmul.f32 %v901, %v1043
        %v1080 = vmul.f32 %v906, %v1043
        %v1081 = vmul.f32 %v911, %v1043
        %v1082 = vmul.f32 %v916, %v1043
        %v1083 = vmul.f32 %v921, %v1043
        %v1084 = vmul.f32 %v926, %v1043
        %v1085 = vmul.f32 %v931, %v1043
        %v1086 = vmul.f32 %v936, %v1043
        %v1087 = vmul.f32 %v941, %v1043
        %v1088 = vmul.f32 %v946, %v1043
        %v1089 = vmul.f32 %v951, %v1043
        %v1090 = vmul.f32 %v956, %v1043
        %v1091 = vmul.f32 %v961, %v1043
        %v1092 = vmul.f32 %v966, %v1043
        %v1093 = vmul.f32 %v971, %v1043
        %v1094 = vmul.f32 %v976, %v1043
        %v1095 = vmul.f32 %v981, %v1043
        %v1096 = vmul.f32 %v986, %v1043
        %v1097 = vmul.f32 %v991, %v1043
        %v1098 = vmul.f32 %v996, %v1043
        %v1099 = vmul.f32 %v1001, %v1043
        %v1100 = vmul.f32 %v1006, %v1043
        %v1101 = vmul.f32 %v1011, %v1043
        %v1102 = vmul.f32 %v1016, %v1043
        %v1103 = vmul.f32 %v1021, %v1043
        %v1104 = vmul.f32 %v1026, %v1043
        %v1105 = vmul.f32 %v1031, %v1043
        %v1106 = vmul.f32 %v1036, %v1043
        %v1107 = vmul.f32 %v1041, %v1043
        %v1108 = vld [vmem:[%s12] sm:$0x1]
        %v1110 = vperm.slane %v1108, 0
        %v1112 = vadd.f32 %v1044, %v1110
        %v1113 = vadd.f32 %v1045, %v1110
        %v1114 = vadd.f32 %v1046, %v1110
        %v1115 = vadd.f32 %v1047, %v1110
        %v1116 = vadd.f32 %v1048, %v1110
        %v1117 = vadd.f32 %v1049, %v1110
        %v1118 = vadd.f32 %v1050, %v1110
        %v1119 = vadd.f32 %v1051, %v1110
        %v1120 = vadd.f32 %v1052, %v1110
        %v1121 = vadd.f32 %v1053, %v1110
        %v1122 = vadd.f32 %v1054, %v1110
        %v1123 = vadd.f32 %v1055, %v1110
        %v1124 = vadd.f32 %v1056, %v1110
        %v1125 = vadd.f32 %v1057, %v1110
        %v1126 = vadd.f32 %v1058, %v1110
        %v1127 = vadd.f32 %v1059, %v1110
        %v1128 = vadd.f32 %v1060, %v1110
        %v1129 = vadd.f32 %v1061, %v1110
        %v1130 = vadd.f32 %v1062, %v1110
        %v1131 = vadd.f32 %v1063, %v1110
        %v1132 = vadd.f32 %v1064, %v1110
        %v1133 = vadd.f32 %v1065, %v1110
        %v1134 = vadd.f32 %v1066, %v1110
        %v1135 = vadd.f32 %v1067, %v1110
        %v1136 = vadd.f32 %v1068, %v1110
        %v1137 = vadd.f32 %v1069, %v1110
        %v1138 = vadd.f32 %v1070, %v1110
        %v1139 = vadd.f32 %v1071, %v1110
        %v1140 = vadd.f32 %v1072, %v1110
        %v1141 = vadd.f32 %v1073, %v1110
        %v1142 = vadd.f32 %v1074, %v1110
        %v1143 = vadd.f32 %v1075, %v1110
        %v1144 = vadd.f32 %v1076, %v1110
        %v1145 = vadd.f32 %v1077, %v1110
        %v1146 = vadd.f32 %v1078, %v1110
        %v1147 = vadd.f32 %v1079, %v1110
        %v1148 = vadd.f32 %v1080, %v1110
        %v1149 = vadd.f32 %v1081, %v1110
        %v1150 = vadd.f32 %v1082, %v1110
        %v1151 = vadd.f32 %v1083, %v1110
        %v1152 = vadd.f32 %v1084, %v1110
        %v1153 = vadd.f32 %v1085, %v1110
        %v1154 = vadd.f32 %v1086, %v1110
        %v1155 = vadd.f32 %v1087, %v1110
        %v1156 = vadd.f32 %v1088, %v1110
        %v1157 = vadd.f32 %v1089, %v1110
        %v1158 = vadd.f32 %v1090, %v1110
        %v1159 = vadd.f32 %v1091, %v1110
        %v1160 = vadd.f32 %v1092, %v1110
        %v1161 = vadd.f32 %v1093, %v1110
        %v1162 = vadd.f32 %v1094, %v1110
        %v1163 = vadd.f32 %v1095, %v1110
        %v1164 = vadd.f32 %v1096, %v1110
        %v1165 = vadd.f32 %v1097, %v1110
        %v1166 = vadd.f32 %v1098, %v1110
        %v1167 = vadd.f32 %v1099, %v1110
        %v1168 = vadd.f32 %v1100, %v1110
        %v1169 = vadd.f32 %v1101, %v1110
        %v1170 = vadd.f32 %v1102, %v1110
        %v1171 = vadd.f32 %v1103, %v1110
        %v1172 = vadd.f32 %v1104, %v1110
        %v1173 = vadd.f32 %v1105, %v1110
        %v1174 = vadd.f32 %v1106, %v1110
        %v1175 = vadd.f32 %v1107, %v1110
        %1176 = vset.pattern.permute.xlu0 1
        %1177 = vperm.xlu0 %1176, %v658
        %v1178 = vpop.permute.xlu0 %1177
        %1180 = vset.pattern.permute.xlu0 1
        %1181 = vperm.xlu0 %1180, %v659
        %v1182 = vpop.permute.xlu0 %1181
        %1184 = vset.pattern.permute.xlu0 1
        %1185 = vperm.xlu0 %1184, %v660
        %v1186 = vpop.permute.xlu0 %1185
        %1188 = vset.pattern.permute.xlu0 1
        %1189 = vperm.xlu0 %1188, %v661
        %v1190 = vpop.permute.xlu0 %1189
        %1192 = vset.pattern.permute.xlu0 1
        %1193 = vperm.xlu0 %1192, %v662
        %v1194 = vpop.permute.xlu0 %1193
        %1196 = vset.pattern.permute.xlu0 1
        %1197 = vperm.xlu0 %1196, %v663
        %v1198 = vpop.permute.xlu0 %1197
        %1200 = vset.pattern.permute.xlu0 1
        %1201 = vperm.xlu0 %1200, %v664
        %v1202 = vpop.permute.xlu0 %1201
        %1204 = vset.pattern.permute.xlu0 1
        %1205 = vperm.xlu0 %1204, %v665
        %v1206 = vpop.permute.xlu0 %1205
        %1208 = vset.pattern.permute.xlu0 1
        %1209 = vperm.xlu0 %1208, %v666
        %v1210 = vpop.permute.xlu0 %1209
        %1212 = vset.pattern.permute.xlu0 1
        %1213 = vperm.xlu0 %1212, %v667
        %v1214 = vpop.permute.xlu0 %1213
        %1216 = vset.pattern.permute.xlu0 1
        %1217 = vperm.xlu0 %1216, %v668
        %v1218 = vpop.permute.xlu0 %1217
        %1220 = vset.pattern.permute.xlu0 1
        %1221 = vperm.xlu0 %1220, %v669
        %v1222 = vpop.permute.xlu0 %1221
        %1224 = vset.pattern.permute.xlu0 1
        %1225 = vperm.xlu0 %1224, %v670
        %v1226 = vpop.permute.xlu0 %1225
        %1228 = vset.pattern.permute.xlu0 1
        %1229 = vperm.xlu0 %1228, %v671
        %v1230 = vpop.permute.xlu0 %1229
        %1232 = vset.pattern.permute.xlu0 1
        %1233 = vperm.xlu0 %1232, %v672
        %v1234 = vpop.permute.xlu0 %1233
        %1236 = vset.pattern.permute.xlu0 1
        %1237 = vperm.xlu0 %1236, %v673
        %v1238 = vpop.permute.xlu0 %1237
        %1240 = vset.pattern.permute.xlu0 1
        %1241 = vperm.xlu0 %1240, %v674
        %v1242 = vpop.permute.xlu0 %1241
        %1244 = vset.pattern.permute.xlu0 1
        %1245 = vperm.xlu0 %1244, %v675
        %v1246 = vpop.permute.xlu0 %1245
        %1248 = vset.pattern.permute.xlu0 1
        %1249 = vperm.xlu0 %1248, %v676
        %v1250 = vpop.permute.xlu0 %1249
        %1252 = vset.pattern.permute.xlu0 1
        %1253 = vperm.xlu0 %1252, %v677
        %v1254 = vpop.permute.xlu0 %1253
        %1256 = vset.pattern.permute.xlu0 1
        %1257 = vperm.xlu0 %1256, %v678
        %v1258 = vpop.permute.xlu0 %1257
        %1260 = vset.pattern.permute.xlu0 1
        %1261 = vperm.xlu0 %1260, %v679
        %v1262 = vpop.permute.xlu0 %1261
        %1264 = vset.pattern.permute.xlu0 1
        %1265 = vperm.xlu0 %1264, %v680
        %v1266 = vpop.permute.xlu0 %1265
        %1268 = vset.pattern.permute.xlu0 1
        %1269 = vperm.xlu0 %1268, %v681
        %v1270 = vpop.permute.xlu0 %1269
        %1272 = vset.pattern.permute.xlu0 1
        %1273 = vperm.xlu0 %1272, %v682
        %v1274 = vpop.permute.xlu0 %1273
        %1276 = vset.pattern.permute.xlu0 1
        %1277 = vperm.xlu0 %1276, %v683
        %v1278 = vpop.permute.xlu0 %1277
        %1280 = vset.pattern.permute.xlu0 1
        %1281 = vperm.xlu0 %1280, %v684
        %v1282 = vpop.permute.xlu0 %1281
        %1284 = vset.pattern.permute.xlu0 1
        %1285 = vperm.xlu0 %1284, %v685
        %v1286 = vpop.permute.xlu0 %1285
        %1288 = vset.pattern.permute.xlu0 1
        %1289 = vperm.xlu0 %1288, %v686
        %v1290 = vpop.permute.xlu0 %1289
        %1292 = vset.pattern.permute.xlu0 1
        %1293 = vperm.xlu0 %1292, %v687
        %v1294 = vpop.permute.xlu0 %1293
        %1296 = vset.pattern.permute.xlu0 1
        %1297 = vperm.xlu0 %1296, %v688
        %v1298 = vpop.permute.xlu0 %1297
        %1300 = vset.pattern.permute.xlu0 1
        %1301 = vperm.xlu0 %1300, %v689
        %v1302 = vpop.permute.xlu0 %1301
        %1304 = vset.pattern.permute.xlu0 1
        %1305 = vperm.xlu0 %1304, %v690
        %v1306 = vpop.permute.xlu0 %1305
        %1308 = vset.pattern.permute.xlu0 1
        %1309 = vperm.xlu0 %1308, %v691
        %v1310 = vpop.permute.xlu0 %1309
        %1312 = vset.pattern.permute.xlu0 1
        %1313 = vperm.xlu0 %1312, %v692
        %v1314 = vpop.permute.xlu0 %1313
        %1316 = vset.pattern.permute.xlu0 1
        %1317 = vperm.xlu0 %1316, %v693
        %v1318 = vpop.permute.xlu0 %1317
        %1320 = vset.pattern.permute.xlu0 1
        %1321 = vperm.xlu0 %1320, %v694
        %v1322 = vpop.permute.xlu0 %1321
        %1324 = vset.pattern.permute.xlu0 1
        %1325 = vperm.xlu0 %1324, %v695
        %v1326 = vpop.permute.xlu0 %1325
        %1328 = vset.pattern.permute.xlu0 1
        %1329 = vperm.xlu0 %1328, %v696
        %v1330 = vpop.permute.xlu0 %1329
        %1332 = vset.pattern.permute.xlu0 1
        %1333 = vperm.xlu0 %1332, %v697
        %v1334 = vpop.permute.xlu0 %1333
        %1336 = vset.pattern.permute.xlu0 1
        %1337 = vperm.xlu0 %1336, %v698
        %v1338 = vpop.permute.xlu0 %1337
        %1340 = vset.pattern.permute.xlu0 1
        %1341 = vperm.xlu0 %1340, %v699
        %v1342 = vpop.permute.xlu0 %1341
        %1344 = vset.pattern.permute.xlu0 1
        %1345 = vperm.xlu0 %1344, %v700
        %v1346 = vpop.permute.xlu0 %1345
        %1348 = vset.pattern.permute.xlu0 1
        %1349 = vperm.xlu0 %1348, %v701
        %v1350 = vpop.permute.xlu0 %1349
        %1352 = vset.pattern.permute.xlu0 1
        %1353 = vperm.xlu0 %1352, %v702
        %v1354 = vpop.permute.xlu0 %1353
        %1356 = vset.pattern.permute.xlu0 1
        %1357 = vperm.xlu0 %1356, %v703
        %v1358 = vpop.permute.xlu0 %1357
        %1360 = vset.pattern.permute.xlu0 1
        %1361 = vperm.xlu0 %1360, %v704
        %v1362 = vpop.permute.xlu0 %1361
        %1364 = vset.pattern.permute.xlu0 1
        %1365 = vperm.xlu0 %1364, %v705
        %v1366 = vpop.permute.xlu0 %1365
        %1368 = vset.pattern.permute.xlu0 1
        %1369 = vperm.xlu0 %1368, %v706
        %v1370 = vpop.permute.xlu0 %1369
        %1372 = vset.pattern.permute.xlu0 1
        %1373 = vperm.xlu0 %1372, %v707
        %v1374 = vpop.permute.xlu0 %1373
        %1376 = vset.pattern.permute.xlu0 1
        %1377 = vperm.xlu0 %1376, %v708
        %v1378 = vpop.permute.xlu0 %1377
        %1380 = vset.pattern.permute.xlu0 1
        %1381 = vperm.xlu0 %1380, %v709
        %v1382 = vpop.permute.xlu0 %1381
        %1384 = vset.pattern.permute.xlu0 1
        %1385 = vperm.xlu0 %1384, %v710
        %v1386 = vpop.permute.xlu0 %1385
        %1388 = vset.pattern.permute.xlu0 1
        %1389 = vperm.xlu0 %1388, %v711
        %v1390 = vpop.permute.xlu0 %1389
        %1392 = vset.pattern.permute.xlu0 1
        %1393 = vperm.xlu0 %1392, %v712
        %v1394 = vpop.permute.xlu0 %1393
        %1396 = vset.pattern.permute.xlu0 1
        %1397 = vperm.xlu0 %1396, %v713
        %v1398 = vpop.permute.xlu0 %1397
        %1400 = vset.pattern.permute.xlu0 1
        %1401 = vperm.xlu0 %1400, %v714
        %v1402 = vpop.permute.xlu0 %1401
        %1404 = vset.pattern.permute.xlu0 1
        %1405 = vperm.xlu0 %1404, %v715
        %v1406 = vpop.permute.xlu0 %1405
        %1408 = vset.pattern.permute.xlu0 1
        %1409 = vperm.xlu0 %1408, %v716
        %v1410 = vpop.permute.xlu0 %1409
        %1412 = vset.pattern.permute.xlu0 1
        %1413 = vperm.xlu0 %1412, %v717
        %v1414 = vpop.permute.xlu0 %1413
        %1416 = vset.pattern.permute.xlu0 1
        %1417 = vperm.xlu0 %1416, %v718
        %v1418 = vpop.permute.xlu0 %1417
        %1420 = vset.pattern.permute.xlu0 1
        %1421 = vperm.xlu0 %1420, %v719
        %v1422 = vpop.permute.xlu0 %1421
        %1424 = vset.pattern.permute.xlu0 1
        %1425 = vperm.xlu0 %1424, %v720
        %v1426 = vpop.permute.xlu0 %1425
        %1428 = vset.pattern.permute.xlu0 1
        %1429 = vperm.xlu0 %1428, %v721
        %v1430 = vpop.permute.xlu0 %1429
        %v1432 = vperm.slane %v722, 1
        %v1433 = vmul.f32 %v1178, %v1432
        %v1434 = vmul.f32 %v1182, %v1432
        %v1435 = vmul.f32 %v1186, %v1432
        %v1436 = vmul.f32 %v1190, %v1432
        %v1437 = vmul.f32 %v1194, %v1432
        %v1438 = vmul.f32 %v1198, %v1432
        %v1439 = vmul.f32 %v1202, %v1432
        %v1440 = vmul.f32 %v1206, %v1432
        %v1441 = vmul.f32 %v1210, %v1432
        %v1442 = vmul.f32 %v1214, %v1432
        %v1443 = vmul.f32 %v1218, %v1432
        %v1444 = vmul.f32 %v1222, %v1432
        %v1445 = vmul.f32 %v1226, %v1432
        %v1446 = vmul.f32 %v1230, %v1432
        %v1447 = vmul.f32 %v1234, %v1432
        %v1448 = vmul.f32 %v1238, %v1432
        %v1449 = vmul.f32 %v1242, %v1432
        %v1450 = vmul.f32 %v1246, %v1432
        %v1451 = vmul.f32 %v1250, %v1432
        %v1452 = vmul.f32 %v1254, %v1432
        %v1453 = vmul.f32 %v1258, %v1432
        %v1454 = vmul.f32 %v1262, %v1432
        %v1455 = vmul.f32 %v1266, %v1432
        %v1456 = vmul.f32 %v1270, %v1432
        %v1457 = vmul.f32 %v1274, %v1432
        %v1458 = vmul.f32 %v1278, %v1432
        %v1459 = vmul.f32 %v1282, %v1432
        %v1460 = vmul.f32 %v1286, %v1432
        %v1461 = vmul.f32 %v1290, %v1432
        %v1462 = vmul.f32 %v1294, %v1432
        %v1463 = vmul.f32 %v1298, %v1432
        %v1464 = vmul.f32 %v1302, %v1432
        %v1465 = vmul.f32 %v1306, %v1432
        %v1466 = vmul.f32 %v1310, %v1432
        %v1467 = vmul.f32 %v1314, %v1432
        %v1468 = vmul.f32 %v1318, %v1432
        %v1469 = vmul.f32 %v1322, %v1432
        %v1470 = vmul.f32 %v1326, %v1432
        %v1471 = vmul.f32 %v1330, %v1432
        %v1472 = vmul.f32 %v1334, %v1432
        %v1473 = vmul.f32 %v1338, %v1432
        %v1474 = vmul.f32 %v1342, %v1432
        %v1475 = vmul.f32 %v1346, %v1432
        %v1476 = vmul.f32 %v1350, %v1432
        %v1477 = vmul.f32 %v1354, %v1432
        %v1478 = vmul.f32 %v1358, %v1432
        %v1479 = vmul.f32 %v1362, %v1432
        %v1480 = vmul.f32 %v1366, %v1432
        %v1481 = vmul.f32 %v1370, %v1432
        %v1482 = vmul.f32 %v1374, %v1432
        %v1483 = vmul.f32 %v1378, %v1432
        %v1484 = vmul.f32 %v1382, %v1432
        %v1485 = vmul.f32 %v1386, %v1432
        %v1486 = vmul.f32 %v1390, %v1432
        %v1487 = vmul.f32 %v1394, %v1432
        %v1488 = vmul.f32 %v1398, %v1432
        %v1489 = vmul.f32 %v1402, %v1432
        %v1490 = vmul.f32 %v1406, %v1432
        %v1491 = vmul.f32 %v1410, %v1432
        %v1492 = vmul.f32 %v1414, %v1432
        %v1493 = vmul.f32 %v1418, %v1432
        %v1494 = vmul.f32 %v1422, %v1432
        %v1495 = vmul.f32 %v1426, %v1432
        %v1496 = vmul.f32 %v1430, %v1432
        %v1497 = vadd.f32 %v1112, %v1433
        %v1498 = vadd.f32 %v1113, %v1434
        %v1499 = vadd.f32 %v1114, %v1435
        %v1500 = vadd.f32 %v1115, %v1436
        %v1501 = vadd.f32 %v1116, %v1437
        %v1502 = vadd.f32 %v1117, %v1438
        %v1503 = vadd.f32 %v1118, %v1439
        %v1504 = vadd.f32 %v1119, %v1440
        %v1505 = vadd.f32 %v1120, %v1441
        %v1506 = vadd.f32 %v1121, %v1442
        %v1507 = vadd.f32 %v1122, %v1443
        %v1508 = vadd.f32 %v1123, %v1444
        %v1509 = vadd.f32 %v1124, %v1445
        %v1510 = vadd.f32 %v1125, %v1446
        %v1511 = vadd.f32 %v1126, %v1447
        %v1512 = vadd.f32 %v1127, %v1448
        %v1513 = vadd.f32 %v1128, %v1449
        %v1514 = vadd.f32 %v1129, %v1450
        %v1515 = vadd.f32 %v1130, %v1451
        %v1516 = vadd.f32 %v1131, %v1452
        %v1517 = vadd.f32 %v1132, %v1453
        %v1518 = vadd.f32 %v1133, %v1454
        %v1519 = vadd.f32 %v1134, %v1455
        %v1520 = vadd.f32 %v1135, %v1456
        %v1521 = vadd.f32 %v1136, %v1457
        %v1522 = vadd.f32 %v1137, %v1458
        %v1523 = vadd.f32 %v1138, %v1459
        %v1524 = vadd.f32 %v1139, %v1460
        %v1525 = vadd.f32 %v1140, %v1461
        %v1526 = vadd.f32 %v1141, %v1462
        %v1527 = vadd.f32 %v1142, %v1463
        %v1528 = vadd.f32 %v1143, %v1464
        %v1529 = vadd.f32 %v1144, %v1465
        %v1530 = vadd.f32 %v1145, %v1466
        %v1531 = vadd.f32 %v1146, %v1467
        %v1532 = vadd.f32 %v1147, %v1468
        %v1533 = vadd.f32 %v1148, %v1469
        %v1534 = vadd.f32 %v1149, %v1470
        %v1535 = vadd.f32 %v1150, %v1471
        %v1536 = vadd.f32 %v1151, %v1472
        %v1537 = vadd.f32 %v1152, %v1473
        %v1538 = vadd.f32 %v1153, %v1474
        %v1539 = vadd.f32 %v1154, %v1475
        %v1540 = vadd.f32 %v1155, %v1476
        %v1541 = vadd.f32 %v1156, %v1477
        %v1542 = vadd.f32 %v1157, %v1478
        %v1543 = vadd.f32 %v1158, %v1479
        %v1544 = vadd.f32 %v1159, %v1480
        %v1545 = vadd.f32 %v1160, %v1481
        %v1546 = vadd.f32 %v1161, %v1482
        %v1547 = vadd.f32 %v1162, %v1483
        %v1548 = vadd.f32 %v1163, %v1484
        %v1549 = vadd.f32 %v1164, %v1485
        %v1550 = vadd.f32 %v1165, %v1486
        %v1551 = vadd.f32 %v1166, %v1487
        %v1552 = vadd.f32 %v1167, %v1488
        %v1553 = vadd.f32 %v1168, %v1489
        %v1554 = vadd.f32 %v1169, %v1490
        %v1555 = vadd.f32 %v1170, %v1491
        %v1556 = vadd.f32 %v1171, %v1492
        %v1557 = vadd.f32 %v1172, %v1493
        %v1558 = vadd.f32 %v1173, %v1494
        %v1559 = vadd.f32 %v1174, %v1495
        %v1560 = vadd.f32 %v1175, %v1496
        %1561 = vset.pattern.permute.xlu0 2
        %1562 = vperm.xlu0 %1561, %v658
        %v1563 = vpop.permute.xlu0 %1562
        %1565 = vset.pattern.permute.xlu0 2
        %1566 = vperm.xlu0 %1565, %v659
        %v1567 = vpop.permute.xlu0 %1566
        %1569 = vset.pattern.permute.xlu0 2
        %1570 = vperm.xlu0 %1569, %v660
        %v1571 = vpop.permute.xlu0 %1570
        %1573 = vset.pattern.permute.xlu0 2
        %1574 = vperm.xlu0 %1573, %v661
        %v1575 = vpop.permute.xlu0 %1574
        %1577 = vset.pattern.permute.xlu0 2
        %1578 = vperm.xlu0 %1577, %v662
        %v1579 = vpop.permute.xlu0 %1578
        %1581 = vset.pattern.permute.xlu0 2
        %1582 = vperm.xlu0 %1581, %v663
        %v1583 = vpop.permute.xlu0 %1582
        %1585 = vset.pattern.permute.xlu0 2
        %1586 = vperm.xlu0 %1585, %v664
        %v1587 = vpop.permute.xlu0 %1586
        %1589 = vset.pattern.permute.xlu0 2
        %1590 = vperm.xlu0 %1589, %v665
        %v1591 = vpop.permute.xlu0 %1590
        %1593 = vset.pattern.permute.xlu0 2
        %1594 = vperm.xlu0 %1593, %v666
        %v1595 = vpop.permute.xlu0 %1594
        %1597 = vset.pattern.permute.xlu0 2
        %1598 = vperm.xlu0 %1597, %v667
        %v1599 = vpop.permute.xlu0 %1598
        %1601 = vset.pattern.permute.xlu0 2
        %1602 = vperm.xlu0 %1601, %v668
        %v1603 = vpop.permute.xlu0 %1602
        %1605 = vset.pattern.permute.xlu0 2
        %1606 = vperm.xlu0 %1605, %v669
        %v1607 = vpop.permute.xlu0 %1606
        %1609 = vset.pattern.permute.xlu0 2
        %1610 = vperm.xlu0 %1609, %v670
        %v1611 = vpop.permute.xlu0 %1610
        %1613 = vset.pattern.permute.xlu0 2
        %1614 = vperm.xlu0 %1613, %v671
        %v1615 = vpop.permute.xlu0 %1614
        %1617 = vset.pattern.permute.xlu0 2
        %1618 = vperm.xlu0 %1617, %v672
        %v1619 = vpop.permute.xlu0 %1618
        %1621 = vset.pattern.permute.xlu0 2
        %1622 = vperm.xlu0 %1621, %v673
        %v1623 = vpop.permute.xlu0 %1622
        %1625 = vset.pattern.permute.xlu0 2
        %1626 = vperm.xlu0 %1625, %v674
        %v1627 = vpop.permute.xlu0 %1626
        %1629 = vset.pattern.permute.xlu0 2
        %1630 = vperm.xlu0 %1629, %v675
        %v1631 = vpop.permute.xlu0 %1630
        %1633 = vset.pattern.permute.xlu0 2
        %1634 = vperm.xlu0 %1633, %v676
        %v1635 = vpop.permute.xlu0 %1634
        %1637 = vset.pattern.permute.xlu0 2
        %1638 = vperm.xlu0 %1637, %v677
        %v1639 = vpop.permute.xlu0 %1638
        %1641 = vset.pattern.permute.xlu0 2
        %1642 = vperm.xlu0 %1641, %v678
        %v1643 = vpop.permute.xlu0 %1642
        %1645 = vset.pattern.permute.xlu0 2
        %1646 = vperm.xlu0 %1645, %v679
        %v1647 = vpop.permute.xlu0 %1646
        %1649 = vset.pattern.permute.xlu0 2
        %1650 = vperm.xlu0 %1649, %v680
        %v1651 = vpop.permute.xlu0 %1650
        %1653 = vset.pattern.permute.xlu0 2
        %1654 = vperm.xlu0 %1653, %v681
        %v1655 = vpop.permute.xlu0 %1654
        %1657 = vset.pattern.permute.xlu0 2
        %1658 = vperm.xlu0 %1657, %v682
        %v1659 = vpop.permute.xlu0 %1658
        %1661 = vset.pattern.permute.xlu0 2
        %1662 = vperm.xlu0 %1661, %v683
        %v1663 = vpop.permute.xlu0 %1662
        %1665 = vset.pattern.permute.xlu0 2
        %1666 = vperm.xlu0 %1665, %v684
        %v1667 = vpop.permute.xlu0 %1666
        %1669 = vset.pattern.permute.xlu0 2
        %1670 = vperm.xlu0 %1669, %v685
        %v1671 = vpop.permute.xlu0 %1670
        %1673 = vset.pattern.permute.xlu0 2
        %1674 = vperm.xlu0 %1673, %v686
        %v1675 = vpop.permute.xlu0 %1674
        %1677 = vset.pattern.permute.xlu0 2
        %1678 = vperm.xlu0 %1677, %v687
        %v1679 = vpop.permute.xlu0 %1678
        %1681 = vset.pattern.permute.xlu0 2
        %1682 = vperm.xlu0 %1681, %v688
        %v1683 = vpop.permute.xlu0 %1682
        %1685 = vset.pattern.permute.xlu0 2
        %1686 = vperm.xlu0 %1685, %v689
        %v1687 = vpop.permute.xlu0 %1686
        %1689 = vset.pattern.permute.xlu0 2
        %1690 = vperm.xlu0 %1689, %v690
        %v1691 = vpop.permute.xlu0 %1690
        %1693 = vset.pattern.permute.xlu0 2
        %1694 = vperm.xlu0 %1693, %v691
        %v1695 = vpop.permute.xlu0 %1694
        %1697 = vset.pattern.permute.xlu0 2
        %1698 = vperm.xlu0 %1697, %v692
        %v1699 = vpop.permute.xlu0 %1698
        %1701 = vset.pattern.permute.xlu0 2
        %1702 = vperm.xlu0 %1701, %v693
        %v1703 = vpop.permute.xlu0 %1702
        %1705 = vset.pattern.permute.xlu0 2
        %1706 = vperm.xlu0 %1705, %v694
        %v1707 = vpop.permute.xlu0 %1706
        %1709 = vset.pattern.permute.xlu0 2
        %1710 = vperm.xlu0 %1709, %v695
        %v1711 = vpop.permute.xlu0 %1710
        %1713 = vset.pattern.permute.xlu0 2
        %1714 = vperm.xlu0 %1713, %v696
        %v1715 = vpop.permute.xlu0 %1714
        %1717 = vset.pattern.permute.xlu0 2
        %1718 = vperm.xlu0 %1717, %v697
        %v1719 = vpop.permute.xlu0 %1718
        %1721 = vset.pattern.permute.xlu0 2
        %1722 = vperm.xlu0 %1721, %v698
        %v1723 = vpop.permute.xlu0 %1722
        %1725 = vset.pattern.permute.xlu0 2
        %1726 = vperm.xlu0 %1725, %v699
        %v1727 = vpop.permute.xlu0 %1726
        %1729 = vset.pattern.permute.xlu0 2
        %1730 = vperm.xlu0 %1729, %v700
        %v1731 = vpop.permute.xlu0 %1730
        %1733 = vset.pattern.permute.xlu0 2
        %1734 = vperm.xlu0 %1733, %v701
        %v1735 = vpop.permute.xlu0 %1734
        %1737 = vset.pattern.permute.xlu0 2
        %1738 = vperm.xlu0 %1737, %v702
        %v1739 = vpop.permute.xlu0 %1738
        %1741 = vset.pattern.permute.xlu0 2
        %1742 = vperm.xlu0 %1741, %v703
        %v1743 = vpop.permute.xlu0 %1742
        %1745 = vset.pattern.permute.xlu0 2
        %1746 = vperm.xlu0 %1745, %v704
        %v1747 = vpop.permute.xlu0 %1746
        %1749 = vset.pattern.permute.xlu0 2
        %1750 = vperm.xlu0 %1749, %v705
        %v1751 = vpop.permute.xlu0 %1750
        %1753 = vset.pattern.permute.xlu0 2
        %1754 = vperm.xlu0 %1753, %v706
        %v1755 = vpop.permute.xlu0 %1754
        %1757 = vset.pattern.permute.xlu0 2
        %1758 = vperm.xlu0 %1757, %v707
        %v1759 = vpop.permute.xlu0 %1758
        %1761 = vset.pattern.permute.xlu0 2
        %1762 = vperm.xlu0 %1761, %v708
        %v1763 = vpop.permute.xlu0 %1762
        %1765 = vset.pattern.permute.xlu0 2
        %1766 = vperm.xlu0 %1765, %v709
        %v1767 = vpop.permute.xlu0 %1766
        %1769 = vset.pattern.permute.xlu0 2
        %1770 = vperm.xlu0 %1769, %v710
        %v1771 = vpop.permute.xlu0 %1770
        %1773 = vset.pattern.permute.xlu0 2
        %1774 = vperm.xlu0 %1773, %v711
        %v1775 = vpop.permute.xlu0 %1774
        %1777 = vset.pattern.permute.xlu0 2
        %1778 = vperm.xlu0 %1777, %v712
        %v1779 = vpop.permute.xlu0 %1778
        %1781 = vset.pattern.permute.xlu0 2
        %1782 = vperm.xlu0 %1781, %v713
        %v1783 = vpop.permute.xlu0 %1782
        %1785 = vset.pattern.permute.xlu0 2
        %1786 = vperm.xlu0 %1785, %v714
        %v1787 = vpop.permute.xlu0 %1786
        %1789 = vset.pattern.permute.xlu0 2
        %1790 = vperm.xlu0 %1789, %v715
        %v1791 = vpop.permute.xlu0 %1790
        %1793 = vset.pattern.permute.xlu0 2
        %1794 = vperm.xlu0 %1793, %v716
        %v1795 = vpop.permute.xlu0 %1794
        %1797 = vset.pattern.permute.xlu0 2
        %1798 = vperm.xlu0 %1797, %v717
        %v1799 = vpop.permute.xlu0 %1798
        %1801 = vset.pattern.permute.xlu0 2
        %1802 = vperm.xlu0 %1801, %v718
        %v1803 = vpop.permute.xlu0 %1802
        %1805 = vset.pattern.permute.xlu0 2
        %1806 = vperm.xlu0 %1805, %v719
        %v1807 = vpop.permute.xlu0 %1806
        %1809 = vset.pattern.permute.xlu0 2
        %1810 = vperm.xlu0 %1809, %v720
        %v1811 = vpop.permute.xlu0 %1810
        %1813 = vset.pattern.permute.xlu0 2
        %1814 = vperm.xlu0 %1813, %v721
        %v1815 = vpop.permute.xlu0 %1814
        %v1817 = vperm.slane %v722, 2
        %v1818 = vmul.f32 %v1563, %v1817
        %v1819 = vmul.f32 %v1567, %v1817
        %v1820 = vmul.f32 %v1571, %v1817
        %v1821 = vmul.f32 %v1575, %v1817
        %v1822 = vmul.f32 %v1579, %v1817
        %v1823 = vmul.f32 %v1583, %v1817
        %v1824 = vmul.f32 %v1587, %v1817
        %v1825 = vmul.f32 %v1591, %v1817
        %v1826 = vmul.f32 %v1595, %v1817
        %v1827 = vmul.f32 %v1599, %v1817
        %v1828 = vmul.f32 %v1603, %v1817
        %v1829 = vmul.f32 %v1607, %v1817
        %v1830 = vmul.f32 %v1611, %v1817
        %v1831 = vmul.f32 %v1615, %v1817
        %v1832 = vmul.f32 %v1619, %v1817
        %v1833 = vmul.f32 %v1623, %v1817
        %v1834 = vmul.f32 %v1627, %v1817
        %v1835 = vmul.f32 %v1631, %v1817
        %v1836 = vmul.f32 %v1635, %v1817
        %v1837 = vmul.f32 %v1639, %v1817
        %v1838 = vmul.f32 %v1643, %v1817
        %v1839 = vmul.f32 %v1647, %v1817
        %v1840 = vmul.f32 %v1651, %v1817
        %v1841 = vmul.f32 %v1655, %v1817
        %v1842 = vmul.f32 %v1659, %v1817
        %v1843 = vmul.f32 %v1663, %v1817
        %v1844 = vmul.f32 %v1667, %v1817
        %v1845 = vmul.f32 %v1671, %v1817
        %v1846 = vmul.f32 %v1675, %v1817
        %v1847 = vmul.f32 %v1679, %v1817
        %v1848 = vmul.f32 %v1683, %v1817
        %v1849 = vmul.f32 %v1687, %v1817
        %v1850 = vmul.f32 %v1691, %v1817
        %v1851 = vmul.f32 %v1695, %v1817
        %v1852 = vmul.f32 %v1699, %v1817
        %v1853 = vmul.f32 %v1703, %v1817
        %v1854 = vmul.f32 %v1707, %v1817
        %v1855 = vmul.f32 %v1711, %v1817
        %v1856 = vmul.f32 %v1715, %v1817
        %v1857 = vmul.f32 %v1719, %v1817
        %v1858 = vmul.f32 %v1723, %v1817
        %v1859 = vmul.f32 %v1727, %v1817
        %v1860 = vmul.f32 %v1731, %v1817
        %v1861 = vmul.f32 %v1735, %v1817
        %v1862 = vmul.f32 %v1739, %v1817
        %v1863 = vmul.f32 %v1743, %v1817
        %v1864 = vmul.f32 %v1747, %v1817
        %v1865 = vmul.f32 %v1751, %v1817
        %v1866 = vmul.f32 %v1755, %v1817
        %v1867 = vmul.f32 %v1759, %v1817
        %v1868 = vmul.f32 %v1763, %v1817
        %v1869 = vmul.f32 %v1767, %v1817
        %v1870 = vmul.f32 %v1771, %v1817
        %v1871 = vmul.f32 %v1775, %v1817
        %v1872 = vmul.f32 %v1779, %v1817
        %v1873 = vmul.f32 %v1783, %v1817
        %v1874 = vmul.f32 %v1787, %v1817
        %v1875 = vmul.f32 %v1791, %v1817
        %v1876 = vmul.f32 %v1795, %v1817
        %v1877 = vmul.f32 %v1799, %v1817
        %v1878 = vmul.f32 %v1803, %v1817
        %v1879 = vmul.f32 %v1807, %v1817
        %v1880 = vmul.f32 %v1811, %v1817
        %v1881 = vmul.f32 %v1815, %v1817
        %v1882 = vadd.f32 %v1497, %v1818
        %v1883 = vadd.f32 %v1498, %v1819
        %v1884 = vadd.f32 %v1499, %v1820
        %v1885 = vadd.f32 %v1500, %v1821
        %v1886 = vadd.f32 %v1501, %v1822
        %v1887 = vadd.f32 %v1502, %v1823
        %v1888 = vadd.f32 %v1503, %v1824
        %v1889 = vadd.f32 %v1504, %v1825
        %v1890 = vadd.f32 %v1505, %v1826
        %v1891 = vadd.f32 %v1506, %v1827
        %v1892 = vadd.f32 %v1507, %v1828
        %v1893 = vadd.f32 %v1508, %v1829
        %v1894 = vadd.f32 %v1509, %v1830
        %v1895 = vadd.f32 %v1510, %v1831
        %v1896 = vadd.f32 %v1511, %v1832
        %v1897 = vadd.f32 %v1512, %v1833
        %v1898 = vadd.f32 %v1513, %v1834
        %v1899 = vadd.f32 %v1514, %v1835
        %v1900 = vadd.f32 %v1515, %v1836
        %v1901 = vadd.f32 %v1516, %v1837
        %v1902 = vadd.f32 %v1517, %v1838
        %v1903 = vadd.f32 %v1518, %v1839
        %v1904 = vadd.f32 %v1519, %v1840
        %v1905 = vadd.f32 %v1520, %v1841
        %v1906 = vadd.f32 %v1521, %v1842
        %v1907 = vadd.f32 %v1522, %v1843
        %v1908 = vadd.f32 %v1523, %v1844
        %v1909 = vadd.f32 %v1524, %v1845
        %v1910 = vadd.f32 %v1525, %v1846
        %v1911 = vadd.f32 %v1526, %v1847
        %v1912 = vadd.f32 %v1527, %v1848
        %v1913 = vadd.f32 %v1528, %v1849
        %v1914 = vadd.f32 %v1529, %v1850
        %v1915 = vadd.f32 %v1530, %v1851
        %v1916 = vadd.f32 %v1531, %v1852
        %v1917 = vadd.f32 %v1532, %v1853
        %v1918 = vadd.f32 %v1533, %v1854
        %v1919 = vadd.f32 %v1534, %v1855
        %v1920 = vadd.f32 %v1535, %v1856
        %v1921 = vadd.f32 %v1536, %v1857
        %v1922 = vadd.f32 %v1537, %v1858
        %v1923 = vadd.f32 %v1538, %v1859
        %v1924 = vadd.f32 %v1539, %v1860
        %v1925 = vadd.f32 %v1540, %v1861
        %v1926 = vadd.f32 %v1541, %v1862
        %v1927 = vadd.f32 %v1542, %v1863
        %v1928 = vadd.f32 %v1543, %v1864
        %v1929 = vadd.f32 %v1544, %v1865
        %v1930 = vadd.f32 %v1545, %v1866
        %v1931 = vadd.f32 %v1546, %v1867
        %v1932 = vadd.f32 %v1547, %v1868
        %v1933 = vadd.f32 %v1548, %v1869
        %v1934 = vadd.f32 %v1549, %v1870
        %v1935 = vadd.f32 %v1550, %v1871
        %v1936 = vadd.f32 %v1551, %v1872
        %v1937 = vadd.f32 %v1552, %v1873
        %v1938 = vadd.f32 %v1553, %v1874
        %v1939 = vadd.f32 %v1554, %v1875
        %v1940 = vadd.f32 %v1555, %v1876
        %v1941 = vadd.f32 %v1556, %v1877
        %v1942 = vadd.f32 %v1557, %v1878
        %v1943 = vadd.f32 %v1558, %v1879
        %v1944 = vadd.f32 %v1559, %v1880
        %v1945 = vadd.f32 %v1560, %v1881
        %1946 = vset.pattern.permute.xlu0 3
        %1947 = vperm.xlu0 %1946, %v658
        %v1948 = vpop.permute.xlu0 %1947
        %1950 = vset.pattern.permute.xlu0 3
        %1951 = vperm.xlu0 %1950, %v659
        %v1952 = vpop.permute.xlu0 %1951
        %1954 = vset.pattern.permute.xlu0 3
        %1955 = vperm.xlu0 %1954, %v660
        %v1956 = vpop.permute.xlu0 %1955
        %1958 = vset.pattern.permute.xlu0 3
        %1959 = vperm.xlu0 %1958, %v661
        %v1960 = vpop.permute.xlu0 %1959
        %1962 = vset.pattern.permute.xlu0 3
        %1963 = vperm.xlu0 %1962, %v662
        %v1964 = vpop.permute.xlu0 %1963
        %1966 = vset.pattern.permute.xlu0 3
        %1967 = vperm.xlu0 %1966, %v663
        %v1968 = vpop.permute.xlu0 %1967
        %1970 = vset.pattern.permute.xlu0 3
        %1971 = vperm.xlu0 %1970, %v664
        %v1972 = vpop.permute.xlu0 %1971
        %1974 = vset.pattern.permute.xlu0 3
        %1975 = vperm.xlu0 %1974, %v665
        %v1976 = vpop.permute.xlu0 %1975
        %1978 = vset.pattern.permute.xlu0 3
        %1979 = vperm.xlu0 %1978, %v666
        %v1980 = vpop.permute.xlu0 %1979
        %1982 = vset.pattern.permute.xlu0 3
        %1983 = vperm.xlu0 %1982, %v667
        %v1984 = vpop.permute.xlu0 %1983
        %1986 = vset.pattern.permute.xlu0 3
        %1987 = vperm.xlu0 %1986, %v668
        %v1988 = vpop.permute.xlu0 %1987
        %1990 = vset.pattern.permute.xlu0 3
        %1991 = vperm.xlu0 %1990, %v669
        %v1992 = vpop.permute.xlu0 %1991
        %1994 = vset.pattern.permute.xlu0 3
        %1995 = vperm.xlu0 %1994, %v670
        %v1996 = vpop.permute.xlu0 %1995
        %1998 = vset.pattern.permute.xlu0 3
        %1999 = vperm.xlu0 %1998, %v671
        %v2000 = vpop.permute.xlu0 %1999
        %2002 = vset.pattern.permute.xlu0 3
        %2003 = vperm.xlu0 %2002, %v672
        %v2004 = vpop.permute.xlu0 %2003
        %2006 = vset.pattern.permute.xlu0 3
        %2007 = vperm.xlu0 %2006, %v673
        %v2008 = vpop.permute.xlu0 %2007
        %2010 = vset.pattern.permute.xlu0 3
        %2011 = vperm.xlu0 %2010, %v674
        %v2012 = vpop.permute.xlu0 %2011
        %2014 = vset.pattern.permute.xlu0 3
        %2015 = vperm.xlu0 %2014, %v675
        %v2016 = vpop.permute.xlu0 %2015
        %2018 = vset.pattern.permute.xlu0 3
        %2019 = vperm.xlu0 %2018, %v676
        %v2020 = vpop.permute.xlu0 %2019
        %2022 = vset.pattern.permute.xlu0 3
        %2023 = vperm.xlu0 %2022, %v677
        %v2024 = vpop.permute.xlu0 %2023
        %2026 = vset.pattern.permute.xlu0 3
        %2027 = vperm.xlu0 %2026, %v678
        %v2028 = vpop.permute.xlu0 %2027
        %2030 = vset.pattern.permute.xlu0 3
        %2031 = vperm.xlu0 %2030, %v679
        %v2032 = vpop.permute.xlu0 %2031
        %2034 = vset.pattern.permute.xlu0 3
        %2035 = vperm.xlu0 %2034, %v680
        %v2036 = vpop.permute.xlu0 %2035
        %2038 = vset.pattern.permute.xlu0 3
        %2039 = vperm.xlu0 %2038, %v681
        %v2040 = vpop.permute.xlu0 %2039
        %2042 = vset.pattern.permute.xlu0 3
        %2043 = vperm.xlu0 %2042, %v682
        %v2044 = vpop.permute.xlu0 %2043
        %2046 = vset.pattern.permute.xlu0 3
        %2047 = vperm.xlu0 %2046, %v683
        %v2048 = vpop.permute.xlu0 %2047
        %2050 = vset.pattern.permute.xlu0 3
        %2051 = vperm.xlu0 %2050, %v684
        %v2052 = vpop.permute.xlu0 %2051
        %2054 = vset.pattern.permute.xlu0 3
        %2055 = vperm.xlu0 %2054, %v685
        %v2056 = vpop.permute.xlu0 %2055
        %2058 = vset.pattern.permute.xlu0 3
        %2059 = vperm.xlu0 %2058, %v686
        %v2060 = vpop.permute.xlu0 %2059
        %2062 = vset.pattern.permute.xlu0 3
        %2063 = vperm.xlu0 %2062, %v687
        %v2064 = vpop.permute.xlu0 %2063
        %2066 = vset.pattern.permute.xlu0 3
        %2067 = vperm.xlu0 %2066, %v688
        %v2068 = vpop.permute.xlu0 %2067
        %2070 = vset.pattern.permute.xlu0 3
        %2071 = vperm.xlu0 %2070, %v689
        %v2072 = vpop.permute.xlu0 %2071
        %2074 = vset.pattern.permute.xlu0 3
        %2075 = vperm.xlu0 %2074, %v690
        %v2076 = vpop.permute.xlu0 %2075
        %2078 = vset.pattern.permute.xlu0 3
        %2079 = vperm.xlu0 %2078, %v691
        %v2080 = vpop.permute.xlu0 %2079
        %2082 = vset.pattern.permute.xlu0 3
        %2083 = vperm.xlu0 %2082, %v692
        %v2084 = vpop.permute.xlu0 %2083
        %2086 = vset.pattern.permute.xlu0 3
        %2087 = vperm.xlu0 %2086, %v693
        %v2088 = vpop.permute.xlu0 %2087
        %2090 = vset.pattern.permute.xlu0 3
        %2091 = vperm.xlu0 %2090, %v694
        %v2092 = vpop.permute.xlu0 %2091
        %2094 = vset.pattern.permute.xlu0 3
        %2095 = vperm.xlu0 %2094, %v695
        %v2096 = vpop.permute.xlu0 %2095
        %2098 = vset.pattern.permute.xlu0 3
        %2099 = vperm.xlu0 %2098, %v696
        %v2100 = vpop.permute.xlu0 %2099
        %2102 = vset.pattern.permute.xlu0 3
        %2103 = vperm.xlu0 %2102, %v697
        %v2104 = vpop.permute.xlu0 %2103
        %2106 = vset.pattern.permute.xlu0 3
        %2107 = vperm.xlu0 %2106, %v698
        %v2108 = vpop.permute.xlu0 %2107
        %2110 = vset.pattern.permute.xlu0 3
        %2111 = vperm.xlu0 %2110, %v699
        %v2112 = vpop.permute.xlu0 %2111
        %2114 = vset.pattern.permute.xlu0 3
        %2115 = vperm.xlu0 %2114, %v700
        %v2116 = vpop.permute.xlu0 %2115
        %2118 = vset.pattern.permute.xlu0 3
        %2119 = vperm.xlu0 %2118, %v701
        %v2120 = vpop.permute.xlu0 %2119
        %2122 = vset.pattern.permute.xlu0 3
        %2123 = vperm.xlu0 %2122, %v702
        %v2124 = vpop.permute.xlu0 %2123
        %2126 = vset.pattern.permute.xlu0 3
        %2127 = vperm.xlu0 %2126, %v703
        %v2128 = vpop.permute.xlu0 %2127
        %2130 = vset.pattern.permute.xlu0 3
        %2131 = vperm.xlu0 %2130, %v704
        %v2132 = vpop.permute.xlu0 %2131
        %2134 = vset.pattern.permute.xlu0 3
        %2135 = vperm.xlu0 %2134, %v705
        %v2136 = vpop.permute.xlu0 %2135
        %2138 = vset.pattern.permute.xlu0 3
        %2139 = vperm.xlu0 %2138, %v706
        %v2140 = vpop.permute.xlu0 %2139
        %2142 = vset.pattern.permute.xlu0 3
        %2143 = vperm.xlu0 %2142, %v707
        %v2144 = vpop.permute.xlu0 %2143
        %2146 = vset.pattern.permute.xlu0 3
        %2147 = vperm.xlu0 %2146, %v708
        %v2148 = vpop.permute.xlu0 %2147
        %2150 = vset.pattern.permute.xlu0 3
        %2151 = vperm.xlu0 %2150, %v709
        %v2152 = vpop.permute.xlu0 %2151
        %2154 = vset.pattern.permute.xlu0 3
        %2155 = vperm.xlu0 %2154, %v710
        %v2156 = vpop.permute.xlu0 %2155
        %2158 = vset.pattern.permute.xlu0 3
        %2159 = vperm.xlu0 %2158, %v711
        %v2160 = vpop.permute.xlu0 %2159
        %2162 = vset.pattern.permute.xlu0 3
        %2163 = vperm.xlu0 %2162, %v712
        %v2164 = vpop.permute.xlu0 %2163
        %2166 = vset.pattern.permute.xlu0 3
        %2167 = vperm.xlu0 %2166, %v713
        %v2168 = vpop.permute.xlu0 %2167
        %2170 = vset.pattern.permute.xlu0 3
        %2171 = vperm.xlu0 %2170, %v714
        %v2172 = vpop.permute.xlu0 %2171
        %2174 = vset.pattern.permute.xlu0 3
        %2175 = vperm.xlu0 %2174, %v715
        %v2176 = vpop.permute.xlu0 %2175
        %2178 = vset.pattern.permute.xlu0 3
        %2179 = vperm.xlu0 %2178, %v716
        %v2180 = vpop.permute.xlu0 %2179
        %2182 = vset.pattern.permute.xlu0 3
        %2183 = vperm.xlu0 %2182, %v717
        %v2184 = vpop.permute.xlu0 %2183
        %2186 = vset.pattern.permute.xlu0 3
        %2187 = vperm.xlu0 %2186, %v718
        %v2188 = vpop.permute.xlu0 %2187
        %2190 = vset.pattern.permute.xlu0 3
        %2191 = vperm.xlu0 %2190, %v719
        %v2192 = vpop.permute.xlu0 %2191
        %2194 = vset.pattern.permute.xlu0 3
        %2195 = vperm.xlu0 %2194, %v720
        %v2196 = vpop.permute.xlu0 %2195
        %2198 = vset.pattern.permute.xlu0 3
        %2199 = vperm.xlu0 %2198, %v721
        %v2200 = vpop.permute.xlu0 %2199
        %v2202 = vperm.slane %v722, 3
        %v2203 = vmul.f32 %v1948, %v2202
        %v2204 = vmul.f32 %v1952, %v2202
        %v2205 = vmul.f32 %v1956, %v2202
        %v2206 = vmul.f32 %v1960, %v2202
        %v2207 = vmul.f32 %v1964, %v2202
        %v2208 = vmul.f32 %v1968, %v2202
        %v2209 = vmul.f32 %v1972, %v2202
        %v2210 = vmul.f32 %v1976, %v2202
        %v2211 = vmul.f32 %v1980, %v2202
        %v2212 = vmul.f32 %v1984, %v2202
        %v2213 = vmul.f32 %v1988, %v2202
        %v2214 = vmul.f32 %v1992, %v2202
        %v2215 = vmul.f32 %v1996, %v2202
        %v2216 = vmul.f32 %v2000, %v2202
        %v2217 = vmul.f32 %v2004, %v2202
        %v2218 = vmul.f32 %v2008, %v2202
        %v2219 = vmul.f32 %v2012, %v2202
        %v2220 = vmul.f32 %v2016, %v2202
        %v2221 = vmul.f32 %v2020, %v2202
        %v2222 = vmul.f32 %v2024, %v2202
        %v2223 = vmul.f32 %v2028, %v2202
        %v2224 = vmul.f32 %v2032, %v2202
        %v2225 = vmul.f32 %v2036, %v2202
        %v2226 = vmul.f32 %v2040, %v2202
        %v2227 = vmul.f32 %v2044, %v2202
        %v2228 = vmul.f32 %v2048, %v2202
        %v2229 = vmul.f32 %v2052, %v2202
        %v2230 = vmul.f32 %v2056, %v2202
        %v2231 = vmul.f32 %v2060, %v2202
        %v2232 = vmul.f32 %v2064, %v2202
        %v2233 = vmul.f32 %v2068, %v2202
        %v2234 = vmul.f32 %v2072, %v2202
        %v2235 = vmul.f32 %v2076, %v2202
        %v2236 = vmul.f32 %v2080, %v2202
        %v2237 = vmul.f32 %v2084, %v2202
        %v2238 = vmul.f32 %v2088, %v2202
        %v2239 = vmul.f32 %v2092, %v2202
        %v2240 = vmul.f32 %v2096, %v2202
        %v2241 = vmul.f32 %v2100, %v2202
        %v2242 = vmul.f32 %v2104, %v2202
        %v2243 = vmul.f32 %v2108, %v2202
        %v2244 = vmul.f32 %v2112, %v2202
        %v2245 = vmul.f32 %v2116, %v2202
        %v2246 = vmul.f32 %v2120, %v2202
        %v2247 = vmul.f32 %v2124, %v2202
        %v2248 = vmul.f32 %v2128, %v2202
        %v2249 = vmul.f32 %v2132, %v2202
        %v2250 = vmul.f32 %v2136, %v2202
        %v2251 = vmul.f32 %v2140, %v2202
        %v2252 = vmul.f32 %v2144, %v2202
        %v2253 = vmul.f32 %v2148, %v2202
        %v2254 = vmul.f32 %v2152, %v2202
        %v2255 = vmul.f32 %v2156, %v2202
        %v2256 = vmul.f32 %v2160, %v2202
        %v2257 = vmul.f32 %v2164, %v2202
        %v2258 = vmul.f32 %v2168, %v2202
        %v2259 = vmul.f32 %v2172, %v2202
        %v2260 = vmul.f32 %v2176, %v2202
        %v2261 = vmul.f32 %v2180, %v2202
        %v2262 = vmul.f32 %v2184, %v2202
        %v2263 = vmul.f32 %v2188, %v2202
        %v2264 = vmul.f32 %v2192, %v2202
        %v2265 = vmul.f32 %v2196, %v2202
        %v2266 = vmul.f32 %v2200, %v2202
        %v2267 = vadd.f32 %v1882, %v2203
        %v2268 = vadd.f32 %v1883, %v2204
        %v2269 = vadd.f32 %v1884, %v2205
        %v2270 = vadd.f32 %v1885, %v2206
        %v2271 = vadd.f32 %v1886, %v2207
        %v2272 = vadd.f32 %v1887, %v2208
        %v2273 = vadd.f32 %v1888, %v2209
        %v2274 = vadd.f32 %v1889, %v2210
        %v2275 = vadd.f32 %v1890, %v2211
        %v2276 = vadd.f32 %v1891, %v2212
        %v2277 = vadd.f32 %v1892, %v2213
        %v2278 = vadd.f32 %v1893, %v2214
        %v2279 = vadd.f32 %v1894, %v2215
        %v2280 = vadd.f32 %v1895, %v2216
        %v2281 = vadd.f32 %v1896, %v2217
        %v2282 = vadd.f32 %v1897, %v2218
        %v2283 = vadd.f32 %v1898, %v2219
        %v2284 = vadd.f32 %v1899, %v2220
        %v2285 = vadd.f32 %v1900, %v2221
        %v2286 = vadd.f32 %v1901, %v2222
        %v2287 = vadd.f32 %v1902, %v2223
        %v2288 = vadd.f32 %v1903, %v2224
        %v2289 = vadd.f32 %v1904, %v2225
        %v2290 = vadd.f32 %v1905, %v2226
        %v2291 = vadd.f32 %v1906, %v2227
        %v2292 = vadd.f32 %v1907, %v2228
        %v2293 = vadd.f32 %v1908, %v2229
        %v2294 = vadd.f32 %v1909, %v2230
        %v2295 = vadd.f32 %v1910, %v2231
        %v2296 = vadd.f32 %v1911, %v2232
        %v2297 = vadd.f32 %v1912, %v2233
        %v2298 = vadd.f32 %v1913, %v2234
        %v2299 = vadd.f32 %v1914, %v2235
        %v2300 = vadd.f32 %v1915, %v2236
        %v2301 = vadd.f32 %v1916, %v2237
        %v2302 = vadd.f32 %v1917, %v2238
        %v2303 = vadd.f32 %v1918, %v2239
        %v2304 = vadd.f32 %v1919, %v2240
        %v2305 = vadd.f32 %v1920, %v2241
        %v2306 = vadd.f32 %v1921, %v2242
        %v2307 = vadd.f32 %v1922, %v2243
        %v2308 = vadd.f32 %v1923, %v2244
        %v2309 = vadd.f32 %v1924, %v2245
        %v2310 = vadd.f32 %v1925, %v2246
        %v2311 = vadd.f32 %v1926, %v2247
        %v2312 = vadd.f32 %v1927, %v2248
        %v2313 = vadd.f32 %v1928, %v2249
        %v2314 = vadd.f32 %v1929, %v2250
        %v2315 = vadd.f32 %v1930, %v2251
        %v2316 = vadd.f32 %v1931, %v2252
        %v2317 = vadd.f32 %v1932, %v2253
        %v2318 = vadd.f32 %v1933, %v2254
        %v2319 = vadd.f32 %v1934, %v2255
        %v2320 = vadd.f32 %v1935, %v2256
        %v2321 = vadd.f32 %v1936, %v2257
        %v2322 = vadd.f32 %v1937, %v2258
        %v2323 = vadd.f32 %v1938, %v2259
        %v2324 = vadd.f32 %v1939, %v2260
        %v2325 = vadd.f32 %v1940, %v2261
        %v2326 = vadd.f32 %v1941, %v2262
        %v2327 = vadd.f32 %v1942, %v2263
        %v2328 = vadd.f32 %v1943, %v2264
        %v2329 = vadd.f32 %v1944, %v2265
        %v2330 = vadd.f32 %v1945, %v2266
        %v2331 = vtanh.pop %v2267
        %v2332 = vtanh.pop %v2268
        %v2333 = vtanh.pop %v2269
        %v2334 = vtanh.pop %v2270
        %v2335 = vtanh.pop %v2271
        %v2336 = vtanh.pop %v2272
        %v2337 = vtanh.pop %v2273
        %v2338 = vtanh.pop %v2274
        %v2339 = vtanh.pop %v2275
        %v2340 = vtanh.pop %v2276
        %v2341 = vtanh.pop %v2277
        %v2342 = vtanh.pop %v2278
        %v2343 = vtanh.pop %v2279
        %v2344 = vtanh.pop %v2280
        %v2345 = vtanh.pop %v2281
        %v2346 = vtanh.pop %v2282
        %v2347 = vtanh.pop %v2283
        %v2348 = vtanh.pop %v2284
        %v2349 = vtanh.pop %v2285
        %v2350 = vtanh.pop %v2286
        %v2351 = vtanh.pop %v2287
        %v2352 = vtanh.pop %v2288
        %v2353 = vtanh.pop %v2289
        %v2354 = vtanh.pop %v2290
        %v2355 = vtanh.pop %v2291
        %v2356 = vtanh.pop %v2292
        %v2357 = vtanh.pop %v2293
        %v2358 = vtanh.pop %v2294
        %v2359 = vtanh.pop %v2295
        %v2360 = vtanh.pop %v2296
        %v2361 = vtanh.pop %v2297
        %v2362 = vtanh.pop %v2298
        %v2363 = vtanh.pop %v2299
        %v2364 = vtanh.pop %v2300
        %v2365 = vtanh.pop %v2301
        %v2366 = vtanh.pop %v2302
        %v2367 = vtanh.pop %v2303
        %v2368 = vtanh.pop %v2304
        %v2369 = vtanh.pop %v2305
        %v2370 = vtanh.pop %v2306
        %v2371 = vtanh.pop %v2307
        %v2372 = vtanh.pop %v2308
        %v2373 = vtanh.pop %v2309
        %v2374 = vtanh.pop %v2310
        %v2375 = vtanh.pop %v2311
        %v2376 = vtanh.pop %v2312
        %v2377 = vtanh.pop %v2313
        %v2378 = vtanh.pop %v2314
        %v2379 = vtanh.pop %v2315
        %v2380 = vtanh.pop %v2316
        %v2381 = vtanh.pop %v2317
        %v2382 = vtanh.pop %v2318
        %v2383 = vtanh.pop %v2319
        %v2384 = vtanh.pop %v2320
        %v2385 = vtanh.pop %v2321
        %v2386 = vtanh.pop %v2322
        %v2387 = vtanh.pop %v2323
        %v2388 = vtanh.pop %v2324
        %v2389 = vtanh.pop %v2325
        %v2390 = vtanh.pop %v2326
        %v2391 = vtanh.pop %v2327
        %v2392 = vtanh.pop %v2328
        %v2393 = vtanh.pop %v2329
        %v2394 = vtanh.pop %v2330
        %v2395 = vpack.c.bf16 %v2332, %v2331
        %v2396 = vpack.c.bf16 %v2334, %v2333
        %v2397 = vpack.c.bf16 %v2336, %v2335
        %v2398 = vpack.c.bf16 %v2338, %v2337
        %v2399 = vpack.c.bf16 %v2340, %v2339
        %v2400 = vpack.c.bf16 %v2342, %v2341
        %v2401 = vpack.c.bf16 %v2344, %v2343
        %v2402 = vpack.c.bf16 %v2346, %v2345
        %v2403 = vpack.c.bf16 %v2348, %v2347
        %v2404 = vpack.c.bf16 %v2350, %v2349
        %v2405 = vpack.c.bf16 %v2352, %v2351
        %v2406 = vpack.c.bf16 %v2354, %v2353
        %v2407 = vpack.c.bf16 %v2356, %v2355
        %v2408 = vpack.c.bf16 %v2358, %v2357
        %v2409 = vpack.c.bf16 %v2360, %v2359
        %v2410 = vpack.c.bf16 %v2362, %v2361
        %v2411 = vpack.c.bf16 %v2364, %v2363
        %v2412 = vpack.c.bf16 %v2366, %v2365
        %v2413 = vpack.c.bf16 %v2368, %v2367
        %v2414 = vpack.c.bf16 %v2370, %v2369
        %v2415 = vpack.c.bf16 %v2372, %v2371
        %v2416 = vpack.c.bf16 %v2374, %v2373
        %v2417 = vpack.c.bf16 %v2376, %v2375
        %v2418 = vpack.c.bf16 %v2378, %v2377
        %v2419 = vpack.c.bf16 %v2380, %v2379
        %v2420 = vpack.c.bf16 %v2382, %v2381
        %v2421 = vpack.c.bf16 %v2384, %v2383
        %v2422 = vpack.c.bf16 %v2386, %v2385
        %v2423 = vpack.c.bf16 %v2388, %v2387
        %v2424 = vpack.c.bf16 %v2390, %v2389
        %v2425 = vpack.c.bf16 %v2392, %v2391
        %v2426 = vpack.c.bf16 %v2394, %v2393
        %v2427 = vld [vmem:[%s13] sm:$0xf]
        %v2428 = vld [vmem:[%s13 + $0x4] sm:$0xf]
        %v2429 = vld [vmem:[%s13 + $0x8] sm:$0xf]
        %v2430 = vld [vmem:[%s13 + $0xc] sm:$0xf]
        %v2431 = vld [vmem:[%s13 + $0x10] sm:$0xf]
        %v2432 = vld [vmem:[%s13 + $0x14] sm:$0xf]
        %v2433 = vld [vmem:[%s13 + $0x18] sm:$0xf]
        %v2434 = vld [vmem:[%s13 + $0x1c] sm:$0xf]
        %v2435 = vld [vmem:[%s13 + $0x20] sm:$0xf]
        %v2436 = vld [vmem:[%s13 + $0x24] sm:$0xf]
        %v2437 = vld [vmem:[%s13 + $0x28] sm:$0xf]
        %v2438 = vld [vmem:[%s13 + $0x2c] sm:$0xf]
        %v2439 = vld [vmem:[%s13 + $0x30] sm:$0xf]
        %v2440 = vld [vmem:[%s13 + $0x34] sm:$0xf]
        %v2441 = vld [vmem:[%s13 + $0x38] sm:$0xf]
        %v2442 = vld [vmem:[%s13 + $0x3c] sm:$0xf]
        %v2443 = vld [vmem:[%s14] sm:$0x1]
        %v2445 = vperm.slane %v2443, 0
        %v2463 = vunpack.c.l.b16 %v2427
        %v2464 = vunpack.c.l.b16 %v2428
        %v2465 = vunpack.c.l.b16 %v2429
        %v2466 = vunpack.c.l.b16 %v2430
        %v2467 = vunpack.c.l.b16 %v2431
        %v2468 = vunpack.c.l.b16 %v2432
        %v2469 = vunpack.c.l.b16 %v2433
        %v2470 = vunpack.c.l.b16 %v2434
        %v2471 = vunpack.c.l.b16 %v2435
        %v2472 = vunpack.c.l.b16 %v2436
        %v2473 = vunpack.c.l.b16 %v2437
        %v2474 = vunpack.c.l.b16 %v2438
        %v2475 = vunpack.c.l.b16 %v2439
        %v2476 = vunpack.c.l.b16 %v2440
        %v2477 = vunpack.c.l.b16 %v2441
        %v2478 = vunpack.c.l.b16 %v2442
        %v2479 = vpack.c.b16 %v2464, %v2463
        %v2480 = vpack.c.b16 %v2466, %v2465
        %v2481 = vpack.c.b16 %v2468, %v2467
        %v2482 = vpack.c.b16 %v2470, %v2469
        %v2483 = vpack.c.b16 %v2472, %v2471
        %v2484 = vpack.c.b16 %v2474, %v2473
        %v2485 = vpack.c.b16 %v2476, %v2475
        %v2486 = vpack.c.b16 %v2478, %v2477
        %2495 = vmatpush.bf16.msra.mxu0 %v2486
        %2496 = vmatpush.bf16.msra.mxu0 %v2485
        %2497 = vmatpush.bf16.msra.mxu0 %v2484
        %2498 = vmatpush.bf16.msra.mxu0 %v2483
        %2499 = vmatpush.bf16.msra.mxu0 %v2482
        %2500 = vmatpush.bf16.msra.mxu0 %v2481
        %2501 = vmatpush.bf16.msra.mxu0 %v2480
        %2502 = vmatpush.bf16.msra.mxu0 %v2479
        %2503 = vmatmul.bf16.gmra.mxu0 %v2395
        %v2504 = vpop.f32.mrf.mxu0
        %v2505 = vadd.f32 %v2445, %v2504
        %v2506 = vpop.f32.mrf.mxu0
        %v2507 = vadd.f32 %v2445, %v2506
        %2508 = vmatmul.bf16.gmra.mxu0 %v2396
        %v2509 = vpop.f32.mrf.mxu0
        %v2510 = vadd.f32 %v2445, %v2509
        %v2511 = vpop.f32.mrf.mxu0
        %v2512 = vadd.f32 %v2445, %v2511
        %2513 = vmatmul.bf16.gmra.mxu0 %v2397
        %v2514 = vpop.f32.mrf.mxu0
        %v2515 = vadd.f32 %v2445, %v2514
        %v2516 = vpop.f32.mrf.mxu0
        %v2517 = vadd.f32 %v2445, %v2516
        %2518 = vmatmul.bf16.gmra.mxu0 %v2398
        %v2519 = vpop.f32.mrf.mxu0
        %v2520 = vadd.f32 %v2445, %v2519
        %v2521 = vpop.f32.mrf.mxu0
        %v2522 = vadd.f32 %v2445, %v2521
        %2523 = vmatmul.bf16.gmra.mxu0 %v2399
        %v2524 = vpop.f32.mrf.mxu0
        %v2525 = vadd.f32 %v2445, %v2524
        %v2526 = vpop.f32.mrf.mxu0
        %v2527 = vadd.f32 %v2445, %v2526
        %2528 = vmatmul.bf16.gmra.mxu0 %v2400
        %v2529 = vpop.f32.mrf.mxu0
        %v2530 = vadd.f32 %v2445, %v2529
        %v2531 = vpop.f32.mrf.mxu0
        %v2532 = vadd.f32 %v2445, %v2531
        %2533 = vmatmul.bf16.gmra.mxu0 %v2401
        %v2534 = vpop.f32.mrf.mxu0
        %v2535 = vadd.f32 %v2445, %v2534
        %v2536 = vpop.f32.mrf.mxu0
        %v2537 = vadd.f32 %v2445, %v2536
        %2538 = vmatmul.bf16.gmra.mxu0 %v2402
        %v2539 = vpop.f32.mrf.mxu0
        %v2540 = vadd.f32 %v2445, %v2539
        %v2541 = vpop.f32.mrf.mxu0
        %v2542 = vadd.f32 %v2445, %v2541
        %2543 = vmatmul.bf16.gmra.mxu0 %v2403
        %v2544 = vpop.f32.mrf.mxu0
        %v2545 = vadd.f32 %v2445, %v2544
        %v2546 = vpop.f32.mrf.mxu0
        %v2547 = vadd.f32 %v2445, %v2546
        %2548 = vmatmul.bf16.gmra.mxu0 %v2404
        %v2549 = vpop.f32.mrf.mxu0
        %v2550 = vadd.f32 %v2445, %v2549
        %v2551 = vpop.f32.mrf.mxu0
        %v2552 = vadd.f32 %v2445, %v2551
        %2553 = vmatmul.bf16.gmra.mxu0 %v2405
        %v2554 = vpop.f32.mrf.mxu0
        %v2555 = vadd.f32 %v2445, %v2554
        %v2556 = vpop.f32.mrf.mxu0
        %v2557 = vadd.f32 %v2445, %v2556
        %2558 = vmatmul.bf16.gmra.mxu0 %v2406
        %v2559 = vpop.f32.mrf.mxu0
        %v2560 = vadd.f32 %v2445, %v2559
        %v2561 = vpop.f32.mrf.mxu0
        %v2562 = vadd.f32 %v2445, %v2561
        %2563 = vmatmul.bf16.gmra.mxu0 %v2407
        %v2564 = vpop.f32.mrf.mxu0
        %v2565 = vadd.f32 %v2445, %v2564
        %v2566 = vpop.f32.mrf.mxu0
        %v2567 = vadd.f32 %v2445, %v2566
        %2568 = vmatmul.bf16.gmra.mxu0 %v2408
        %v2569 = vpop.f32.mrf.mxu0
        %v2570 = vadd.f32 %v2445, %v2569
        %v2571 = vpop.f32.mrf.mxu0
        %v2572 = vadd.f32 %v2445, %v2571
        %2573 = vmatmul.bf16.gmra.mxu0 %v2409
        %v2574 = vpop.f32.mrf.mxu0
        %v2575 = vadd.f32 %v2445, %v2574
        %v2576 = vpop.f32.mrf.mxu0
        %v2577 = vadd.f32 %v2445, %v2576
        %2578 = vmatmul.bf16.gmra.mxu0 %v2410
        %v2579 = vpop.f32.mrf.mxu0
        %v2580 = vadd.f32 %v2445, %v2579
        %v2581 = vpop.f32.mrf.mxu0
        %v2582 = vadd.f32 %v2445, %v2581
        %2583 = vmatmul.bf16.gmra.mxu0 %v2411
        %v2584 = vpop.f32.mrf.mxu0
        %v2585 = vadd.f32 %v2445, %v2584
        %v2586 = vpop.f32.mrf.mxu0
        %v2587 = vadd.f32 %v2445, %v2586
        %2588 = vmatmul.bf16.gmra.mxu0 %v2412
        %v2589 = vpop.f32.mrf.mxu0
        %v2590 = vadd.f32 %v2445, %v2589
        %v2591 = vpop.f32.mrf.mxu0
        %v2592 = vadd.f32 %v2445, %v2591
        %2593 = vmatmul.bf16.gmra.mxu0 %v2413
        %v2594 = vpop.f32.mrf.mxu0
        %v2595 = vadd.f32 %v2445, %v2594
        %v2596 = vpop.f32.mrf.mxu0
        %v2597 = vadd.f32 %v2445, %v2596
        %2598 = vmatmul.bf16.gmra.mxu0 %v2414
        %v2599 = vpop.f32.mrf.mxu0
        %v2600 = vadd.f32 %v2445, %v2599
        %v2601 = vpop.f32.mrf.mxu0
        %v2602 = vadd.f32 %v2445, %v2601
        %2603 = vmatmul.bf16.gmra.mxu0 %v2415
        %v2604 = vpop.f32.mrf.mxu0
        %v2605 = vadd.f32 %v2445, %v2604
        %v2606 = vpop.f32.mrf.mxu0
        %v2607 = vadd.f32 %v2445, %v2606
        %2608 = vmatmul.bf16.gmra.mxu0 %v2416
        %v2609 = vpop.f32.mrf.mxu0
        %v2610 = vadd.f32 %v2445, %v2609
        %v2611 = vpop.f32.mrf.mxu0
        %v2612 = vadd.f32 %v2445, %v2611
        %2613 = vmatmul.bf16.gmra.mxu0 %v2417
        %v2614 = vpop.f32.mrf.mxu0
        %v2615 = vadd.f32 %v2445, %v2614
        %v2616 = vpop.f32.mrf.mxu0
        %v2617 = vadd.f32 %v2445, %v2616
        %2618 = vmatmul.bf16.gmra.mxu0 %v2418
        %v2619 = vpop.f32.mrf.mxu0
        %v2620 = vadd.f32 %v2445, %v2619
        %v2621 = vpop.f32.mrf.mxu0
        %v2622 = vadd.f32 %v2445, %v2621
        %2623 = vmatmul.bf16.gmra.mxu0 %v2419
        %v2624 = vpop.f32.mrf.mxu0
        %v2625 = vadd.f32 %v2445, %v2624
        %v2626 = vpop.f32.mrf.mxu0
        %v2627 = vadd.f32 %v2445, %v2626
        %2628 = vmatmul.bf16.gmra.mxu0 %v2420
        %v2629 = vpop.f32.mrf.mxu0
        %v2630 = vadd.f32 %v2445, %v2629
        %v2631 = vpop.f32.mrf.mxu0
        %v2632 = vadd.f32 %v2445, %v2631
        %2633 = vmatmul.bf16.gmra.mxu0 %v2421
        %v2634 = vpop.f32.mrf.mxu0
        %v2635 = vadd.f32 %v2445, %v2634
        %v2636 = vpop.f32.mrf.mxu0
        %v2637 = vadd.f32 %v2445, %v2636
        %2638 = vmatmul.bf16.gmra.mxu0 %v2422
        %v2639 = vpop.f32.mrf.mxu0
        %v2640 = vadd.f32 %v2445, %v2639
        %v2641 = vpop.f32.mrf.mxu0
        %v2642 = vadd.f32 %v2445, %v2641
        %2643 = vmatmul.bf16.gmra.mxu0 %v2423
        %v2644 = vpop.f32.mrf.mxu0
        %v2645 = vadd.f32 %v2445, %v2644
        %v2646 = vpop.f32.mrf.mxu0
        %v2647 = vadd.f32 %v2445, %v2646
        %2648 = vmatmul.bf16.gmra.mxu0 %v2424
        %v2649 = vpop.f32.mrf.mxu0
        %v2650 = vadd.f32 %v2445, %v2649
        %v2651 = vpop.f32.mrf.mxu0
        %v2652 = vadd.f32 %v2445, %v2651
        %2653 = vmatmul.bf16.gmra.mxu0 %v2425
        %v2654 = vpop.f32.mrf.mxu0
        %v2655 = vadd.f32 %v2445, %v2654
        %v2656 = vpop.f32.mrf.mxu0
        %v2657 = vadd.f32 %v2445, %v2656
        %2658 = vmatmul.bf16.gmra.mxu0 %v2426
        %v2659 = vpop.f32.mrf.mxu0
        %v2660 = vadd.f32 %v2445, %v2659
        %v2661 = vpop.f32.mrf.mxu0
        %v2662 = vadd.f32 %v2445, %v2661
        %2663 = vdwg.mxu0
        %v2664 = vtanh.pop %v2505
        %v2665 = vtanh.pop %v2507
        %v2666 = vtanh.pop %v2510
        %v2667 = vtanh.pop %v2512
        %v2668 = vtanh.pop %v2515
        %v2669 = vtanh.pop %v2517
        %v2670 = vtanh.pop %v2520
        %v2671 = vtanh.pop %v2522
        %v2672 = vtanh.pop %v2525
        %v2673 = vtanh.pop %v2527
        %v2674 = vtanh.pop %v2530
        %v2675 = vtanh.pop %v2532
        %v2676 = vtanh.pop %v2535
        %v2677 = vtanh.pop %v2537
        %v2678 = vtanh.pop %v2540
        %v2679 = vtanh.pop %v2542
        %v2680 = vtanh.pop %v2545
        %v2681 = vtanh.pop %v2547
        %v2682 = vtanh.pop %v2550
        %v2683 = vtanh.pop %v2552
        %v2684 = vtanh.pop %v2555
        %v2685 = vtanh.pop %v2557
        %v2686 = vtanh.pop %v2560
        %v2687 = vtanh.pop %v2562
        %v2688 = vtanh.pop %v2565
        %v2689 = vtanh.pop %v2567
        %v2690 = vtanh.pop %v2570
        %v2691 = vtanh.pop %v2572
        %v2692 = vtanh.pop %v2575
        %v2693 = vtanh.pop %v2577
        %v2694 = vtanh.pop %v2580
        %v2695 = vtanh.pop %v2582
        %v2696 = vtanh.pop %v2585
        %v2697 = vtanh.pop %v2587
        %v2698 = vtanh.pop %v2590
        %v2699 = vtanh.pop %v2592
        %v2700 = vtanh.pop %v2595
        %v2701 = vtanh.pop %v2597
        %v2702 = vtanh.pop %v2600
        %v2703 = vtanh.pop %v2602
        %v2704 = vtanh.pop %v2605
        %v2705 = vtanh.pop %v2607
        %v2706 = vtanh.pop %v2610
        %v2707 = vtanh.pop %v2612
        %v2708 = vtanh.pop %v2615
        %v2709 = vtanh.pop %v2617
        %v2710 = vtanh.pop %v2620
        %v2711 = vtanh.pop %v2622
        %v2712 = vtanh.pop %v2625
        %v2713 = vtanh.pop %v2627
        %v2714 = vtanh.pop %v2630
        %v2715 = vtanh.pop %v2632
        %v2716 = vtanh.pop %v2635
        %v2717 = vtanh.pop %v2637
        %v2718 = vtanh.pop %v2640
        %v2719 = vtanh.pop %v2642
        %v2720 = vtanh.pop %v2645
        %v2721 = vtanh.pop %v2647
        %v2722 = vtanh.pop %v2650
        %v2723 = vtanh.pop %v2652
        %v2724 = vtanh.pop %v2655
        %v2725 = vtanh.pop %v2657
        %v2726 = vtanh.pop %v2660
        %v2727 = vtanh.pop %v2662
        %v2728 = vpack.c.bf16 %v2665, %v2664
        %v2729 = vpack.c.bf16 %v2667, %v2666
        %v2730 = vpack.c.bf16 %v2669, %v2668
        %v2731 = vpack.c.bf16 %v2671, %v2670
        %v2732 = vpack.c.bf16 %v2673, %v2672
        %v2733 = vpack.c.bf16 %v2675, %v2674
        %v2734 = vpack.c.bf16 %v2677, %v2676
        %v2735 = vpack.c.bf16 %v2679, %v2678
        %v2736 = vpack.c.bf16 %v2681, %v2680
        %v2737 = vpack.c.bf16 %v2683, %v2682
        %v2738 = vpack.c.bf16 %v2685, %v2684
        %v2739 = vpack.c.bf16 %v2687, %v2686
        %v2740 = vpack.c.bf16 %v2689, %v2688
        %v2741 = vpack.c.bf16 %v2691, %v2690
        %v2742 = vpack.c.bf16 %v2693, %v2692
        %v2743 = vpack.c.bf16 %v2695, %v2694
        %v2744 = vpack.c.bf16 %v2697, %v2696
        %v2745 = vpack.c.bf16 %v2699, %v2698
        %v2746 = vpack.c.bf16 %v2701, %v2700
        %v2747 = vpack.c.bf16 %v2703, %v2702
        %v2748 = vpack.c.bf16 %v2705, %v2704
        %v2749 = vpack.c.bf16 %v2707, %v2706
        %v2750 = vpack.c.bf16 %v2709, %v2708
        %v2751 = vpack.c.bf16 %v2711, %v2710
        %v2752 = vpack.c.bf16 %v2713, %v2712
        %v2753 = vpack.c.bf16 %v2715, %v2714
        %v2754 = vpack.c.bf16 %v2717, %v2716
        %v2755 = vpack.c.bf16 %v2719, %v2718
        %v2756 = vpack.c.bf16 %v2721, %v2720
        %v2757 = vpack.c.bf16 %v2723, %v2722
        %v2758 = vpack.c.bf16 %v2725, %v2724
        %v2759 = vpack.c.bf16 %v2727, %v2726
        %v2760 = vld [vmem:[%s15] sm:$0xf]
        %v2761 = vld [vmem:[%s15 + $0x4] sm:$0xf]
        %v2762 = vld [vmem:[%s15 + $0x8] sm:$0xf]
        %v2763 = vld [vmem:[%s15 + $0xc] sm:$0xf]
        %v2764 = vld [vmem:[%s15 + $0x10] sm:$0xf]
        %v2765 = vld [vmem:[%s15 + $0x14] sm:$0xf]
        %v2766 = vld [vmem:[%s15 + $0x18] sm:$0xf]
        %v2767 = vld [vmem:[%s15 + $0x1c] sm:$0xf]
        %v2768 = vld [vmem:[%s15 + $0x20] sm:$0xf]
        %v2769 = vld [vmem:[%s15 + $0x24] sm:$0xf]
        %v2770 = vld [vmem:[%s15 + $0x28] sm:$0xf]
        %v2771 = vld [vmem:[%s15 + $0x2c] sm:$0xf]
        %v2772 = vld [vmem:[%s15 + $0x30] sm:$0xf]
        %v2773 = vld [vmem:[%s15 + $0x34] sm:$0xf]
        %v2774 = vld [vmem:[%s15 + $0x38] sm:$0xf]
        %v2775 = vld [vmem:[%s15 + $0x3c] sm:$0xf]
        %v2776 = vld [vmem:[%s16] sm:$0x1]
        %v2778 = vperm.slane %v2776, 0
        %v2796 = vunpack.c.l.b16 %v2760
        %v2797 = vunpack.c.l.b16 %v2761
        %v2798 = vunpack.c.l.b16 %v2762
        %v2799 = vunpack.c.l.b16 %v2763
        %v2800 = vunpack.c.l.b16 %v2764
        %v2801 = vunpack.c.l.b16 %v2765
        %v2802 = vunpack.c.l.b16 %v2766
        %v2803 = vunpack.c.l.b16 %v2767
        %v2804 = vunpack.c.l.b16 %v2768
        %v2805 = vunpack.c.l.b16 %v2769
        %v2806 = vunpack.c.l.b16 %v2770
        %v2807 = vunpack.c.l.b16 %v2771
        %v2808 = vunpack.c.l.b16 %v2772
        %v2809 = vunpack.c.l.b16 %v2773
        %v2810 = vunpack.c.l.b16 %v2774
        %v2811 = vunpack.c.l.b16 %v2775
        %v2812 = vpack.c.b16 %v2797, %v2796
        %v2813 = vpack.c.b16 %v2799, %v2798
        %v2814 = vpack.c.b16 %v2801, %v2800
        %v2815 = vpack.c.b16 %v2803, %v2802
        %v2816 = vpack.c.b16 %v2805, %v2804
        %v2817 = vpack.c.b16 %v2807, %v2806
        %v2818 = vpack.c.b16 %v2809, %v2808
        %v2819 = vpack.c.b16 %v2811, %v2810
        %2828 = vmatpush.bf16.msra.mxu0 %v2819
        %2829 = vmatpush.bf16.msra.mxu0 %v2818
        %2830 = vmatpush.bf16.msra.mxu0 %v2817
        %2831 = vmatpush.bf16.msra.mxu0 %v2816
        %2832 = vmatpush.bf16.msra.mxu0 %v2815
        %2833 = vmatpush.bf16.msra.mxu0 %v2814
        %2834 = vmatpush.bf16.msra.mxu0 %v2813
        %2835 = vmatpush.bf16.msra.mxu0 %v2812
        %2836 = vmatmul.bf16.gmra.mxu0 %v2728
        %v2837 = vpop.f32.mrf.mxu0
        %v2838 = vadd.f32 %v2778, %v2837
        %v2839 = vpop.f32.mrf.mxu0
        %v2840 = vadd.f32 %v2778, %v2839
        %2841 = vmatmul.bf16.gmra.mxu0 %v2729
        %v2842 = vpop.f32.mrf.mxu0
        %v2843 = vadd.f32 %v2778, %v2842
        %v2844 = vpop.f32.mrf.mxu0
        %v2845 = vadd.f32 %v2778, %v2844
        %2846 = vmatmul.bf16.gmra.mxu0 %v2730
        %v2847 = vpop.f32.mrf.mxu0
        %v2848 = vadd.f32 %v2778, %v2847
        %v2849 = vpop.f32.mrf.mxu0
        %v2850 = vadd.f32 %v2778, %v2849
        %2851 = vmatmul.bf16.gmra.mxu0 %v2731
        %v2852 = vpop.f32.mrf.mxu0
        %v2853 = vadd.f32 %v2778, %v2852
        %v2854 = vpop.f32.mrf.mxu0
        %v2855 = vadd.f32 %v2778, %v2854
        %2856 = vmatmul.bf16.gmra.mxu0 %v2732
        %v2857 = vpop.f32.mrf.mxu0
        %v2858 = vadd.f32 %v2778, %v2857
        %v2859 = vpop.f32.mrf.mxu0
        %v2860 = vadd.f32 %v2778, %v2859
        %2861 = vmatmul.bf16.gmra.mxu0 %v2733
        %v2862 = vpop.f32.mrf.mxu0
        %v2863 = vadd.f32 %v2778, %v2862
        %v2864 = vpop.f32.mrf.mxu0
        %v2865 = vadd.f32 %v2778, %v2864
        %2866 = vmatmul.bf16.gmra.mxu0 %v2734
        %v2867 = vpop.f32.mrf.mxu0
        %v2868 = vadd.f32 %v2778, %v2867
        %v2869 = vpop.f32.mrf.mxu0
        %v2870 = vadd.f32 %v2778, %v2869
        %2871 = vmatmul.bf16.gmra.mxu0 %v2735
        %v2872 = vpop.f32.mrf.mxu0
        %v2873 = vadd.f32 %v2778, %v2872
        %v2874 = vpop.f32.mrf.mxu0
        %v2875 = vadd.f32 %v2778, %v2874
        %2876 = vmatmul.bf16.gmra.mxu0 %v2736
        %v2877 = vpop.f32.mrf.mxu0
        %v2878 = vadd.f32 %v2778, %v2877
        %v2879 = vpop.f32.mrf.mxu0
        %v2880 = vadd.f32 %v2778, %v2879
        %2881 = vmatmul.bf16.gmra.mxu0 %v2737
        %v2882 = vpop.f32.mrf.mxu0
        %v2883 = vadd.f32 %v2778, %v2882
        %v2884 = vpop.f32.mrf.mxu0
        %v2885 = vadd.f32 %v2778, %v2884
        %2886 = vmatmul.bf16.gmra.mxu0 %v2738
        %v2887 = vpop.f32.mrf.mxu0
        %v2888 = vadd.f32 %v2778, %v2887
        %v2889 = vpop.f32.mrf.mxu0
        %v2890 = vadd.f32 %v2778, %v2889
        %2891 = vmatmul.bf16.gmra.mxu0 %v2739
        %v2892 = vpop.f32.mrf.mxu0
        %v2893 = vadd.f32 %v2778, %v2892
        %v2894 = vpop.f32.mrf.mxu0
        %v2895 = vadd.f32 %v2778, %v2894
        %2896 = vmatmul.bf16.gmra.mxu0 %v2740
        %v2897 = vpop.f32.mrf.mxu0
        %v2898 = vadd.f32 %v2778, %v2897
        %v2899 = vpop.f32.mrf.mxu0
        %v2900 = vadd.f32 %v2778, %v2899
        %2901 = vmatmul.bf16.gmra.mxu0 %v2741
        %v2902 = vpop.f32.mrf.mxu0
        %v2903 = vadd.f32 %v2778, %v2902
        %v2904 = vpop.f32.mrf.mxu0
        %v2905 = vadd.f32 %v2778, %v2904
        %2906 = vmatmul.bf16.gmra.mxu0 %v2742
        %v2907 = vpop.f32.mrf.mxu0
        %v2908 = vadd.f32 %v2778, %v2907
        %v2909 = vpop.f32.mrf.mxu0
        %v2910 = vadd.f32 %v2778, %v2909
        %2911 = vmatmul.bf16.gmra.mxu0 %v2743
        %v2912 = vpop.f32.mrf.mxu0
        %v2913 = vadd.f32 %v2778, %v2912
        %v2914 = vpop.f32.mrf.mxu0
        %v2915 = vadd.f32 %v2778, %v2914
        %2916 = vmatmul.bf16.gmra.mxu0 %v2744
        %v2917 = vpop.f32.mrf.mxu0
        %v2918 = vadd.f32 %v2778, %v2917
        %v2919 = vpop.f32.mrf.mxu0
        %v2920 = vadd.f32 %v2778, %v2919
        %2921 = vmatmul.bf16.gmra.mxu0 %v2745
        %v2922 = vpop.f32.mrf.mxu0
        %v2923 = vadd.f32 %v2778, %v2922
        %v2924 = vpop.f32.mrf.mxu0
        %v2925 = vadd.f32 %v2778, %v2924
        %2926 = vmatmul.bf16.gmra.mxu0 %v2746
        %v2927 = vpop.f32.mrf.mxu0
        %v2928 = vadd.f32 %v2778, %v2927
        %v2929 = vpop.f32.mrf.mxu0
        %v2930 = vadd.f32 %v2778, %v2929
        %2931 = vmatmul.bf16.gmra.mxu0 %v2747
        %v2932 = vpop.f32.mrf.mxu0
        %v2933 = vadd.f32 %v2778, %v2932
        %v2934 = vpop.f32.mrf.mxu0
        %v2935 = vadd.f32 %v2778, %v2934
        %2936 = vmatmul.bf16.gmra.mxu0 %v2748
        %v2937 = vpop.f32.mrf.mxu0
        %v2938 = vadd.f32 %v2778, %v2937
        %v2939 = vpop.f32.mrf.mxu0
        %v2940 = vadd.f32 %v2778, %v2939
        %2941 = vmatmul.bf16.gmra.mxu0 %v2749
        %v2942 = vpop.f32.mrf.mxu0
        %v2943 = vadd.f32 %v2778, %v2942
        %v2944 = vpop.f32.mrf.mxu0
        %v2945 = vadd.f32 %v2778, %v2944
        %2946 = vmatmul.bf16.gmra.mxu0 %v2750
        %v2947 = vpop.f32.mrf.mxu0
        %v2948 = vadd.f32 %v2778, %v2947
        %v2949 = vpop.f32.mrf.mxu0
        %v2950 = vadd.f32 %v2778, %v2949
        %2951 = vmatmul.bf16.gmra.mxu0 %v2751
        %v2952 = vpop.f32.mrf.mxu0
        %v2953 = vadd.f32 %v2778, %v2952
        %v2954 = vpop.f32.mrf.mxu0
        %v2955 = vadd.f32 %v2778, %v2954
        %2956 = vmatmul.bf16.gmra.mxu0 %v2752
        %v2957 = vpop.f32.mrf.mxu0
        %v2958 = vadd.f32 %v2778, %v2957
        %v2959 = vpop.f32.mrf.mxu0
        %v2960 = vadd.f32 %v2778, %v2959
        %2961 = vmatmul.bf16.gmra.mxu0 %v2753
        %v2962 = vpop.f32.mrf.mxu0
        %v2963 = vadd.f32 %v2778, %v2962
        %v2964 = vpop.f32.mrf.mxu0
        %v2965 = vadd.f32 %v2778, %v2964
        %2966 = vmatmul.bf16.gmra.mxu0 %v2754
        %v2967 = vpop.f32.mrf.mxu0
        %v2968 = vadd.f32 %v2778, %v2967
        %v2969 = vpop.f32.mrf.mxu0
        %v2970 = vadd.f32 %v2778, %v2969
        %2971 = vmatmul.bf16.gmra.mxu0 %v2755
        %v2972 = vpop.f32.mrf.mxu0
        %v2973 = vadd.f32 %v2778, %v2972
        %v2974 = vpop.f32.mrf.mxu0
        %v2975 = vadd.f32 %v2778, %v2974
        %2976 = vmatmul.bf16.gmra.mxu0 %v2756
        %v2977 = vpop.f32.mrf.mxu0
        %v2978 = vadd.f32 %v2778, %v2977
        %v2979 = vpop.f32.mrf.mxu0
        %v2980 = vadd.f32 %v2778, %v2979
        %2981 = vmatmul.bf16.gmra.mxu0 %v2757
        %v2982 = vpop.f32.mrf.mxu0
        %v2983 = vadd.f32 %v2778, %v2982
        %v2984 = vpop.f32.mrf.mxu0
        %v2985 = vadd.f32 %v2778, %v2984
        %2986 = vmatmul.bf16.gmra.mxu0 %v2758
        %v2987 = vpop.f32.mrf.mxu0
        %v2988 = vadd.f32 %v2778, %v2987
        %v2989 = vpop.f32.mrf.mxu0
        %v2990 = vadd.f32 %v2778, %v2989
        %2991 = vmatmul.bf16.gmra.mxu0 %v2759
        %v2992 = vpop.f32.mrf.mxu0
        %v2993 = vadd.f32 %v2778, %v2992
        %v2994 = vpop.f32.mrf.mxu0
        %v2995 = vadd.f32 %v2778, %v2994
        %2996 = vdwg.mxu0
        %v2997 = vtanh.pop %v2838
        %v2998 = vtanh.pop %v2840
        %v2999 = vtanh.pop %v2843
        %v3000 = vtanh.pop %v2845
        %v3001 = vtanh.pop %v2848
        %v3002 = vtanh.pop %v2850
        %v3003 = vtanh.pop %v2853
        %v3004 = vtanh.pop %v2855
        %v3005 = vtanh.pop %v2858
        %v3006 = vtanh.pop %v2860
        %v3007 = vtanh.pop %v2863
        %v3008 = vtanh.pop %v2865
        %v3009 = vtanh.pop %v2868
        %v3010 = vtanh.pop %v2870
        %v3011 = vtanh.pop %v2873
        %v3012 = vtanh.pop %v2875
        %v3013 = vtanh.pop %v2878
        %v3014 = vtanh.pop %v2880
        %v3015 = vtanh.pop %v2883
        %v3016 = vtanh.pop %v2885
        %v3017 = vtanh.pop %v2888
        %v3018 = vtanh.pop %v2890
        %v3019 = vtanh.pop %v2893
        %v3020 = vtanh.pop %v2895
        %v3021 = vtanh.pop %v2898
        %v3022 = vtanh.pop %v2900
        %v3023 = vtanh.pop %v2903
        %v3024 = vtanh.pop %v2905
        %v3025 = vtanh.pop %v2908
        %v3026 = vtanh.pop %v2910
        %v3027 = vtanh.pop %v2913
        %v3028 = vtanh.pop %v2915
        %v3029 = vtanh.pop %v2918
        %v3030 = vtanh.pop %v2920
        %v3031 = vtanh.pop %v2923
        %v3032 = vtanh.pop %v2925
        %v3033 = vtanh.pop %v2928
        %v3034 = vtanh.pop %v2930
        %v3035 = vtanh.pop %v2933
        %v3036 = vtanh.pop %v2935
        %v3037 = vtanh.pop %v2938
        %v3038 = vtanh.pop %v2940
        %v3039 = vtanh.pop %v2943
        %v3040 = vtanh.pop %v2945
        %v3041 = vtanh.pop %v2948
        %v3042 = vtanh.pop %v2950
        %v3043 = vtanh.pop %v2953
        %v3044 = vtanh.pop %v2955
        %v3045 = vtanh.pop %v2958
        %v3046 = vtanh.pop %v2960
        %v3047 = vtanh.pop %v2963
        %v3048 = vtanh.pop %v2965
        %v3049 = vtanh.pop %v2968
        %v3050 = vtanh.pop %v2970
        %v3051 = vtanh.pop %v2973
        %v3052 = vtanh.pop %v2975
        %v3053 = vtanh.pop %v2978
        %v3054 = vtanh.pop %v2980
        %v3055 = vtanh.pop %v2983
        %v3056 = vtanh.pop %v2985
        %v3057 = vtanh.pop %v2988
        %v3058 = vtanh.pop %v2990
        %v3059 = vtanh.pop %v2993
        %v3060 = vtanh.pop %v2995
        %v3061 = vpack.c.bf16 %v2998, %v2997
        %v3062 = vpack.c.bf16 %v3000, %v2999
        %v3063 = vpack.c.bf16 %v3002, %v3001
        %v3064 = vpack.c.bf16 %v3004, %v3003
        %v3065 = vpack.c.bf16 %v3006, %v3005
        %v3066 = vpack.c.bf16 %v3008, %v3007
        %v3067 = vpack.c.bf16 %v3010, %v3009
        %v3068 = vpack.c.bf16 %v3012, %v3011
        %v3069 = vpack.c.bf16 %v3014, %v3013
        %v3070 = vpack.c.bf16 %v3016, %v3015
        %v3071 = vpack.c.bf16 %v3018, %v3017
        %v3072 = vpack.c.bf16 %v3020, %v3019
        %v3073 = vpack.c.bf16 %v3022, %v3021
        %v3074 = vpack.c.bf16 %v3024, %v3023
        %v3075 = vpack.c.bf16 %v3026, %v3025
        %v3076 = vpack.c.bf16 %v3028, %v3027
        %v3077 = vpack.c.bf16 %v3030, %v3029
        %v3078 = vpack.c.bf16 %v3032, %v3031
        %v3079 = vpack.c.bf16 %v3034, %v3033
        %v3080 = vpack.c.bf16 %v3036, %v3035
        %v3081 = vpack.c.bf16 %v3038, %v3037
        %v3082 = vpack.c.bf16 %v3040, %v3039
        %v3083 = vpack.c.bf16 %v3042, %v3041
        %v3084 = vpack.c.bf16 %v3044, %v3043
        %v3085 = vpack.c.bf16 %v3046, %v3045
        %v3086 = vpack.c.bf16 %v3048, %v3047
        %v3087 = vpack.c.bf16 %v3050, %v3049
        %v3088 = vpack.c.bf16 %v3052, %v3051
        %v3089 = vpack.c.bf16 %v3054, %v3053
        %v3090 = vpack.c.bf16 %v3056, %v3055
        %v3091 = vpack.c.bf16 %v3058, %v3057
        %v3092 = vpack.c.bf16 %v3060, %v3059
        %v3093 = vld [vmem:[%s17] sm:$0xf]
        %v3094 = vld [vmem:[%s17 + $0x4] sm:$0xf]
        %v3095 = vld [vmem:[%s17 + $0x8] sm:$0xf]
        %v3096 = vld [vmem:[%s17 + $0xc] sm:$0xf]
        %v3097 = vld [vmem:[%s17 + $0x10] sm:$0xf]
        %v3098 = vld [vmem:[%s17 + $0x14] sm:$0xf]
        %v3099 = vld [vmem:[%s17 + $0x18] sm:$0xf]
        %v3100 = vld [vmem:[%s17 + $0x1c] sm:$0xf]
        %v3101 = vld [vmem:[%s17 + $0x20] sm:$0xf]
        %v3102 = vld [vmem:[%s17 + $0x24] sm:$0xf]
        %v3103 = vld [vmem:[%s17 + $0x28] sm:$0xf]
        %v3104 = vld [vmem:[%s17 + $0x2c] sm:$0xf]
        %v3105 = vld [vmem:[%s17 + $0x30] sm:$0xf]
        %v3106 = vld [vmem:[%s17 + $0x34] sm:$0xf]
        %v3107 = vld [vmem:[%s17 + $0x38] sm:$0xf]
        %v3108 = vld [vmem:[%s17 + $0x3c] sm:$0xf]
        %v3109 = vld [vmem:[%s18] sm:$0x1]
        %v3111 = vperm.slane %v3109, 0
        %v3129 = vunpack.c.l.b16 %v3093
        %v3130 = vunpack.c.l.b16 %v3094
        %v3131 = vunpack.c.l.b16 %v3095
        %v3132 = vunpack.c.l.b16 %v3096
        %v3133 = vunpack.c.l.b16 %v3097
        %v3134 = vunpack.c.l.b16 %v3098
        %v3135 = vunpack.c.l.b16 %v3099
        %v3136 = vunpack.c.l.b16 %v3100
        %v3137 = vunpack.c.l.b16 %v3101
        %v3138 = vunpack.c.l.b16 %v3102
        %v3139 = vunpack.c.l.b16 %v3103
        %v3140 = vunpack.c.l.b16 %v3104
        %v3141 = vunpack.c.l.b16 %v3105
        %v3142 = vunpack.c.l.b16 %v3106
        %v3143 = vunpack.c.l.b16 %v3107
        %v3144 = vunpack.c.l.b16 %v3108
        %v3145 = vpack.c.b16 %v3130, %v3129
        %v3146 = vpack.c.b16 %v3132, %v3131
        %v3147 = vpack.c.b16 %v3134, %v3133
        %v3148 = vpack.c.b16 %v3136, %v3135
        %v3149 = vpack.c.b16 %v3138, %v3137
        %v3150 = vpack.c.b16 %v3140, %v3139
        %v3151 = vpack.c.b16 %v3142, %v3141
        %v3152 = vpack.c.b16 %v3144, %v3143
        %3161 = vmatpush.bf16.msra.mxu0 %v3152
        %3162 = vmatpush.bf16.msra.mxu0 %v3151
        %3163 = vmatpush.bf16.msra.mxu0 %v3150
        %3164 = vmatpush.bf16.msra.mxu0 %v3149
        %3165 = vmatpush.bf16.msra.mxu0 %v3148
        %3166 = vmatpush.bf16.msra.mxu0 %v3147
        %3167 = vmatpush.bf16.msra.mxu0 %v3146
        %3168 = vmatpush.bf16.msra.mxu0 %v3145
        %3169 = vmatmul.bf16.gmra.mxu0 %v3061
        %v3170 = vpop.f32.mrf.mxu0
        %v3171 = vadd.f32 %v3111, %v3170
        %v3172 = vpop.f32.mrf.mxu0
        %v3173 = vadd.f32 %v3111, %v3172
        %3174 = vmatmul.bf16.gmra.mxu0 %v3062
        %v3175 = vpop.f32.mrf.mxu0
        %v3176 = vadd.f32 %v3111, %v3175
        %v3177 = vpop.f32.mrf.mxu0
        %v3178 = vadd.f32 %v3111, %v3177
        %3179 = vmatmul.bf16.gmra.mxu0 %v3063
        %v3180 = vpop.f32.mrf.mxu0
        %v3181 = vadd.f32 %v3111, %v3180
        %v3182 = vpop.f32.mrf.mxu0
        %v3183 = vadd.f32 %v3111, %v3182
        %3184 = vmatmul.bf16.gmra.mxu0 %v3064
        %v3185 = vpop.f32.mrf.mxu0
        %v3186 = vadd.f32 %v3111, %v3185
        %v3187 = vpop.f32.mrf.mxu0
        %v3188 = vadd.f32 %v3111, %v3187
        %3189 = vmatmul.bf16.gmra.mxu0 %v3065
        %v3190 = vpop.f32.mrf.mxu0
        %v3191 = vadd.f32 %v3111, %v3190
        %v3192 = vpop.f32.mrf.mxu0
        %v3193 = vadd.f32 %v3111, %v3192
        %3194 = vmatmul.bf16.gmra.mxu0 %v3066
        %v3195 = vpop.f32.mrf.mxu0
        %v3196 = vadd.f32 %v3111, %v3195
        %v3197 = vpop.f32.mrf.mxu0
        %v3198 = vadd.f32 %v3111, %v3197
        %3199 = vmatmul.bf16.gmra.mxu0 %v3067
        %v3200 = vpop.f32.mrf.mxu0
        %v3201 = vadd.f32 %v3111, %v3200
        %v3202 = vpop.f32.mrf.mxu0
        %v3203 = vadd.f32 %v3111, %v3202
        %3204 = vmatmul.bf16.gmra.mxu0 %v3068
        %v3205 = vpop.f32.mrf.mxu0
        %v3206 = vadd.f32 %v3111, %v3205
        %v3207 = vpop.f32.mrf.mxu0
        %v3208 = vadd.f32 %v3111, %v3207
        %3209 = vmatmul.bf16.gmra.mxu0 %v3069
        %v3210 = vpop.f32.mrf.mxu0
        %v3211 = vadd.f32 %v3111, %v3210
        %v3212 = vpop.f32.mrf.mxu0
        %v3213 = vadd.f32 %v3111, %v3212
        %3214 = vmatmul.bf16.gmra.mxu0 %v3070
        %v3215 = vpop.f32.mrf.mxu0
        %v3216 = vadd.f32 %v3111, %v3215
        %v3217 = vpop.f32.mrf.mxu0
        %v3218 = vadd.f32 %v3111, %v3217
        %3219 = vmatmul.bf16.gmra.mxu0 %v3071
        %v3220 = vpop.f32.mrf.mxu0
        %v3221 = vadd.f32 %v3111, %v3220
        %v3222 = vpop.f32.mrf.mxu0
        %v3223 = vadd.f32 %v3111, %v3222
        %3224 = vmatmul.bf16.gmra.mxu0 %v3072
        %v3225 = vpop.f32.mrf.mxu0
        %v3226 = vadd.f32 %v3111, %v3225
        %v3227 = vpop.f32.mrf.mxu0
        %v3228 = vadd.f32 %v3111, %v3227
        %3229 = vmatmul.bf16.gmra.mxu0 %v3073
        %v3230 = vpop.f32.mrf.mxu0
        %v3231 = vadd.f32 %v3111, %v3230
        %v3232 = vpop.f32.mrf.mxu0
        %v3233 = vadd.f32 %v3111, %v3232
        %3234 = vmatmul.bf16.gmra.mxu0 %v3074
        %v3235 = vpop.f32.mrf.mxu0
        %v3236 = vadd.f32 %v3111, %v3235
        %v3237 = vpop.f32.mrf.mxu0
        %v3238 = vadd.f32 %v3111, %v3237
        %3239 = vmatmul.bf16.gmra.mxu0 %v3075
        %v3240 = vpop.f32.mrf.mxu0
        %v3241 = vadd.f32 %v3111, %v3240
        %v3242 = vpop.f32.mrf.mxu0
        %v3243 = vadd.f32 %v3111, %v3242
        %3244 = vmatmul.bf16.gmra.mxu0 %v3076
        %v3245 = vpop.f32.mrf.mxu0
        %v3246 = vadd.f32 %v3111, %v3245
        %v3247 = vpop.f32.mrf.mxu0
        %v3248 = vadd.f32 %v3111, %v3247
        %3249 = vmatmul.bf16.gmra.mxu0 %v3077
        %v3250 = vpop.f32.mrf.mxu0
        %v3251 = vadd.f32 %v3111, %v3250
        %v3252 = vpop.f32.mrf.mxu0
        %v3253 = vadd.f32 %v3111, %v3252
        %3254 = vmatmul.bf16.gmra.mxu0 %v3078
        %v3255 = vpop.f32.mrf.mxu0
        %v3256 = vadd.f32 %v3111, %v3255
        %v3257 = vpop.f32.mrf.mxu0
        %v3258 = vadd.f32 %v3111, %v3257
        %3259 = vmatmul.bf16.gmra.mxu0 %v3079
        %v3260 = vpop.f32.mrf.mxu0
        %v3261 = vadd.f32 %v3111, %v3260
        %v3262 = vpop.f32.mrf.mxu0
        %v3263 = vadd.f32 %v3111, %v3262
        %3264 = vmatmul.bf16.gmra.mxu0 %v3080
        %v3265 = vpop.f32.mrf.mxu0
        %v3266 = vadd.f32 %v3111, %v3265
        %v3267 = vpop.f32.mrf.mxu0
        %v3268 = vadd.f32 %v3111, %v3267
        %3269 = vmatmul.bf16.gmra.mxu0 %v3081
        %v3270 = vpop.f32.mrf.mxu0
        %v3271 = vadd.f32 %v3111, %v3270
        %v3272 = vpop.f32.mrf.mxu0
        %v3273 = vadd.f32 %v3111, %v3272
        %3274 = vmatmul.bf16.gmra.mxu0 %v3082
        %v3275 = vpop.f32.mrf.mxu0
        %v3276 = vadd.f32 %v3111, %v3275
        %v3277 = vpop.f32.mrf.mxu0
        %v3278 = vadd.f32 %v3111, %v3277
        %3279 = vmatmul.bf16.gmra.mxu0 %v3083
        %v3280 = vpop.f32.mrf.mxu0
        %v3281 = vadd.f32 %v3111, %v3280
        %v3282 = vpop.f32.mrf.mxu0
        %v3283 = vadd.f32 %v3111, %v3282
        %3284 = vmatmul.bf16.gmra.mxu0 %v3084
        %v3285 = vpop.f32.mrf.mxu0
        %v3286 = vadd.f32 %v3111, %v3285
        %v3287 = vpop.f32.mrf.mxu0
        %v3288 = vadd.f32 %v3111, %v3287
        %3289 = vmatmul.bf16.gmra.mxu0 %v3085
        %v3290 = vpop.f32.mrf.mxu0
        %v3291 = vadd.f32 %v3111, %v3290
        %v3292 = vpop.f32.mrf.mxu0
        %v3293 = vadd.f32 %v3111, %v3292
        %3294 = vmatmul.bf16.gmra.mxu0 %v3086
        %v3295 = vpop.f32.mrf.mxu0
        %v3296 = vadd.f32 %v3111, %v3295
        %v3297 = vpop.f32.mrf.mxu0
        %v3298 = vadd.f32 %v3111, %v3297
        %3299 = vmatmul.bf16.gmra.mxu0 %v3087
        %v3300 = vpop.f32.mrf.mxu0
        %v3301 = vadd.f32 %v3111, %v3300
        %v3302 = vpop.f32.mrf.mxu0
        %v3303 = vadd.f32 %v3111, %v3302
        %3304 = vmatmul.bf16.gmra.mxu0 %v3088
        %v3305 = vpop.f32.mrf.mxu0
        %v3306 = vadd.f32 %v3111, %v3305
        %v3307 = vpop.f32.mrf.mxu0
        %v3308 = vadd.f32 %v3111, %v3307
        %3309 = vmatmul.bf16.gmra.mxu0 %v3089
        %v3310 = vpop.f32.mrf.mxu0
        %v3311 = vadd.f32 %v3111, %v3310
        %v3312 = vpop.f32.mrf.mxu0
        %v3313 = vadd.f32 %v3111, %v3312
        %3314 = vmatmul.bf16.gmra.mxu0 %v3090
        %v3315 = vpop.f32.mrf.mxu0
        %v3316 = vadd.f32 %v3111, %v3315
        %v3317 = vpop.f32.mrf.mxu0
        %v3318 = vadd.f32 %v3111, %v3317
        %3319 = vmatmul.bf16.gmra.mxu0 %v3091
        %v3320 = vpop.f32.mrf.mxu0
        %v3321 = vadd.f32 %v3111, %v3320
        %v3322 = vpop.f32.mrf.mxu0
        %v3323 = vadd.f32 %v3111, %v3322
        %3324 = vmatmul.bf16.gmra.mxu0 %v3092
        %v3325 = vpop.f32.mrf.mxu0
        %v3326 = vadd.f32 %v3111, %v3325
        %v3327 = vpop.f32.mrf.mxu0
        %v3328 = vadd.f32 %v3111, %v3327
        %3329 = vdwg.mxu0
        %v3330 = vtanh.pop %v3171
        %v3331 = vtanh.pop %v3173
        %v3332 = vtanh.pop %v3176
        %v3333 = vtanh.pop %v3178
        %v3334 = vtanh.pop %v3181
        %v3335 = vtanh.pop %v3183
        %v3336 = vtanh.pop %v3186
        %v3337 = vtanh.pop %v3188
        %v3338 = vtanh.pop %v3191
        %v3339 = vtanh.pop %v3193
        %v3340 = vtanh.pop %v3196
        %v3341 = vtanh.pop %v3198
        %v3342 = vtanh.pop %v3201
        %v3343 = vtanh.pop %v3203
        %v3344 = vtanh.pop %v3206
        %v3345 = vtanh.pop %v3208
        %v3346 = vtanh.pop %v3211
        %v3347 = vtanh.pop %v3213
        %v3348 = vtanh.pop %v3216
        %v3349 = vtanh.pop %v3218
        %v3350 = vtanh.pop %v3221
        %v3351 = vtanh.pop %v3223
        %v3352 = vtanh.pop %v3226
        %v3353 = vtanh.pop %v3228
        %v3354 = vtanh.pop %v3231
        %v3355 = vtanh.pop %v3233
        %v3356 = vtanh.pop %v3236
        %v3357 = vtanh.pop %v3238
        %v3358 = vtanh.pop %v3241
        %v3359 = vtanh.pop %v3243
        %v3360 = vtanh.pop %v3246
        %v3361 = vtanh.pop %v3248
        %v3362 = vtanh.pop %v3251
        %v3363 = vtanh.pop %v3253
        %v3364 = vtanh.pop %v3256
        %v3365 = vtanh.pop %v3258
        %v3366 = vtanh.pop %v3261
        %v3367 = vtanh.pop %v3263
        %v3368 = vtanh.pop %v3266
        %v3369 = vtanh.pop %v3268
        %v3370 = vtanh.pop %v3271
        %v3371 = vtanh.pop %v3273
        %v3372 = vtanh.pop %v3276
        %v3373 = vtanh.pop %v3278
        %v3374 = vtanh.pop %v3281
        %v3375 = vtanh.pop %v3283
        %v3376 = vtanh.pop %v3286
        %v3377 = vtanh.pop %v3288
        %v3378 = vtanh.pop %v3291
        %v3379 = vtanh.pop %v3293
        %v3380 = vtanh.pop %v3296
        %v3381 = vtanh.pop %v3298
        %v3382 = vtanh.pop %v3301
        %v3383 = vtanh.pop %v3303
        %v3384 = vtanh.pop %v3306
        %v3385 = vtanh.pop %v3308
        %v3386 = vtanh.pop %v3311
        %v3387 = vtanh.pop %v3313
        %v3388 = vtanh.pop %v3316
        %v3389 = vtanh.pop %v3318
        %v3390 = vtanh.pop %v3321
        %v3391 = vtanh.pop %v3323
        %v3392 = vtanh.pop %v3326
        %v3393 = vtanh.pop %v3328
        %v3394 = vpack.c.bf16 %v3331, %v3330
        %v3395 = vpack.c.bf16 %v3333, %v3332
        %v3396 = vpack.c.bf16 %v3335, %v3334
        %v3397 = vpack.c.bf16 %v3337, %v3336
        %v3398 = vpack.c.bf16 %v3339, %v3338
        %v3399 = vpack.c.bf16 %v3341, %v3340
        %v3400 = vpack.c.bf16 %v3343, %v3342
        %v3401 = vpack.c.bf16 %v3345, %v3344
        %v3402 = vpack.c.bf16 %v3347, %v3346
        %v3403 = vpack.c.bf16 %v3349, %v3348
        %v3404 = vpack.c.bf16 %v3351, %v3350
        %v3405 = vpack.c.bf16 %v3353, %v3352
        %v3406 = vpack.c.bf16 %v3355, %v3354
        %v3407 = vpack.c.bf16 %v3357, %v3356
        %v3408 = vpack.c.bf16 %v3359, %v3358
        %v3409 = vpack.c.bf16 %v3361, %v3360
        %v3410 = vpack.c.bf16 %v3363, %v3362
        %v3411 = vpack.c.bf16 %v3365, %v3364
        %v3412 = vpack.c.bf16 %v3367, %v3366
        %v3413 = vpack.c.bf16 %v3369, %v3368
        %v3414 = vpack.c.bf16 %v3371, %v3370
        %v3415 = vpack.c.bf16 %v3373, %v3372
        %v3416 = vpack.c.bf16 %v3375, %v3374
        %v3417 = vpack.c.bf16 %v3377, %v3376
        %v3418 = vpack.c.bf16 %v3379, %v3378
        %v3419 = vpack.c.bf16 %v3381, %v3380
        %v3420 = vpack.c.bf16 %v3383, %v3382
        %v3421 = vpack.c.bf16 %v3385, %v3384
        %v3422 = vpack.c.bf16 %v3387, %v3386
        %v3423 = vpack.c.bf16 %v3389, %v3388
        %v3424 = vpack.c.bf16 %v3391, %v3390
        %v3425 = vpack.c.bf16 %v3393, %v3392
        %v3426 = vld [vmem:[%s19] sm:$0xf]
        %v3427 = vld [vmem:[%s19 + $0x4] sm:$0xf]
        %v3428 = vld [vmem:[%s19 + $0x8] sm:$0xf]
        %v3429 = vld [vmem:[%s19 + $0xc] sm:$0xf]
        %v3430 = vld [vmem:[%s19 + $0x10] sm:$0xf]
        %v3431 = vld [vmem:[%s19 + $0x14] sm:$0xf]
        %v3432 = vld [vmem:[%s19 + $0x18] sm:$0xf]
        %v3433 = vld [vmem:[%s19 + $0x1c] sm:$0xf]
        %v3434 = vld [vmem:[%s19 + $0x20] sm:$0xf]
        %v3435 = vld [vmem:[%s19 + $0x24] sm:$0xf]
        %v3436 = vld [vmem:[%s19 + $0x28] sm:$0xf]
        %v3437 = vld [vmem:[%s19 + $0x2c] sm:$0xf]
        %v3438 = vld [vmem:[%s19 + $0x30] sm:$0xf]
        %v3439 = vld [vmem:[%s19 + $0x34] sm:$0xf]
        %v3440 = vld [vmem:[%s19 + $0x38] sm:$0xf]
        %v3441 = vld [vmem:[%s19 + $0x3c] sm:$0xf]
        %v3442 = vld [vmem:[%s20] sm:$0x1]
        %v3444 = vperm.slane %v3442, 0
        %v3462 = vunpack.c.l.b16 %v3426
        %v3463 = vunpack.c.l.b16 %v3427
        %v3464 = vunpack.c.l.b16 %v3428
        %v3465 = vunpack.c.l.b16 %v3429
        %v3466 = vunpack.c.l.b16 %v3430
        %v3467 = vunpack.c.l.b16 %v3431
        %v3468 = vunpack.c.l.b16 %v3432
        %v3469 = vunpack.c.l.b16 %v3433
        %v3470 = vunpack.c.l.b16 %v3434
        %v3471 = vunpack.c.l.b16 %v3435
        %v3472 = vunpack.c.l.b16 %v3436
        %v3473 = vunpack.c.l.b16 %v3437
        %v3474 = vunpack.c.l.b16 %v3438
        %v3475 = vunpack.c.l.b16 %v3439
        %v3476 = vunpack.c.l.b16 %v3440
        %v3477 = vunpack.c.l.b16 %v3441
        %v3478 = vpack.c.b16 %v3463, %v3462
        %v3479 = vpack.c.b16 %v3465, %v3464
        %v3480 = vpack.c.b16 %v3467, %v3466
        %v3481 = vpack.c.b16 %v3469, %v3468
        %v3482 = vpack.c.b16 %v3471, %v3470
        %v3483 = vpack.c.b16 %v3473, %v3472
        %v3484 = vpack.c.b16 %v3475, %v3474
        %v3485 = vpack.c.b16 %v3477, %v3476
        %3494 = vmatpush.bf16.msra.mxu0 %v3485
        %3495 = vmatpush.bf16.msra.mxu0 %v3484
        %3496 = vmatpush.bf16.msra.mxu0 %v3483
        %3497 = vmatpush.bf16.msra.mxu0 %v3482
        %3498 = vmatpush.bf16.msra.mxu0 %v3481
        %3499 = vmatpush.bf16.msra.mxu0 %v3480
        %3500 = vmatpush.bf16.msra.mxu0 %v3479
        %3501 = vmatpush.bf16.msra.mxu0 %v3478
        %3502 = vmatmul.bf16.gmra.mxu0 %v3394
        %v3503 = vpop.f32.mrf.mxu0
        %v3504 = vadd.f32 %v3444, %v3503
        %v3505 = vpop.f32.mrf.mxu0
        %v3506 = vadd.f32 %v3444, %v3505
        %3507 = vmatmul.bf16.gmra.mxu0 %v3395
        %v3508 = vpop.f32.mrf.mxu0
        %v3509 = vadd.f32 %v3444, %v3508
        %v3510 = vpop.f32.mrf.mxu0
        %v3511 = vadd.f32 %v3444, %v3510
        %3512 = vmatmul.bf16.gmra.mxu0 %v3396
        %v3513 = vpop.f32.mrf.mxu0
        %v3514 = vadd.f32 %v3444, %v3513
        %v3515 = vpop.f32.mrf.mxu0
        %v3516 = vadd.f32 %v3444, %v3515
        %3517 = vmatmul.bf16.gmra.mxu0 %v3397
        %v3518 = vpop.f32.mrf.mxu0
        %v3519 = vadd.f32 %v3444, %v3518
        %v3520 = vpop.f32.mrf.mxu0
        %v3521 = vadd.f32 %v3444, %v3520
        %3522 = vmatmul.bf16.gmra.mxu0 %v3398
        %v3523 = vpop.f32.mrf.mxu0
        %v3524 = vadd.f32 %v3444, %v3523
        %v3525 = vpop.f32.mrf.mxu0
        %v3526 = vadd.f32 %v3444, %v3525
        %3527 = vmatmul.bf16.gmra.mxu0 %v3399
        %v3528 = vpop.f32.mrf.mxu0
        %v3529 = vadd.f32 %v3444, %v3528
        %v3530 = vpop.f32.mrf.mxu0
        %v3531 = vadd.f32 %v3444, %v3530
        %3532 = vmatmul.bf16.gmra.mxu0 %v3400
        %v3533 = vpop.f32.mrf.mxu0
        %v3534 = vadd.f32 %v3444, %v3533
        %v3535 = vpop.f32.mrf.mxu0
        %v3536 = vadd.f32 %v3444, %v3535
        %3537 = vmatmul.bf16.gmra.mxu0 %v3401
        %v3538 = vpop.f32.mrf.mxu0
        %v3539 = vadd.f32 %v3444, %v3538
        %v3540 = vpop.f32.mrf.mxu0
        %v3541 = vadd.f32 %v3444, %v3540
        %3542 = vmatmul.bf16.gmra.mxu0 %v3402
        %v3543 = vpop.f32.mrf.mxu0
        %v3544 = vadd.f32 %v3444, %v3543
        %v3545 = vpop.f32.mrf.mxu0
        %v3546 = vadd.f32 %v3444, %v3545
        %3547 = vmatmul.bf16.gmra.mxu0 %v3403
        %v3548 = vpop.f32.mrf.mxu0
        %v3549 = vadd.f32 %v3444, %v3548
        %v3550 = vpop.f32.mrf.mxu0
        %v3551 = vadd.f32 %v3444, %v3550
        %3552 = vmatmul.bf16.gmra.mxu0 %v3404
        %v3553 = vpop.f32.mrf.mxu0
        %v3554 = vadd.f32 %v3444, %v3553
        %v3555 = vpop.f32.mrf.mxu0
        %v3556 = vadd.f32 %v3444, %v3555
        %3557 = vmatmul.bf16.gmra.mxu0 %v3405
        %v3558 = vpop.f32.mrf.mxu0
        %v3559 = vadd.f32 %v3444, %v3558
        %v3560 = vpop.f32.mrf.mxu0
        %v3561 = vadd.f32 %v3444, %v3560
        %3562 = vmatmul.bf16.gmra.mxu0 %v3406
        %v3563 = vpop.f32.mrf.mxu0
        %v3564 = vadd.f32 %v3444, %v3563
        %v3565 = vpop.f32.mrf.mxu0
        %v3566 = vadd.f32 %v3444, %v3565
        %3567 = vmatmul.bf16.gmra.mxu0 %v3407
        %v3568 = vpop.f32.mrf.mxu0
        %v3569 = vadd.f32 %v3444, %v3568
        %v3570 = vpop.f32.mrf.mxu0
        %v3571 = vadd.f32 %v3444, %v3570
        %3572 = vmatmul.bf16.gmra.mxu0 %v3408
        %v3573 = vpop.f32.mrf.mxu0
        %v3574 = vadd.f32 %v3444, %v3573
        %v3575 = vpop.f32.mrf.mxu0
        %v3576 = vadd.f32 %v3444, %v3575
        %3577 = vmatmul.bf16.gmra.mxu0 %v3409
        %v3578 = vpop.f32.mrf.mxu0
        %v3579 = vadd.f32 %v3444, %v3578
        %v3580 = vpop.f32.mrf.mxu0
        %v3581 = vadd.f32 %v3444, %v3580
        %3582 = vmatmul.bf16.gmra.mxu0 %v3410
        %v3583 = vpop.f32.mrf.mxu0
        %v3584 = vadd.f32 %v3444, %v3583
        %v3585 = vpop.f32.mrf.mxu0
        %v3586 = vadd.f32 %v3444, %v3585
        %3587 = vmatmul.bf16.gmra.mxu0 %v3411
        %v3588 = vpop.f32.mrf.mxu0
        %v3589 = vadd.f32 %v3444, %v3588
        %v3590 = vpop.f32.mrf.mxu0
        %v3591 = vadd.f32 %v3444, %v3590
        %3592 = vmatmul.bf16.gmra.mxu0 %v3412
        %v3593 = vpop.f32.mrf.mxu0
        %v3594 = vadd.f32 %v3444, %v3593
        %v3595 = vpop.f32.mrf.mxu0
        %v3596 = vadd.f32 %v3444, %v3595
        %3597 = vmatmul.bf16.gmra.mxu0 %v3413
        %v3598 = vpop.f32.mrf.mxu0
        %v3599 = vadd.f32 %v3444, %v3598
        %v3600 = vpop.f32.mrf.mxu0
        %v3601 = vadd.f32 %v3444, %v3600
        %3602 = vmatmul.bf16.gmra.mxu0 %v3414
        %v3603 = vpop.f32.mrf.mxu0
        %v3604 = vadd.f32 %v3444, %v3603
        %v3605 = vpop.f32.mrf.mxu0
        %v3606 = vadd.f32 %v3444, %v3605
        %3607 = vmatmul.bf16.gmra.mxu0 %v3415
        %v3608 = vpop.f32.mrf.mxu0
        %v3609 = vadd.f32 %v3444, %v3608
        %v3610 = vpop.f32.mrf.mxu0
        %v3611 = vadd.f32 %v3444, %v3610
        %3612 = vmatmul.bf16.gmra.mxu0 %v3416
        %v3613 = vpop.f32.mrf.mxu0
        %v3614 = vadd.f32 %v3444, %v3613
        %v3615 = vpop.f32.mrf.mxu0
        %v3616 = vadd.f32 %v3444, %v3615
        %3617 = vmatmul.bf16.gmra.mxu0 %v3417
        %v3618 = vpop.f32.mrf.mxu0
        %v3619 = vadd.f32 %v3444, %v3618
        %v3620 = vpop.f32.mrf.mxu0
        %v3621 = vadd.f32 %v3444, %v3620
        %3622 = vmatmul.bf16.gmra.mxu0 %v3418
        %v3623 = vpop.f32.mrf.mxu0
        %v3624 = vadd.f32 %v3444, %v3623
        %v3625 = vpop.f32.mrf.mxu0
        %v3626 = vadd.f32 %v3444, %v3625
        %3627 = vmatmul.bf16.gmra.mxu0 %v3419
        %v3628 = vpop.f32.mrf.mxu0
        %v3629 = vadd.f32 %v3444, %v3628
        %v3630 = vpop.f32.mrf.mxu0
        %v3631 = vadd.f32 %v3444, %v3630
        %3632 = vmatmul.bf16.gmra.mxu0 %v3420
        %v3633 = vpop.f32.mrf.mxu0
        %v3634 = vadd.f32 %v3444, %v3633
        %v3635 = vpop.f32.mrf.mxu0
        %v3636 = vadd.f32 %v3444, %v3635
        %3637 = vmatmul.bf16.gmra.mxu0 %v3421
        %v3638 = vpop.f32.mrf.mxu0
        %v3639 = vadd.f32 %v3444, %v3638
        %v3640 = vpop.f32.mrf.mxu0
        %v3641 = vadd.f32 %v3444, %v3640
        %3642 = vmatmul.bf16.gmra.mxu0 %v3422
        %v3643 = vpop.f32.mrf.mxu0
        %v3644 = vadd.f32 %v3444, %v3643
        %v3645 = vpop.f32.mrf.mxu0
        %v3646 = vadd.f32 %v3444, %v3645
        %3647 = vmatmul.bf16.gmra.mxu0 %v3423
        %v3648 = vpop.f32.mrf.mxu0
        %v3649 = vadd.f32 %v3444, %v3648
        %v3650 = vpop.f32.mrf.mxu0
        %v3651 = vadd.f32 %v3444, %v3650
        %3652 = vmatmul.bf16.gmra.mxu0 %v3424
        %v3653 = vpop.f32.mrf.mxu0
        %v3654 = vadd.f32 %v3444, %v3653
        %v3655 = vpop.f32.mrf.mxu0
        %v3656 = vadd.f32 %v3444, %v3655
        %3657 = vmatmul.bf16.gmra.mxu0 %v3425
        %v3658 = vpop.f32.mrf.mxu0
        %v3659 = vadd.f32 %v3444, %v3658
        %v3660 = vpop.f32.mrf.mxu0
        %v3661 = vadd.f32 %v3444, %v3660
        %3662 = vdwg.mxu0
        %v3663 = vld [vmem:[%s5] sm:$0xf]
        %v3664 = vperm.slane %v3663, 0
        %v3665 = vmul.f32 %v726, %v3664
        %v3666 = vmul.f32 %v731, %v3664
        %v3667 = vmul.f32 %v736, %v3664
        %v3668 = vmul.f32 %v741, %v3664
        %v3669 = vmul.f32 %v746, %v3664
        %v3670 = vmul.f32 %v751, %v3664
        %v3671 = vmul.f32 %v756, %v3664
        %v3672 = vmul.f32 %v761, %v3664
        %v3673 = vmul.f32 %v766, %v3664
        %v3674 = vmul.f32 %v771, %v3664
        %v3675 = vmul.f32 %v776, %v3664
        %v3676 = vmul.f32 %v781, %v3664
        %v3677 = vmul.f32 %v786, %v3664
        %v3678 = vmul.f32 %v791, %v3664
        %v3679 = vmul.f32 %v796, %v3664
        %v3680 = vmul.f32 %v801, %v3664
        %v3681 = vmul.f32 %v806, %v3664
        %v3682 = vmul.f32 %v811, %v3664
        %v3683 = vmul.f32 %v816, %v3664
        %v3684 = vmul.f32 %v821, %v3664
        %v3685 = vmul.f32 %v826, %v3664
        %v3686 = vmul.f32 %v831, %v3664
        %v3687 = vmul.f32 %v836, %v3664
        %v3688 = vmul.f32 %v841, %v3664
        %v3689 = vmul.f32 %v846, %v3664
        %v3690 = vmul.f32 %v851, %v3664
        %v3691 = vmul.f32 %v856, %v3664
        %v3692 = vmul.f32 %v861, %v3664
        %v3693 = vmul.f32 %v866, %v3664
        %v3694 = vmul.f32 %v871, %v3664
        %v3695 = vmul.f32 %v876, %v3664
        %v3696 = vmul.f32 %v881, %v3664
        %v3697 = vmul.f32 %v886, %v3664
        %v3698 = vmul.f32 %v891, %v3664
        %v3699 = vmul.f32 %v896, %v3664
        %v3700 = vmul.f32 %v901, %v3664
        %v3701 = vmul.f32 %v906, %v3664
        %v3702 = vmul.f32 %v911, %v3664
        %v3703 = vmul.f32 %v916, %v3664
        %v3704 = vmul.f32 %v921, %v3664
        %v3705 = vmul.f32 %v926, %v3664
        %v3706 = vmul.f32 %v931, %v3664
        %v3707 = vmul.f32 %v936, %v3664
        %v3708 = vmul.f32 %v941, %v3664
        %v3709 = vmul.f32 %v946, %v3664
        %v3710 = vmul.f32 %v951, %v3664
        %v3711 = vmul.f32 %v956, %v3664
        %v3712 = vmul.f32 %v961, %v3664
        %v3713 = vmul.f32 %v966, %v3664
        %v3714 = vmul.f32 %v971, %v3664
        %v3715 = vmul.f32 %v976, %v3664
        %v3716 = vmul.f32 %v981, %v3664
        %v3717 = vmul.f32 %v986, %v3664
        %v3718 = vmul.f32 %v991, %v3664
        %v3719 = vmul.f32 %v996, %v3664
        %v3720 = vmul.f32 %v1001, %v3664
        %v3721 = vmul.f32 %v1006, %v3664
        %v3722 = vmul.f32 %v1011, %v3664
        %v3723 = vmul.f32 %v1016, %v3664
        %v3724 = vmul.f32 %v1021, %v3664
        %v3725 = vmul.f32 %v1026, %v3664
        %v3726 = vmul.f32 %v1031, %v3664
        %v3727 = vmul.f32 %v1036, %v3664
        %v3728 = vmul.f32 %v1041, %v3664
        %v3729 = vld [vmem:[%s6] sm:$0x1]
        %v3731 = vperm.slane %v3729, 0
        %v3733 = vadd.f32 %v3665, %v3731
        %v3734 = vadd.f32 %v3666, %v3731
        %v3735 = vadd.f32 %v3667, %v3731
        %v3736 = vadd.f32 %v3668, %v3731
        %v3737 = vadd.f32 %v3669, %v3731
        %v3738 = vadd.f32 %v3670, %v3731
        %v3739 = vadd.f32 %v3671, %v3731
        %v3740 = vadd.f32 %v3672, %v3731
        %v3741 = vadd.f32 %v3673, %v3731
        %v3742 = vadd.f32 %v3674, %v3731
        %v3743 = vadd.f32 %v3675, %v3731
        %v3744 = vadd.f32 %v3676, %v3731
        %v3745 = vadd.f32 %v3677, %v3731
        %v3746 = vadd.f32 %v3678, %v3731
        %v3747 = vadd.f32 %v3679, %v3731
        %v3748 = vadd.f32 %v3680, %v3731
        %v3749 = vadd.f32 %v3681, %v3731
        %v3750 = vadd.f32 %v3682, %v3731
        %v3751 = vadd.f32 %v3683, %v3731
        %v3752 = vadd.f32 %v3684, %v3731
        %v3753 = vadd.f32 %v3685, %v3731
        %v3754 = vadd.f32 %v3686, %v3731
        %v3755 = vadd.f32 %v3687, %v3731
        %v3756 = vadd.f32 %v3688, %v3731
        %v3757 = vadd.f32 %v3689, %v3731
        %v3758 = vadd.f32 %v3690, %v3731
        %v3759 = vadd.f32 %v3691, %v3731
        %v3760 = vadd.f32 %v3692, %v3731
        %v3761 = vadd.f32 %v3693, %v3731
        %v3762 = vadd.f32 %v3694, %v3731
        %v3763 = vadd.f32 %v3695, %v3731
        %v3764 = vadd.f32 %v3696, %v3731
        %v3765 = vadd.f32 %v3697, %v3731
        %v3766 = vadd.f32 %v3698, %v3731
        %v3767 = vadd.f32 %v3699, %v3731
        %v3768 = vadd.f32 %v3700, %v3731
        %v3769 = vadd.f32 %v3701, %v3731
        %v3770 = vadd.f32 %v3702, %v3731
        %v3771 = vadd.f32 %v3703, %v3731
        %v3772 = vadd.f32 %v3704, %v3731
        %v3773 = vadd.f32 %v3705, %v3731
        %v3774 = vadd.f32 %v3706, %v3731
        %v3775 = vadd.f32 %v3707, %v3731
        %v3776 = vadd.f32 %v3708, %v3731
        %v3777 = vadd.f32 %v3709, %v3731
        %v3778 = vadd.f32 %v3710, %v3731
        %v3779 = vadd.f32 %v3711, %v3731
        %v3780 = vadd.f32 %v3712, %v3731
        %v3781 = vadd.f32 %v3713, %v3731
        %v3782 = vadd.f32 %v3714, %v3731
        %v3783 = vadd.f32 %v3715, %v3731
        %v3784 = vadd.f32 %v3716, %v3731
        %v3785 = vadd.f32 %v3717, %v3731
        %v3786 = vadd.f32 %v3718, %v3731
        %v3787 = vadd.f32 %v3719, %v3731
        %v3788 = vadd.f32 %v3720, %v3731
        %v3789 = vadd.f32 %v3721, %v3731
        %v3790 = vadd.f32 %v3722, %v3731
        %v3791 = vadd.f32 %v3723, %v3731
        %v3792 = vadd.f32 %v3724, %v3731
        %v3793 = vadd.f32 %v3725, %v3731
        %v3794 = vadd.f32 %v3726, %v3731
        %v3795 = vadd.f32 %v3727, %v3731
        %v3796 = vadd.f32 %v3728, %v3731
        %v3797 = vperm.slane %v3663, 1
        %v3798 = vmul.f32 %v1178, %v3797
        %v3799 = vmul.f32 %v1182, %v3797
        %v3800 = vmul.f32 %v1186, %v3797
        %v3801 = vmul.f32 %v1190, %v3797
        %v3802 = vmul.f32 %v1194, %v3797
        %v3803 = vmul.f32 %v1198, %v3797
        %v3804 = vmul.f32 %v1202, %v3797
        %v3805 = vmul.f32 %v1206, %v3797
        %v3806 = vmul.f32 %v1210, %v3797
        %v3807 = vmul.f32 %v1214, %v3797
        %v3808 = vmul.f32 %v1218, %v3797
        %v3809 = vmul.f32 %v1222, %v3797
        %v3810 = vmul.f32 %v1226, %v3797
        %v3811 = vmul.f32 %v1230, %v3797
        %v3812 = vmul.f32 %v1234, %v3797
        %v3813 = vmul.f32 %v1238, %v3797
        %v3814 = vmul.f32 %v1242, %v3797
        %v3815 = vmul.f32 %v1246, %v3797
        %v3816 = vmul.f32 %v1250, %v3797
        %v3817 = vmul.f32 %v1254, %v3797
        %v3818 = vmul.f32 %v1258, %v3797
        %v3819 = vmul.f32 %v1262, %v3797
        %v3820 = vmul.f32 %v1266, %v3797
        %v3821 = vmul.f32 %v1270, %v3797
        %v3822 = vmul.f32 %v1274, %v3797
        %v3823 = vmul.f32 %v1278, %v3797
        %v3824 = vmul.f32 %v1282, %v3797
        %v3825 = vmul.f32 %v1286, %v3797
        %v3826 = vmul.f32 %v1290, %v3797
        %v3827 = vmul.f32 %v1294, %v3797
        %v3828 = vmul.f32 %v1298, %v3797
        %v3829 = vmul.f32 %v1302, %v3797
        %v3830 = vmul.f32 %v1306, %v3797
        %v3831 = vmul.f32 %v1310, %v3797
        %v3832 = vmul.f32 %v1314, %v3797
        %v3833 = vmul.f32 %v1318, %v3797
        %v3834 = vmul.f32 %v1322, %v3797
        %v3835 = vmul.f32 %v1326, %v3797
        %v3836 = vmul.f32 %v1330, %v3797
        %v3837 = vmul.f32 %v1334, %v3797
        %v3838 = vmul.f32 %v1338, %v3797
        %v3839 = vmul.f32 %v1342, %v3797
        %v3840 = vmul.f32 %v1346, %v3797
        %v3841 = vmul.f32 %v1350, %v3797
        %v3842 = vmul.f32 %v1354, %v3797
        %v3843 = vmul.f32 %v1358, %v3797
        %v3844 = vmul.f32 %v1362, %v3797
        %v3845 = vmul.f32 %v1366, %v3797
        %v3846 = vmul.f32 %v1370, %v3797
        %v3847 = vmul.f32 %v1374, %v3797
        %v3848 = vmul.f32 %v1378, %v3797
        %v3849 = vmul.f32 %v1382, %v3797
        %v3850 = vmul.f32 %v1386, %v3797
        %v3851 = vmul.f32 %v1390, %v3797
        %v3852 = vmul.f32 %v1394, %v3797
        %v3853 = vmul.f32 %v1398, %v3797
        %v3854 = vmul.f32 %v1402, %v3797
        %v3855 = vmul.f32 %v1406, %v3797
        %v3856 = vmul.f32 %v1410, %v3797
        %v3857 = vmul.f32 %v1414, %v3797
        %v3858 = vmul.f32 %v1418, %v3797
        %v3859 = vmul.f32 %v1422, %v3797
        %v3860 = vmul.f32 %v1426, %v3797
        %v3861 = vmul.f32 %v1430, %v3797
        %v3862 = vadd.f32 %v3733, %v3798
        %v3863 = vadd.f32 %v3734, %v3799
        %v3864 = vadd.f32 %v3735, %v3800
        %v3865 = vadd.f32 %v3736, %v3801
        %v3866 = vadd.f32 %v3737, %v3802
        %v3867 = vadd.f32 %v3738, %v3803
        %v3868 = vadd.f32 %v3739, %v3804
        %v3869 = vadd.f32 %v3740, %v3805
        %v3870 = vadd.f32 %v3741, %v3806
        %v3871 = vadd.f32 %v3742, %v3807
        %v3872 = vadd.f32 %v3743, %v3808
        %v3873 = vadd.f32 %v3744, %v3809
        %v3874 = vadd.f32 %v3745, %v3810
        %v3875 = vadd.f32 %v3746, %v3811
        %v3876 = vadd.f32 %v3747, %v3812
        %v3877 = vadd.f32 %v3748, %v3813
        %v3878 = vadd.f32 %v3749, %v3814
        %v3879 = vadd.f32 %v3750, %v3815
        %v3880 = vadd.f32 %v3751, %v3816
        %v3881 = vadd.f32 %v3752, %v3817
        %v3882 = vadd.f32 %v3753, %v3818
        %v3883 = vadd.f32 %v3754, %v3819
        %v3884 = vadd.f32 %v3755, %v3820
        %v3885 = vadd.f32 %v3756, %v3821
        %v3886 = vadd.f32 %v3757, %v3822
        %v3887 = vadd.f32 %v3758, %v3823
        %v3888 = vadd.f32 %v3759, %v3824
        %v3889 = vadd.f32 %v3760, %v3825
        %v3890 = vadd.f32 %v3761, %v3826
        %v3891 = vadd.f32 %v3762, %v3827
        %v3892 = vadd.f32 %v3763, %v3828
        %v3893 = vadd.f32 %v3764, %v3829
        %v3894 = vadd.f32 %v3765, %v3830
        %v3895 = vadd.f32 %v3766, %v3831
        %v3896 = vadd.f32 %v3767, %v3832
        %v3897 = vadd.f32 %v3768, %v3833
        %v3898 = vadd.f32 %v3769, %v3834
        %v3899 = vadd.f32 %v3770, %v3835
        %v3900 = vadd.f32 %v3771, %v3836
        %v3901 = vadd.f32 %v3772, %v3837
        %v3902 = vadd.f32 %v3773, %v3838
        %v3903 = vadd.f32 %v3774, %v3839
        %v3904 = vadd.f32 %v3775, %v3840
        %v3905 = vadd.f32 %v3776, %v3841
        %v3906 = vadd.f32 %v3777, %v3842
        %v3907 = vadd.f32 %v3778, %v3843
        %v3908 = vadd.f32 %v3779, %v3844
        %v3909 = vadd.f32 %v3780, %v3845
        %v3910 = vadd.f32 %v3781, %v3846
        %v3911 = vadd.f32 %v3782, %v3847
        %v3912 = vadd.f32 %v3783, %v3848
        %v3913 = vadd.f32 %v3784, %v3849
        %v3914 = vadd.f32 %v3785, %v3850
        %v3915 = vadd.f32 %v3786, %v3851
        %v3916 = vadd.f32 %v3787, %v3852
        %v3917 = vadd.f32 %v3788, %v3853
        %v3918 = vadd.f32 %v3789, %v3854
        %v3919 = vadd.f32 %v3790, %v3855
        %v3920 = vadd.f32 %v3791, %v3856
        %v3921 = vadd.f32 %v3792, %v3857
        %v3922 = vadd.f32 %v3793, %v3858
        %v3923 = vadd.f32 %v3794, %v3859
        %v3924 = vadd.f32 %v3795, %v3860
        %v3925 = vadd.f32 %v3796, %v3861
        %v3926 = vperm.slane %v3663, 2
        %v3927 = vmul.f32 %v1563, %v3926
        %v3928 = vmul.f32 %v1567, %v3926
        %v3929 = vmul.f32 %v1571, %v3926
        %v3930 = vmul.f32 %v1575, %v3926
        %v3931 = vmul.f32 %v1579, %v3926
        %v3932 = vmul.f32 %v1583, %v3926
        %v3933 = vmul.f32 %v1587, %v3926
        %v3934 = vmul.f32 %v1591, %v3926
        %v3935 = vmul.f32 %v1595, %v3926
        %v3936 = vmul.f32 %v1599, %v3926
        %v3937 = vmul.f32 %v1603, %v3926
        %v3938 = vmul.f32 %v1607, %v3926
        %v3939 = vmul.f32 %v1611, %v3926
        %v3940 = vmul.f32 %v1615, %v3926
        %v3941 = vmul.f32 %v1619, %v3926
        %v3942 = vmul.f32 %v1623, %v3926
        %v3943 = vmul.f32 %v1627, %v3926
        %v3944 = vmul.f32 %v1631, %v3926
        %v3945 = vmul.f32 %v1635, %v3926
        %v3946 = vmul.f32 %v1639, %v3926
        %v3947 = vmul.f32 %v1643, %v3926
        %v3948 = vmul.f32 %v1647, %v3926
        %v3949 = vmul.f32 %v1651, %v3926
        %v3950 = vmul.f32 %v1655, %v3926
        %v3951 = vmul.f32 %v1659, %v3926
        %v3952 = vmul.f32 %v1663, %v3926
        %v3953 = vmul.f32 %v1667, %v3926
        %v3954 = vmul.f32 %v1671, %v3926
        %v3955 = vmul.f32 %v1675, %v3926
        %v3956 = vmul.f32 %v1679, %v3926
        %v3957 = vmul.f32 %v1683, %v3926
        %v3958 = vmul.f32 %v1687, %v3926
        %v3959 = vmul.f32 %v1691, %v3926
        %v3960 = vmul.f32 %v1695, %v3926
        %v3961 = vmul.f32 %v1699, %v3926
        %v3962 = vmul.f32 %v1703, %v3926
        %v3963 = vmul.f32 %v1707, %v3926
        %v3964 = vmul.f32 %v1711, %v3926
        %v3965 = vmul.f32 %v1715, %v3926
        %v3966 = vmul.f32 %v1719, %v3926
        %v3967 = vmul.f32 %v1723, %v3926
        %v3968 = vmul.f32 %v1727, %v3926
        %v3969 = vmul.f32 %v1731, %v3926
        %v3970 = vmul.f32 %v1735, %v3926
        %v3971 = vmul.f32 %v1739, %v3926
        %v3972 = vmul.f32 %v1743, %v3926
        %v3973 = vmul.f32 %v1747, %v3926
        %v3974 = vmul.f32 %v1751, %v3926
        %v3975 = vmul.f32 %v1755, %v3926
        %v3976 = vmul.f32 %v1759, %v3926
        %v3977 = vmul.f32 %v1763, %v3926
        %v3978 = vmul.f32 %v1767, %v3926
        %v3979 = vmul.f32 %v1771, %v3926
        %v3980 = vmul.f32 %v1775, %v3926
        %v3981 = vmul.f32 %v1779, %v3926
        %v3982 = vmul.f32 %v1783, %v3926
        %v3983 = vmul.f32 %v1787, %v3926
        %v3984 = vmul.f32 %v1791, %v3926
        %v3985 = vmul.f32 %v1795, %v3926
        %v3986 = vmul.f32 %v1799, %v3926
        %v3987 = vmul.f32 %v1803, %v3926
        %v3988 = vmul.f32 %v1807, %v3926
        %v3989 = vmul.f32 %v1811, %v3926
        %v3990 = vmul.f32 %v1815, %v3926
        %v3991 = vadd.f32 %v3862, %v3927
        %v3992 = vadd.f32 %v3863, %v3928
        %v3993 = vadd.f32 %v3864, %v3929
        %v3994 = vadd.f32 %v3865, %v3930
        %v3995 = vadd.f32 %v3866, %v3931
        %v3996 = vadd.f32 %v3867, %v3932
        %v3997 = vadd.f32 %v3868, %v3933
        %v3998 = vadd.f32 %v3869, %v3934
        %v3999 = vadd.f32 %v3870, %v3935
        %v4000 = vadd.f32 %v3871, %v3936
        %v4001 = vadd.f32 %v3872, %v3937
        %v4002 = vadd.f32 %v3873, %v3938
        %v4003 = vadd.f32 %v3874, %v3939
        %v4004 = vadd.f32 %v3875, %v3940
        %v4005 = vadd.f32 %v3876, %v3941
        %v4006 = vadd.f32 %v3877, %v3942
        %v4007 = vadd.f32 %v3878, %v3943
        %v4008 = vadd.f32 %v3879, %v3944
        %v4009 = vadd.f32 %v3880, %v3945
        %v4010 = vadd.f32 %v3881, %v3946
        %v4011 = vadd.f32 %v3882, %v3947
        %v4012 = vadd.f32 %v3883, %v3948
        %v4013 = vadd.f32 %v3884, %v3949
        %v4014 = vadd.f32 %v3885, %v3950
        %v4015 = vadd.f32 %v3886, %v3951
        %v4016 = vadd.f32 %v3887, %v3952
        %v4017 = vadd.f32 %v3888, %v3953
        %v4018 = vadd.f32 %v3889, %v3954
        %v4019 = vadd.f32 %v3890, %v3955
        %v4020 = vadd.f32 %v3891, %v3956
        %v4021 = vadd.f32 %v3892, %v3957
        %v4022 = vadd.f32 %v3893, %v3958
        %v4023 = vadd.f32 %v3894, %v3959
        %v4024 = vadd.f32 %v3895, %v3960
        %v4025 = vadd.f32 %v3896, %v3961
        %v4026 = vadd.f32 %v3897, %v3962
        %v4027 = vadd.f32 %v3898, %v3963
        %v4028 = vadd.f32 %v3899, %v3964
        %v4029 = vadd.f32 %v3900, %v3965
        %v4030 = vadd.f32 %v3901, %v3966
        %v4031 = vadd.f32 %v3902, %v3967
        %v4032 = vadd.f32 %v3903, %v3968
        %v4033 = vadd.f32 %v3904, %v3969
        %v4034 = vadd.f32 %v3905, %v3970
        %v4035 = vadd.f32 %v3906, %v3971
        %v4036 = vadd.f32 %v3907, %v3972
        %v4037 = vadd.f32 %v3908, %v3973
        %v4038 = vadd.f32 %v3909, %v3974
        %v4039 = vadd.f32 %v3910, %v3975
        %v4040 = vadd.f32 %v3911, %v3976
        %v4041 = vadd.f32 %v3912, %v3977
        %v4042 = vadd.f32 %v3913, %v3978
        %v4043 = vadd.f32 %v3914, %v3979
        %v4044 = vadd.f32 %v3915, %v3980
        %v4045 = vadd.f32 %v3916, %v3981
        %v4046 = vadd.f32 %v3917, %v3982
        %v4047 = vadd.f32 %v3918, %v3983
        %v4048 = vadd.f32 %v3919, %v3984
        %v4049 = vadd.f32 %v3920, %v3985
        %v4050 = vadd.f32 %v3921, %v3986
        %v4051 = vadd.f32 %v3922, %v3987
        %v4052 = vadd.f32 %v3923, %v3988
        %v4053 = vadd.f32 %v3924, %v3989
        %v4054 = vadd.f32 %v3925, %v3990
        %v4055 = vperm.slane %v3663, 3
        %v4056 = vmul.f32 %v1948, %v4055
        %v4057 = vmul.f32 %v1952, %v4055
        %v4058 = vmul.f32 %v1956, %v4055
        %v4059 = vmul.f32 %v1960, %v4055
        %v4060 = vmul.f32 %v1964, %v4055
        %v4061 = vmul.f32 %v1968, %v4055
        %v4062 = vmul.f32 %v1972, %v4055
        %v4063 = vmul.f32 %v1976, %v4055
        %v4064 = vmul.f32 %v1980, %v4055
        %v4065 = vmul.f32 %v1984, %v4055
        %v4066 = vmul.f32 %v1988, %v4055
        %v4067 = vmul.f32 %v1992, %v4055
        %v4068 = vmul.f32 %v1996, %v4055
        %v4069 = vmul.f32 %v2000, %v4055
        %v4070 = vmul.f32 %v2004, %v4055
        %v4071 = vmul.f32 %v2008, %v4055
        %v4072 = vmul.f32 %v2012, %v4055
        %v4073 = vmul.f32 %v2016, %v4055
        %v4074 = vmul.f32 %v2020, %v4055
        %v4075 = vmul.f32 %v2024, %v4055
        %v4076 = vmul.f32 %v2028, %v4055
        %v4077 = vmul.f32 %v2032, %v4055
        %v4078 = vmul.f32 %v2036, %v4055
        %v4079 = vmul.f32 %v2040, %v4055
        %v4080 = vmul.f32 %v2044, %v4055
        %v4081 = vmul.f32 %v2048, %v4055
        %v4082 = vmul.f32 %v2052, %v4055
        %v4083 = vmul.f32 %v2056, %v4055
        %v4084 = vmul.f32 %v2060, %v4055
        %v4085 = vmul.f32 %v2064, %v4055
        %v4086 = vmul.f32 %v2068, %v4055
        %v4087 = vmul.f32 %v2072, %v4055
        %v4088 = vmul.f32 %v2076, %v4055
        %v4089 = vmul.f32 %v2080, %v4055
        %v4090 = vmul.f32 %v2084, %v4055
        %v4091 = vmul.f32 %v2088, %v4055
        %v4092 = vmul.f32 %v2092, %v4055
        %v4093 = vmul.f32 %v2096, %v4055
        %v4094 = vmul.f32 %v2100, %v4055
        %v4095 = vmul.f32 %v2104, %v4055
        %v4096 = vmul.f32 %v2108, %v4055
        %v4097 = vmul.f32 %v2112, %v4055
        %v4098 = vmul.f32 %v2116, %v4055
        %v4099 = vmul.f32 %v2120, %v4055
        %v4100 = vmul.f32 %v2124, %v4055
        %v4101 = vmul.f32 %v2128, %v4055
        %v4102 = vmul.f32 %v2132, %v4055
        %v4103 = vmul.f32 %v2136, %v4055
        %v4104 = vmul.f32 %v2140, %v4055
        %v4105 = vmul.f32 %v2144, %v4055
        %v4106 = vmul.f32 %v2148, %v4055
        %v4107 = vmul.f32 %v2152, %v4055
        %v4108 = vmul.f32 %v2156, %v4055
        %v4109 = vmul.f32 %v2160, %v4055
        %v4110 = vmul.f32 %v2164, %v4055
        %v4111 = vmul.f32 %v2168, %v4055
        %v4112 = vmul.f32 %v2172, %v4055
        %v4113 = vmul.f32 %v2176, %v4055
        %v4114 = vmul.f32 %v2180, %v4055
        %v4115 = vmul.f32 %v2184, %v4055
        %v4116 = vmul.f32 %v2188, %v4055
        %v4117 = vmul.f32 %v2192, %v4055
        %v4118 = vmul.f32 %v2196, %v4055
        %v4119 = vmul.f32 %v2200, %v4055
        %v4120 = vadd.f32 %v3991, %v4056
        %v4121 = vadd.f32 %v3992, %v4057
        %v4122 = vadd.f32 %v3993, %v4058
        %v4123 = vadd.f32 %v3994, %v4059
        %v4124 = vadd.f32 %v3995, %v4060
        %v4125 = vadd.f32 %v3996, %v4061
        %v4126 = vadd.f32 %v3997, %v4062
        %v4127 = vadd.f32 %v3998, %v4063
        %v4128 = vadd.f32 %v3999, %v4064
        %v4129 = vadd.f32 %v4000, %v4065
        %v4130 = vadd.f32 %v4001, %v4066
        %v4131 = vadd.f32 %v4002, %v4067
        %v4132 = vadd.f32 %v4003, %v4068
        %v4133 = vadd.f32 %v4004, %v4069
        %v4134 = vadd.f32 %v4005, %v4070
        %v4135 = vadd.f32 %v4006, %v4071
        %v4136 = vadd.f32 %v4007, %v4072
        %v4137 = vadd.f32 %v4008, %v4073
        %v4138 = vadd.f32 %v4009, %v4074
        %v4139 = vadd.f32 %v4010, %v4075
        %v4140 = vadd.f32 %v4011, %v4076
        %v4141 = vadd.f32 %v4012, %v4077
        %v4142 = vadd.f32 %v4013, %v4078
        %v4143 = vadd.f32 %v4014, %v4079
        %v4144 = vadd.f32 %v4015, %v4080
        %v4145 = vadd.f32 %v4016, %v4081
        %v4146 = vadd.f32 %v4017, %v4082
        %v4147 = vadd.f32 %v4018, %v4083
        %v4148 = vadd.f32 %v4019, %v4084
        %v4149 = vadd.f32 %v4020, %v4085
        %v4150 = vadd.f32 %v4021, %v4086
        %v4151 = vadd.f32 %v4022, %v4087
        %v4152 = vadd.f32 %v4023, %v4088
        %v4153 = vadd.f32 %v4024, %v4089
        %v4154 = vadd.f32 %v4025, %v4090
        %v4155 = vadd.f32 %v4026, %v4091
        %v4156 = vadd.f32 %v4027, %v4092
        %v4157 = vadd.f32 %v4028, %v4093
        %v4158 = vadd.f32 %v4029, %v4094
        %v4159 = vadd.f32 %v4030, %v4095
        %v4160 = vadd.f32 %v4031, %v4096
        %v4161 = vadd.f32 %v4032, %v4097
        %v4162 = vadd.f32 %v4033, %v4098
        %v4163 = vadd.f32 %v4034, %v4099
        %v4164 = vadd.f32 %v4035, %v4100
        %v4165 = vadd.f32 %v4036, %v4101
        %v4166 = vadd.f32 %v4037, %v4102
        %v4167 = vadd.f32 %v4038, %v4103
        %v4168 = vadd.f32 %v4039, %v4104
        %v4169 = vadd.f32 %v4040, %v4105
        %v4170 = vadd.f32 %v4041, %v4106
        %v4171 = vadd.f32 %v4042, %v4107
        %v4172 = vadd.f32 %v4043, %v4108
        %v4173 = vadd.f32 %v4044, %v4109
        %v4174 = vadd.f32 %v4045, %v4110
        %v4175 = vadd.f32 %v4046, %v4111
        %v4176 = vadd.f32 %v4047, %v4112
        %v4177 = vadd.f32 %v4048, %v4113
        %v4178 = vadd.f32 %v4049, %v4114
        %v4179 = vadd.f32 %v4050, %v4115
        %v4180 = vadd.f32 %v4051, %v4116
        %v4181 = vadd.f32 %v4052, %v4117
        %v4182 = vadd.f32 %v4053, %v4118
        %v4183 = vadd.f32 %v4054, %v4119
        %v4184 = vtanh.pop %v4120
        %v4185 = vtanh.pop %v4121
        %v4186 = vtanh.pop %v4122
        %v4187 = vtanh.pop %v4123
        %v4188 = vtanh.pop %v4124
        %v4189 = vtanh.pop %v4125
        %v4190 = vtanh.pop %v4126
        %v4191 = vtanh.pop %v4127
        %v4192 = vtanh.pop %v4128
        %v4193 = vtanh.pop %v4129
        %v4194 = vtanh.pop %v4130
        %v4195 = vtanh.pop %v4131
        %v4196 = vtanh.pop %v4132
        %v4197 = vtanh.pop %v4133
        %v4198 = vtanh.pop %v4134
        %v4199 = vtanh.pop %v4135
        %v4200 = vtanh.pop %v4136
        %v4201 = vtanh.pop %v4137
        %v4202 = vtanh.pop %v4138
        %v4203 = vtanh.pop %v4139
        %v4204 = vtanh.pop %v4140
        %v4205 = vtanh.pop %v4141
        %v4206 = vtanh.pop %v4142
        %v4207 = vtanh.pop %v4143
        %v4208 = vtanh.pop %v4144
        %v4209 = vtanh.pop %v4145
        %v4210 = vtanh.pop %v4146
        %v4211 = vtanh.pop %v4147
        %v4212 = vtanh.pop %v4148
        %v4213 = vtanh.pop %v4149
        %v4214 = vtanh.pop %v4150
        %v4215 = vtanh.pop %v4151
        %v4216 = vtanh.pop %v4152
        %v4217 = vtanh.pop %v4153
        %v4218 = vtanh.pop %v4154
        %v4219 = vtanh.pop %v4155
        %v4220 = vtanh.pop %v4156
        %v4221 = vtanh.pop %v4157
        %v4222 = vtanh.pop %v4158
        %v4223 = vtanh.pop %v4159
        %v4224 = vtanh.pop %v4160
        %v4225 = vtanh.pop %v4161
        %v4226 = vtanh.pop %v4162
        %v4227 = vtanh.pop %v4163
        %v4228 = vtanh.pop %v4164
        %v4229 = vtanh.pop %v4165
        %v4230 = vtanh.pop %v4166
        %v4231 = vtanh.pop %v4167
        %v4232 = vtanh.pop %v4168
        %v4233 = vtanh.pop %v4169
        %v4234 = vtanh.pop %v4170
        %v4235 = vtanh.pop %v4171
        %v4236 = vtanh.pop %v4172
        %v4237 = vtanh.pop %v4173
        %v4238 = vtanh.pop %v4174
        %v4239 = vtanh.pop %v4175
        %v4240 = vtanh.pop %v4176
        %v4241 = vtanh.pop %v4177
        %v4242 = vtanh.pop %v4178
        %v4243 = vtanh.pop %v4179
        %v4244 = vtanh.pop %v4180
        %v4245 = vtanh.pop %v4181
        %v4246 = vtanh.pop %v4182
        %v4247 = vtanh.pop %v4183
        %v4248 = vpack.c.bf16 %v4185, %v4184
        %v4249 = vpack.c.bf16 %v4187, %v4186
        %v4250 = vpack.c.bf16 %v4189, %v4188
        %v4251 = vpack.c.bf16 %v4191, %v4190
        %v4252 = vpack.c.bf16 %v4193, %v4192
        %v4253 = vpack.c.bf16 %v4195, %v4194
        %v4254 = vpack.c.bf16 %v4197, %v4196
        %v4255 = vpack.c.bf16 %v4199, %v4198
        %v4256 = vpack.c.bf16 %v4201, %v4200
        %v4257 = vpack.c.bf16 %v4203, %v4202
        %v4258 = vpack.c.bf16 %v4205, %v4204
        %v4259 = vpack.c.bf16 %v4207, %v4206
        %v4260 = vpack.c.bf16 %v4209, %v4208
        %v4261 = vpack.c.bf16 %v4211, %v4210
        %v4262 = vpack.c.bf16 %v4213, %v4212
        %v4263 = vpack.c.bf16 %v4215, %v4214
        %v4264 = vpack.c.bf16 %v4217, %v4216
        %v4265 = vpack.c.bf16 %v4219, %v4218
        %v4266 = vpack.c.bf16 %v4221, %v4220
        %v4267 = vpack.c.bf16 %v4223, %v4222
        %v4268 = vpack.c.bf16 %v4225, %v4224
        %v4269 = vpack.c.bf16 %v4227, %v4226
        %v4270 = vpack.c.bf16 %v4229, %v4228
        %v4271 = vpack.c.bf16 %v4231, %v4230
        %v4272 = vpack.c.bf16 %v4233, %v4232
        %v4273 = vpack.c.bf16 %v4235, %v4234
        %v4274 = vpack.c.bf16 %v4237, %v4236
        %v4275 = vpack.c.bf16 %v4239, %v4238
        %v4276 = vpack.c.bf16 %v4241, %v4240
        %v4277 = vpack.c.bf16 %v4243, %v4242
        %v4278 = vpack.c.bf16 %v4245, %v4244
        %v4279 = vpack.c.bf16 %v4247, %v4246
        %v4280 = vld [vmem:[%s7] sm:$0xf]
        %v4281 = vld [vmem:[%s7 + $0x4] sm:$0xf]
        %v4282 = vld [vmem:[%s7 + $0x8] sm:$0xf]
        %v4283 = vld [vmem:[%s7 + $0xc] sm:$0xf]
        %v4284 = vld [vmem:[%s7 + $0x10] sm:$0xf]
        %v4285 = vld [vmem:[%s7 + $0x14] sm:$0xf]
        %v4286 = vld [vmem:[%s7 + $0x18] sm:$0xf]
        %v4287 = vld [vmem:[%s7 + $0x1c] sm:$0xf]
        %v4288 = vld [vmem:[%s7 + $0x20] sm:$0xf]
        %v4289 = vld [vmem:[%s7 + $0x24] sm:$0xf]
        %v4290 = vld [vmem:[%s7 + $0x28] sm:$0xf]
        %v4291 = vld [vmem:[%s7 + $0x2c] sm:$0xf]
        %v4292 = vld [vmem:[%s7 + $0x30] sm:$0xf]
        %v4293 = vld [vmem:[%s7 + $0x34] sm:$0xf]
        %v4294 = vld [vmem:[%s7 + $0x38] sm:$0xf]
        %v4295 = vld [vmem:[%s7 + $0x3c] sm:$0xf]
        %v4296 = vld [vmem:[%s8] sm:$0x1]
        %v4298 = vperm.slane %v4296, 0
        %v4316 = vunpack.c.l.b16 %v4280
        %v4317 = vunpack.c.l.b16 %v4281
        %v4318 = vunpack.c.l.b16 %v4282
        %v4319 = vunpack.c.l.b16 %v4283
        %v4320 = vunpack.c.l.b16 %v4284
        %v4321 = vunpack.c.l.b16 %v4285
        %v4322 = vunpack.c.l.b16 %v4286
        %v4323 = vunpack.c.l.b16 %v4287
        %v4324 = vunpack.c.l.b16 %v4288
        %v4325 = vunpack.c.l.b16 %v4289
        %v4326 = vunpack.c.l.b16 %v4290
        %v4327 = vunpack.c.l.b16 %v4291
        %v4328 = vunpack.c.l.b16 %v4292
        %v4329 = vunpack.c.l.b16 %v4293
        %v4330 = vunpack.c.l.b16 %v4294
        %v4331 = vunpack.c.l.b16 %v4295
        %v4332 = vpack.c.b16 %v4317, %v4316
        %v4333 = vpack.c.b16 %v4319, %v4318
        %v4334 = vpack.c.b16 %v4321, %v4320
        %v4335 = vpack.c.b16 %v4323, %v4322
        %v4336 = vpack.c.b16 %v4325, %v4324
        %v4337 = vpack.c.b16 %v4327, %v4326
        %v4338 = vpack.c.b16 %v4329, %v4328
        %v4339 = vpack.c.b16 %v4331, %v4330
        %4348 = vmatpush.bf16.msra.mxu0 %v4339
        %4349 = vmatpush.bf16.msra.mxu0 %v4338
        %4350 = vmatpush.bf16.msra.mxu0 %v4337
        %4351 = vmatpush.bf16.msra.mxu0 %v4336
        %4352 = vmatpush.bf16.msra.mxu0 %v4335
        %4353 = vmatpush.bf16.msra.mxu0 %v4334
        %4354 = vmatpush.bf16.msra.mxu0 %v4333
        %4355 = vmatpush.bf16.msra.mxu0 %v4332
        %4356 = vmatmul.bf16.gmra.mxu0 %v4248
        %v4357 = vpop.f32.mrf.mxu0
        %v4358 = vadd.f32 %v4298, %v4357
        %v4359 = vpop.f32.mrf.mxu0
        %v4360 = vadd.f32 %v4298, %v4359
        %4361 = vmatmul.bf16.gmra.mxu0 %v4249
        %v4362 = vpop.f32.mrf.mxu0
        %v4363 = vadd.f32 %v4298, %v4362
        %v4364 = vpop.f32.mrf.mxu0
        %v4365 = vadd.f32 %v4298, %v4364
        %4366 = vmatmul.bf16.gmra.mxu0 %v4250
        %v4367 = vpop.f32.mrf.mxu0
        %v4368 = vadd.f32 %v4298, %v4367
        %v4369 = vpop.f32.mrf.mxu0
        %v4370 = vadd.f32 %v4298, %v4369
        %4371 = vmatmul.bf16.gmra.mxu0 %v4251
        %v4372 = vpop.f32.mrf.mxu0
        %v4373 = vadd.f32 %v4298, %v4372
        %v4374 = vpop.f32.mrf.mxu0
        %v4375 = vadd.f32 %v4298, %v4374
        %4376 = vmatmul.bf16.gmra.mxu0 %v4252
        %v4377 = vpop.f32.mrf.mxu0
        %v4378 = vadd.f32 %v4298, %v4377
        %v4379 = vpop.f32.mrf.mxu0
        %v4380 = vadd.f32 %v4298, %v4379
        %4381 = vmatmul.bf16.gmra.mxu0 %v4253
        %v4382 = vpop.f32.mrf.mxu0
        %v4383 = vadd.f32 %v4298, %v4382
        %v4384 = vpop.f32.mrf.mxu0
        %v4385 = vadd.f32 %v4298, %v4384
        %4386 = vmatmul.bf16.gmra.mxu0 %v4254
        %v4387 = vpop.f32.mrf.mxu0
        %v4388 = vadd.f32 %v4298, %v4387
        %v4389 = vpop.f32.mrf.mxu0
        %v4390 = vadd.f32 %v4298, %v4389
        %4391 = vmatmul.bf16.gmra.mxu0 %v4255
        %v4392 = vpop.f32.mrf.mxu0
        %v4393 = vadd.f32 %v4298, %v4392
        %v4394 = vpop.f32.mrf.mxu0
        %v4395 = vadd.f32 %v4298, %v4394
        %4396 = vmatmul.bf16.gmra.mxu0 %v4256
        %v4397 = vpop.f32.mrf.mxu0
        %v4398 = vadd.f32 %v4298, %v4397
        %v4399 = vpop.f32.mrf.mxu0
        %v4400 = vadd.f32 %v4298, %v4399
        %4401 = vmatmul.bf16.gmra.mxu0 %v4257
        %v4402 = vpop.f32.mrf.mxu0
        %v4403 = vadd.f32 %v4298, %v4402
        %v4404 = vpop.f32.mrf.mxu0
        %v4405 = vadd.f32 %v4298, %v4404
        %4406 = vmatmul.bf16.gmra.mxu0 %v4258
        %v4407 = vpop.f32.mrf.mxu0
        %v4408 = vadd.f32 %v4298, %v4407
        %v4409 = vpop.f32.mrf.mxu0
        %v4410 = vadd.f32 %v4298, %v4409
        %4411 = vmatmul.bf16.gmra.mxu0 %v4259
        %v4412 = vpop.f32.mrf.mxu0
        %v4413 = vadd.f32 %v4298, %v4412
        %v4414 = vpop.f32.mrf.mxu0
        %v4415 = vadd.f32 %v4298, %v4414
        %4416 = vmatmul.bf16.gmra.mxu0 %v4260
        %v4417 = vpop.f32.mrf.mxu0
        %v4418 = vadd.f32 %v4298, %v4417
        %v4419 = vpop.f32.mrf.mxu0
        %v4420 = vadd.f32 %v4298, %v4419
        %4421 = vmatmul.bf16.gmra.mxu0 %v4261
        %v4422 = vpop.f32.mrf.mxu0
        %v4423 = vadd.f32 %v4298, %v4422
        %v4424 = vpop.f32.mrf.mxu0
        %v4425 = vadd.f32 %v4298, %v4424
        %4426 = vmatmul.bf16.gmra.mxu0 %v4262
        %v4427 = vpop.f32.mrf.mxu0
        %v4428 = vadd.f32 %v4298, %v4427
        %v4429 = vpop.f32.mrf.mxu0
        %v4430 = vadd.f32 %v4298, %v4429
        %4431 = vmatmul.bf16.gmra.mxu0 %v4263
        %v4432 = vpop.f32.mrf.mxu0
        %v4433 = vadd.f32 %v4298, %v4432
        %v4434 = vpop.f32.mrf.mxu0
        %v4435 = vadd.f32 %v4298, %v4434
        %4436 = vmatmul.bf16.gmra.mxu0 %v4264
        %v4437 = vpop.f32.mrf.mxu0
        %v4438 = vadd.f32 %v4298, %v4437
        %v4439 = vpop.f32.mrf.mxu0
        %v4440 = vadd.f32 %v4298, %v4439
        %4441 = vmatmul.bf16.gmra.mxu0 %v4265
        %v4442 = vpop.f32.mrf.mxu0
        %v4443 = vadd.f32 %v4298, %v4442
        %v4444 = vpop.f32.mrf.mxu0
        %v4445 = vadd.f32 %v4298, %v4444
        %4446 = vmatmul.bf16.gmra.mxu0 %v4266
        %v4447 = vpop.f32.mrf.mxu0
        %v4448 = vadd.f32 %v4298, %v4447
        %v4449 = vpop.f32.mrf.mxu0
        %v4450 = vadd.f32 %v4298, %v4449
        %4451 = vmatmul.bf16.gmra.mxu0 %v4267
        %v4452 = vpop.f32.mrf.mxu0
        %v4453 = vadd.f32 %v4298, %v4452
        %v4454 = vpop.f32.mrf.mxu0
        %v4455 = vadd.f32 %v4298, %v4454
        %4456 = vmatmul.bf16.gmra.mxu0 %v4268
        %v4457 = vpop.f32.mrf.mxu0
        %v4458 = vadd.f32 %v4298, %v4457
        %v4459 = vpop.f32.mrf.mxu0
        %v4460 = vadd.f32 %v4298, %v4459
        %4461 = vmatmul.bf16.gmra.mxu0 %v4269
        %v4462 = vpop.f32.mrf.mxu0
        %v4463 = vadd.f32 %v4298, %v4462
        %v4464 = vpop.f32.mrf.mxu0
        %v4465 = vadd.f32 %v4298, %v4464
        %4466 = vmatmul.bf16.gmra.mxu0 %v4270
        %v4467 = vpop.f32.mrf.mxu0
        %v4468 = vadd.f32 %v4298, %v4467
        %v4469 = vpop.f32.mrf.mxu0
        %v4470 = vadd.f32 %v4298, %v4469
        %4471 = vmatmul.bf16.gmra.mxu0 %v4271
        %v4472 = vpop.f32.mrf.mxu0
        %v4473 = vadd.f32 %v4298, %v4472
        %v4474 = vpop.f32.mrf.mxu0
        %v4475 = vadd.f32 %v4298, %v4474
        %4476 = vmatmul.bf16.gmra.mxu0 %v4272
        %v4477 = vpop.f32.mrf.mxu0
        %v4478 = vadd.f32 %v4298, %v4477
        %v4479 = vpop.f32.mrf.mxu0
        %v4480 = vadd.f32 %v4298, %v4479
        %4481 = vmatmul.bf16.gmra.mxu0 %v4273
        %v4482 = vpop.f32.mrf.mxu0
        %v4483 = vadd.f32 %v4298, %v4482
        %v4484 = vpop.f32.mrf.mxu0
        %v4485 = vadd.f32 %v4298, %v4484
        %4486 = vmatmul.bf16.gmra.mxu0 %v4274
        %v4487 = vpop.f32.mrf.mxu0
        %v4488 = vadd.f32 %v4298, %v4487
        %v4489 = vpop.f32.mrf.mxu0
        %v4490 = vadd.f32 %v4298, %v4489
        %4491 = vmatmul.bf16.gmra.mxu0 %v4275
        %v4492 = vpop.f32.mrf.mxu0
        %v4493 = vadd.f32 %v4298, %v4492
        %v4494 = vpop.f32.mrf.mxu0
        %v4495 = vadd.f32 %v4298, %v4494
        %4496 = vmatmul.bf16.gmra.mxu0 %v4276
        %v4497 = vpop.f32.mrf.mxu0
        %v4498 = vadd.f32 %v4298, %v4497
        %v4499 = vpop.f32.mrf.mxu0
        %v4500 = vadd.f32 %v4298, %v4499
        %4501 = vmatmul.bf16.gmra.mxu0 %v4277
        %v4502 = vpop.f32.mrf.mxu0
        %v4503 = vadd.f32 %v4298, %v4502
        %v4504 = vpop.f32.mrf.mxu0
        %v4505 = vadd.f32 %v4298, %v4504
        %4506 = vmatmul.bf16.gmra.mxu0 %v4278
        %v4507 = vpop.f32.mrf.mxu0
        %v4508 = vadd.f32 %v4298, %v4507
        %v4509 = vpop.f32.mrf.mxu0
        %v4510 = vadd.f32 %v4298, %v4509
        %4511 = vmatmul.bf16.gmra.mxu0 %v4279
        %v4512 = vpop.f32.mrf.mxu0
        %v4513 = vadd.f32 %v4298, %v4512
        %v4514 = vpop.f32.mrf.mxu0
        %v4515 = vadd.f32 %v4298, %v4514
        %4516 = vdwg.mxu0
        %v4517 = vadd.f32 %v4358, %v2838
        %v4518 = vadd.f32 %v4360, %v2840
        %v4519 = vadd.f32 %v4363, %v2843
        %v4520 = vadd.f32 %v4365, %v2845
        %v4521 = vadd.f32 %v4368, %v2848
        %v4522 = vadd.f32 %v4370, %v2850
        %v4523 = vadd.f32 %v4373, %v2853
        %v4524 = vadd.f32 %v4375, %v2855
        %v4525 = vadd.f32 %v4378, %v2858
        %v4526 = vadd.f32 %v4380, %v2860
        %v4527 = vadd.f32 %v4383, %v2863
        %v4528 = vadd.f32 %v4385, %v2865
        %v4529 = vadd.f32 %v4388, %v2868
        %v4530 = vadd.f32 %v4390, %v2870
        %v4531 = vadd.f32 %v4393, %v2873
        %v4532 = vadd.f32 %v4395, %v2875
        %v4533 = vadd.f32 %v4398, %v2878
        %v4534 = vadd.f32 %v4400, %v2880
        %v4535 = vadd.f32 %v4403, %v2883
        %v4536 = vadd.f32 %v4405, %v2885
        %v4537 = vadd.f32 %v4408, %v2888
        %v4538 = vadd.f32 %v4410, %v2890
        %v4539 = vadd.f32 %v4413, %v2893
        %v4540 = vadd.f32 %v4415, %v2895
        %v4541 = vadd.f32 %v4418, %v2898
        %v4542 = vadd.f32 %v4420, %v2900
        %v4543 = vadd.f32 %v4423, %v2903
        %v4544 = vadd.f32 %v4425, %v2905
        %v4545 = vadd.f32 %v4428, %v2908
        %v4546 = vadd.f32 %v4430, %v2910
        %v4547 = vadd.f32 %v4433, %v2913
        %v4548 = vadd.f32 %v4435, %v2915
        %v4549 = vadd.f32 %v4438, %v2918
        %v4550 = vadd.f32 %v4440, %v2920
        %v4551 = vadd.f32 %v4443, %v2923
        %v4552 = vadd.f32 %v4445, %v2925
        %v4553 = vadd.f32 %v4448, %v2928
        %v4554 = vadd.f32 %v4450, %v2930
        %v4555 = vadd.f32 %v4453, %v2933
        %v4556 = vadd.f32 %v4455, %v2935
        %v4557 = vadd.f32 %v4458, %v2938
        %v4558 = vadd.f32 %v4460, %v2940
        %v4559 = vadd.f32 %v4463, %v2943
        %v4560 = vadd.f32 %v4465, %v2945
        %v4561 = vadd.f32 %v4468, %v2948
        %v4562 = vadd.f32 %v4470, %v2950
        %v4563 = vadd.f32 %v4473, %v2953
        %v4564 = vadd.f32 %v4475, %v2955
        %v4565 = vadd.f32 %v4478, %v2958
        %v4566 = vadd.f32 %v4480, %v2960
        %v4567 = vadd.f32 %v4483, %v2963
        %v4568 = vadd.f32 %v4485, %v2965
        %v4569 = vadd.f32 %v4488, %v2968
        %v4570 = vadd.f32 %v4490, %v2970
        %v4571 = vadd.f32 %v4493, %v2973
        %v4572 = vadd.f32 %v4495, %v2975
        %v4573 = vadd.f32 %v4498, %v2978
        %v4574 = vadd.f32 %v4500, %v2980
        %v4575 = vadd.f32 %v4503, %v2983
        %v4576 = vadd.f32 %v4505, %v2985
        %v4577 = vadd.f32 %v4508, %v2988
        %v4578 = vadd.f32 %v4510, %v2990
        %v4579 = vadd.f32 %v4513, %v2993
        %v4580 = vadd.f32 %v4515, %v2995
        %v4581 = vtanh.pop %v4517
        %v4582 = vtanh.pop %v4518
        %v4583 = vtanh.pop %v4519
        %v4584 = vtanh.pop %v4520
        %v4585 = vtanh.pop %v4521
        %v4586 = vtanh.pop %v4522
        %v4587 = vtanh.pop %v4523
        %v4588 = vtanh.pop %v4524
        %v4589 = vtanh.pop %v4525
        %v4590 = vtanh.pop %v4526
        %v4591 = vtanh.pop %v4527
        %v4592 = vtanh.pop %v4528
        %v4593 = vtanh.pop %v4529
        %v4594 = vtanh.pop %v4530
        %v4595 = vtanh.pop %v4531
        %v4596 = vtanh.pop %v4532
        %v4597 = vtanh.pop %v4533
        %v4598 = vtanh.pop %v4534
        %v4599 = vtanh.pop %v4535
        %v4600 = vtanh.pop %v4536
        %v4601 = vtanh.pop %v4537
        %v4602 = vtanh.pop %v4538
        %v4603 = vtanh.pop %v4539
        %v4604 = vtanh.pop %v4540
        %v4605 = vtanh.pop %v4541
        %v4606 = vtanh.pop %v4542
        %v4607 = vtanh.pop %v4543
        %v4608 = vtanh.pop %v4544
        %v4609 = vtanh.pop %v4545
        %v4610 = vtanh.pop %v4546
        %v4611 = vtanh.pop %v4547
        %v4612 = vtanh.pop %v4548
        %v4613 = vtanh.pop %v4549
        %v4614 = vtanh.pop %v4550
        %v4615 = vtanh.pop %v4551
        %v4616 = vtanh.pop %v4552
        %v4617 = vtanh.pop %v4553
        %v4618 = vtanh.pop %v4554
        %v4619 = vtanh.pop %v4555
        %v4620 = vtanh.pop %v4556
        %v4621 = vtanh.pop %v4557
        %v4622 = vtanh.pop %v4558
        %v4623 = vtanh.pop %v4559
        %v4624 = vtanh.pop %v4560
        %v4625 = vtanh.pop %v4561
        %v4626 = vtanh.pop %v4562
        %v4627 = vtanh.pop %v4563
        %v4628 = vtanh.pop %v4564
        %v4629 = vtanh.pop %v4565
        %v4630 = vtanh.pop %v4566
        %v4631 = vtanh.pop %v4567
        %v4632 = vtanh.pop %v4568
        %v4633 = vtanh.pop %v4569
        %v4634 = vtanh.pop %v4570
        %v4635 = vtanh.pop %v4571
        %v4636 = vtanh.pop %v4572
        %v4637 = vtanh.pop %v4573
        %v4638 = vtanh.pop %v4574
        %v4639 = vtanh.pop %v4575
        %v4640 = vtanh.pop %v4576
        %v4641 = vtanh.pop %v4577
        %v4642 = vtanh.pop %v4578
        %v4643 = vtanh.pop %v4579
        %v4644 = vtanh.pop %v4580
        %v4645 = vpack.c.bf16 %v4582, %v4581
        %v4646 = vpack.c.bf16 %v4584, %v4583
        %v4647 = vpack.c.bf16 %v4586, %v4585
        %v4648 = vpack.c.bf16 %v4588, %v4587
        %v4649 = vpack.c.bf16 %v4590, %v4589
        %v4650 = vpack.c.bf16 %v4592, %v4591
        %v4651 = vpack.c.bf16 %v4594, %v4593
        %v4652 = vpack.c.bf16 %v4596, %v4595
        %v4653 = vpack.c.bf16 %v4598, %v4597
        %v4654 = vpack.c.bf16 %v4600, %v4599
        %v4655 = vpack.c.bf16 %v4602, %v4601
        %v4656 = vpack.c.bf16 %v4604, %v4603
        %v4657 = vpack.c.bf16 %v4606, %v4605
        %v4658 = vpack.c.bf16 %v4608, %v4607
        %v4659 = vpack.c.bf16 %v4610, %v4609
        %v4660 = vpack.c.bf16 %v4612, %v4611
        %v4661 = vpack.c.bf16 %v4614, %v4613
        %v4662 = vpack.c.bf16 %v4616, %v4615
        %v4663 = vpack.c.bf16 %v4618, %v4617
        %v4664 = vpack.c.bf16 %v4620, %v4619
        %v4665 = vpack.c.bf16 %v4622, %v4621
        %v4666 = vpack.c.bf16 %v4624, %v4623
        %v4667 = vpack.c.bf16 %v4626, %v4625
        %v4668 = vpack.c.bf16 %v4628, %v4627
        %v4669 = vpack.c.bf16 %v4630, %v4629
        %v4670 = vpack.c.bf16 %v4632, %v4631
        %v4671 = vpack.c.bf16 %v4634, %v4633
        %v4672 = vpack.c.bf16 %v4636, %v4635
        %v4673 = vpack.c.bf16 %v4638, %v4637
        %v4674 = vpack.c.bf16 %v4640, %v4639
        %v4675 = vpack.c.bf16 %v4642, %v4641
        %v4676 = vpack.c.bf16 %v4644, %v4643
        %v4677 = vld [vmem:[%s9] sm:$0xf]
        %v4678 = vld [vmem:[%s9 + $0x4] sm:$0xf]
        %v4679 = vld [vmem:[%s9 + $0x8] sm:$0xf]
        %v4680 = vld [vmem:[%s9 + $0xc] sm:$0xf]
        %v4681 = vld [vmem:[%s9 + $0x10] sm:$0xf]
        %v4682 = vld [vmem:[%s9 + $0x14] sm:$0xf]
        %v4683 = vld [vmem:[%s9 + $0x18] sm:$0xf]
        %v4684 = vld [vmem:[%s9 + $0x1c] sm:$0xf]
        %v4685 = vld [vmem:[%s9 + $0x20] sm:$0xf]
        %v4686 = vld [vmem:[%s9 + $0x24] sm:$0xf]
        %v4687 = vld [vmem:[%s9 + $0x28] sm:$0xf]
        %v4688 = vld [vmem:[%s9 + $0x2c] sm:$0xf]
        %v4689 = vld [vmem:[%s9 + $0x30] sm:$0xf]
        %v4690 = vld [vmem:[%s9 + $0x34] sm:$0xf]
        %v4691 = vld [vmem:[%s9 + $0x38] sm:$0xf]
        %v4692 = vld [vmem:[%s9 + $0x3c] sm:$0xf]
        %v4693 = vld [vmem:[%s10] sm:$0x1]
        %v4695 = vperm.slane %v4693, 0
        %v4713 = vunpack.c.l.b16 %v4677
        %v4714 = vunpack.c.l.b16 %v4678
        %v4715 = vunpack.c.l.b16 %v4679
        %v4716 = vunpack.c.l.b16 %v4680
        %v4717 = vunpack.c.l.b16 %v4681
        %v4718 = vunpack.c.l.b16 %v4682
        %v4719 = vunpack.c.l.b16 %v4683
        %v4720 = vunpack.c.l.b16 %v4684
        %v4721 = vunpack.c.l.b16 %v4685
        %v4722 = vunpack.c.l.b16 %v4686
        %v4723 = vunpack.c.l.b16 %v4687
        %v4724 = vunpack.c.l.b16 %v4688
        %v4725 = vunpack.c.l.b16 %v4689
        %v4726 = vunpack.c.l.b16 %v4690
        %v4727 = vunpack.c.l.b16 %v4691
        %v4728 = vunpack.c.l.b16 %v4692
        %v4729 = vpack.c.b16 %v4714, %v4713
        %v4730 = vpack.c.b16 %v4716, %v4715
        %v4731 = vpack.c.b16 %v4718, %v4717
        %v4732 = vpack.c.b16 %v4720, %v4719
        %v4733 = vpack.c.b16 %v4722, %v4721
        %v4734 = vpack.c.b16 %v4724, %v4723
        %v4735 = vpack.c.b16 %v4726, %v4725
        %v4736 = vpack.c.b16 %v4728, %v4727
        %4745 = vmatpush.bf16.msra.mxu0 %v4736
        %4746 = vmatpush.bf16.msra.mxu0 %v4735
        %4747 = vmatpush.bf16.msra.mxu0 %v4734
        %4748 = vmatpush.bf16.msra.mxu0 %v4733
        %4749 = vmatpush.bf16.msra.mxu0 %v4732
        %4750 = vmatpush.bf16.msra.mxu0 %v4731
        %4751 = vmatpush.bf16.msra.mxu0 %v4730
        %4752 = vmatpush.bf16.msra.mxu0 %v4729
        %4753 = vmatmul.bf16.gmra.mxu0 %v4645
        %v4754 = vpop.f32.mrf.mxu0
        %v4755 = vadd.f32 %v4695, %v4754
        %v4756 = vpop.f32.mrf.mxu0
        %v4757 = vadd.f32 %v4695, %v4756
        %4758 = vmatmul.bf16.gmra.mxu0 %v4646
        %v4759 = vpop.f32.mrf.mxu0
        %v4760 = vadd.f32 %v4695, %v4759
        %v4761 = vpop.f32.mrf.mxu0
        %v4762 = vadd.f32 %v4695, %v4761
        %4763 = vmatmul.bf16.gmra.mxu0 %v4647
        %v4764 = vpop.f32.mrf.mxu0
        %v4765 = vadd.f32 %v4695, %v4764
        %v4766 = vpop.f32.mrf.mxu0
        %v4767 = vadd.f32 %v4695, %v4766
        %4768 = vmatmul.bf16.gmra.mxu0 %v4648
        %v4769 = vpop.f32.mrf.mxu0
        %v4770 = vadd.f32 %v4695, %v4769
        %v4771 = vpop.f32.mrf.mxu0
        %v4772 = vadd.f32 %v4695, %v4771
        %4773 = vmatmul.bf16.gmra.mxu0 %v4649
        %v4774 = vpop.f32.mrf.mxu0
        %v4775 = vadd.f32 %v4695, %v4774
        %v4776 = vpop.f32.mrf.mxu0
        %v4777 = vadd.f32 %v4695, %v4776
        %4778 = vmatmul.bf16.gmra.mxu0 %v4650
        %v4779 = vpop.f32.mrf.mxu0
        %v4780 = vadd.f32 %v4695, %v4779
        %v4781 = vpop.f32.mrf.mxu0
        %v4782 = vadd.f32 %v4695, %v4781
        %4783 = vmatmul.bf16.gmra.mxu0 %v4651
        %v4784 = vpop.f32.mrf.mxu0
        %v4785 = vadd.f32 %v4695, %v4784
        %v4786 = vpop.f32.mrf.mxu0
        %v4787 = vadd.f32 %v4695, %v4786
        %4788 = vmatmul.bf16.gmra.mxu0 %v4652
        %v4789 = vpop.f32.mrf.mxu0
        %v4790 = vadd.f32 %v4695, %v4789
        %v4791 = vpop.f32.mrf.mxu0
        %v4792 = vadd.f32 %v4695, %v4791
        %4793 = vmatmul.bf16.gmra.mxu0 %v4653
        %v4794 = vpop.f32.mrf.mxu0
        %v4795 = vadd.f32 %v4695, %v4794
        %v4796 = vpop.f32.mrf.mxu0
        %v4797 = vadd.f32 %v4695, %v4796
        %4798 = vmatmul.bf16.gmra.mxu0 %v4654
        %v4799 = vpop.f32.mrf.mxu0
        %v4800 = vadd.f32 %v4695, %v4799
        %v4801 = vpop.f32.mrf.mxu0
        %v4802 = vadd.f32 %v4695, %v4801
        %4803 = vmatmul.bf16.gmra.mxu0 %v4655
        %v4804 = vpop.f32.mrf.mxu0
        %v4805 = vadd.f32 %v4695, %v4804
        %v4806 = vpop.f32.mrf.mxu0
        %v4807 = vadd.f32 %v4695, %v4806
        %4808 = vmatmul.bf16.gmra.mxu0 %v4656
        %v4809 = vpop.f32.mrf.mxu0
        %v4810 = vadd.f32 %v4695, %v4809
        %v4811 = vpop.f32.mrf.mxu0
        %v4812 = vadd.f32 %v4695, %v4811
        %4813 = vmatmul.bf16.gmra.mxu0 %v4657
        %v4814 = vpop.f32.mrf.mxu0
        %v4815 = vadd.f32 %v4695, %v4814
        %v4816 = vpop.f32.mrf.mxu0
        %v4817 = vadd.f32 %v4695, %v4816
        %4818 = vmatmul.bf16.gmra.mxu0 %v4658
        %v4819 = vpop.f32.mrf.mxu0
        %v4820 = vadd.f32 %v4695, %v4819
        %v4821 = vpop.f32.mrf.mxu0
        %v4822 = vadd.f32 %v4695, %v4821
        %4823 = vmatmul.bf16.gmra.mxu0 %v4659
        %v4824 = vpop.f32.mrf.mxu0
        %v4825 = vadd.f32 %v4695, %v4824
        %v4826 = vpop.f32.mrf.mxu0
        %v4827 = vadd.f32 %v4695, %v4826
        %4828 = vmatmul.bf16.gmra.mxu0 %v4660
        %v4829 = vpop.f32.mrf.mxu0
        %v4830 = vadd.f32 %v4695, %v4829
        %v4831 = vpop.f32.mrf.mxu0
        %v4832 = vadd.f32 %v4695, %v4831
        %4833 = vmatmul.bf16.gmra.mxu0 %v4661
        %v4834 = vpop.f32.mrf.mxu0
        %v4835 = vadd.f32 %v4695, %v4834
        %v4836 = vpop.f32.mrf.mxu0
        %v4837 = vadd.f32 %v4695, %v4836
        %4838 = vmatmul.bf16.gmra.mxu0 %v4662
        %v4839 = vpop.f32.mrf.mxu0
        %v4840 = vadd.f32 %v4695, %v4839
        %v4841 = vpop.f32.mrf.mxu0
        %v4842 = vadd.f32 %v4695, %v4841
        %4843 = vmatmul.bf16.gmra.mxu0 %v4663
        %v4844 = vpop.f32.mrf.mxu0
        %v4845 = vadd.f32 %v4695, %v4844
        %v4846 = vpop.f32.mrf.mxu0
        %v4847 = vadd.f32 %v4695, %v4846
        %4848 = vmatmul.bf16.gmra.mxu0 %v4664
        %v4849 = vpop.f32.mrf.mxu0
        %v4850 = vadd.f32 %v4695, %v4849
        %v4851 = vpop.f32.mrf.mxu0
        %v4852 = vadd.f32 %v4695, %v4851
        %4853 = vmatmul.bf16.gmra.mxu0 %v4665
        %v4854 = vpop.f32.mrf.mxu0
        %v4855 = vadd.f32 %v4695, %v4854
        %v4856 = vpop.f32.mrf.mxu0
        %v4857 = vadd.f32 %v4695, %v4856
        %4858 = vmatmul.bf16.gmra.mxu0 %v4666
        %v4859 = vpop.f32.mrf.mxu0
        %v4860 = vadd.f32 %v4695, %v4859
        %v4861 = vpop.f32.mrf.mxu0
        %v4862 = vadd.f32 %v4695, %v4861
        %4863 = vmatmul.bf16.gmra.mxu0 %v4667
        %v4864 = vpop.f32.mrf.mxu0
        %v4865 = vadd.f32 %v4695, %v4864
        %v4866 = vpop.f32.mrf.mxu0
        %v4867 = vadd.f32 %v4695, %v4866
        %4868 = vmatmul.bf16.gmra.mxu0 %v4668
        %v4869 = vpop.f32.mrf.mxu0
        %v4870 = vadd.f32 %v4695, %v4869
        %v4871 = vpop.f32.mrf.mxu0
        %v4872 = vadd.f32 %v4695, %v4871
        %4873 = vmatmul.bf16.gmra.mxu0 %v4669
        %v4874 = vpop.f32.mrf.mxu0
        %v4875 = vadd.f32 %v4695, %v4874
        %v4876 = vpop.f32.mrf.mxu0
        %v4877 = vadd.f32 %v4695, %v4876
        %4878 = vmatmul.bf16.gmra.mxu0 %v4670
        %v4879 = vpop.f32.mrf.mxu0
        %v4880 = vadd.f32 %v4695, %v4879
        %v4881 = vpop.f32.mrf.mxu0
        %v4882 = vadd.f32 %v4695, %v4881
        %4883 = vmatmul.bf16.gmra.mxu0 %v4671
        %v4884 = vpop.f32.mrf.mxu0
        %v4885 = vadd.f32 %v4695, %v4884
        %v4886 = vpop.f32.mrf.mxu0
        %v4887 = vadd.f32 %v4695, %v4886
        %4888 = vmatmul.bf16.gmra.mxu0 %v4672
        %v4889 = vpop.f32.mrf.mxu0
        %v4890 = vadd.f32 %v4695, %v4889
        %v4891 = vpop.f32.mrf.mxu0
        %v4892 = vadd.f32 %v4695, %v4891
        %4893 = vmatmul.bf16.gmra.mxu0 %v4673
        %v4894 = vpop.f32.mrf.mxu0
        %v4895 = vadd.f32 %v4695, %v4894
        %v4896 = vpop.f32.mrf.mxu0
        %v4897 = vadd.f32 %v4695, %v4896
        %4898 = vmatmul.bf16.gmra.mxu0 %v4674
        %v4899 = vpop.f32.mrf.mxu0
        %v4900 = vadd.f32 %v4695, %v4899
        %v4901 = vpop.f32.mrf.mxu0
        %v4902 = vadd.f32 %v4695, %v4901
        %4903 = vmatmul.bf16.gmra.mxu0 %v4675
        %v4904 = vpop.f32.mrf.mxu0
        %v4905 = vadd.f32 %v4695, %v4904
        %v4906 = vpop.f32.mrf.mxu0
        %v4907 = vadd.f32 %v4695, %v4906
        %4908 = vmatmul.bf16.gmra.mxu0 %v4676
        %v4909 = vpop.f32.mrf.mxu0
        %v4910 = vadd.f32 %v4695, %v4909
        %v4911 = vpop.f32.mrf.mxu0
        %v4912 = vadd.f32 %v4695, %v4911
        %4913 = vdwg.mxu0
        %v4914 = vadd.f32 %v4755, %v3504
        %v4915 = vadd.f32 %v4757, %v3506
        %v4916 = vadd.f32 %v4760, %v3509
        %v4917 = vadd.f32 %v4762, %v3511
        %v4918 = vadd.f32 %v4765, %v3514
        %v4919 = vadd.f32 %v4767, %v3516
        %v4920 = vadd.f32 %v4770, %v3519
        %v4921 = vadd.f32 %v4772, %v3521
        %v4922 = vadd.f32 %v4775, %v3524
        %v4923 = vadd.f32 %v4777, %v3526
        %v4924 = vadd.f32 %v4780, %v3529
        %v4925 = vadd.f32 %v4782, %v3531
        %v4926 = vadd.f32 %v4785, %v3534
        %v4927 = vadd.f32 %v4787, %v3536
        %v4928 = vadd.f32 %v4790, %v3539
        %v4929 = vadd.f32 %v4792, %v3541
        %v4930 = vadd.f32 %v4795, %v3544
        %v4931 = vadd.f32 %v4797, %v3546
        %v4932 = vadd.f32 %v4800, %v3549
        %v4933 = vadd.f32 %v4802, %v3551
        %v4934 = vadd.f32 %v4805, %v3554
        %v4935 = vadd.f32 %v4807, %v3556
        %v4936 = vadd.f32 %v4810, %v3559
        %v4937 = vadd.f32 %v4812, %v3561
        %v4938 = vadd.f32 %v4815, %v3564
        %v4939 = vadd.f32 %v4817, %v3566
        %v4940 = vadd.f32 %v4820, %v3569
        %v4941 = vadd.f32 %v4822, %v3571
        %v4942 = vadd.f32 %v4825, %v3574
        %v4943 = vadd.f32 %v4827, %v3576
        %v4944 = vadd.f32 %v4830, %v3579
        %v4945 = vadd.f32 %v4832, %v3581
        %v4946 = vadd.f32 %v4835, %v3584
        %v4947 = vadd.f32 %v4837, %v3586
        %v4948 = vadd.f32 %v4840, %v3589
        %v4949 = vadd.f32 %v4842, %v3591
        %v4950 = vadd.f32 %v4845, %v3594
        %v4951 = vadd.f32 %v4847, %v3596
        %v4952 = vadd.f32 %v4850, %v3599
        %v4953 = vadd.f32 %v4852, %v3601
        %v4954 = vadd.f32 %v4855, %v3604
        %v4955 = vadd.f32 %v4857, %v3606
        %v4956 = vadd.f32 %v4860, %v3609
        %v4957 = vadd.f32 %v4862, %v3611
        %v4958 = vadd.f32 %v4865, %v3614
        %v4959 = vadd.f32 %v4867, %v3616
        %v4960 = vadd.f32 %v4870, %v3619
        %v4961 = vadd.f32 %v4872, %v3621
        %v4962 = vadd.f32 %v4875, %v3624
        %v4963 = vadd.f32 %v4877, %v3626
        %v4964 = vadd.f32 %v4880, %v3629
        %v4965 = vadd.f32 %v4882, %v3631
        %v4966 = vadd.f32 %v4885, %v3634
        %v4967 = vadd.f32 %v4887, %v3636
        %v4968 = vadd.f32 %v4890, %v3639
        %v4969 = vadd.f32 %v4892, %v3641
        %v4970 = vadd.f32 %v4895, %v3644
        %v4971 = vadd.f32 %v4897, %v3646
        %v4972 = vadd.f32 %v4900, %v3649
        %v4973 = vadd.f32 %v4902, %v3651
        %v4974 = vadd.f32 %v4905, %v3654
        %v4975 = vadd.f32 %v4907, %v3656
        %v4976 = vadd.f32 %v4910, %v3659
        %v4977 = vadd.f32 %v4912, %v3661
        %v4978 = vld [vmem:[%s1] sm:$0xf]
        %v4979 = vperm.slane %v4978, 0
        %v4980 = vmul.f32 %v726, %v4979
        %v4981 = vmul.f32 %v731, %v4979
        %v4982 = vmul.f32 %v736, %v4979
        %v4983 = vmul.f32 %v741, %v4979
        %v4984 = vmul.f32 %v746, %v4979
        %v4985 = vmul.f32 %v751, %v4979
        %v4986 = vmul.f32 %v756, %v4979
        %v4987 = vmul.f32 %v761, %v4979
        %v4988 = vmul.f32 %v766, %v4979
        %v4989 = vmul.f32 %v771, %v4979
        %v4990 = vmul.f32 %v776, %v4979
        %v4991 = vmul.f32 %v781, %v4979
        %v4992 = vmul.f32 %v786, %v4979
        %v4993 = vmul.f32 %v791, %v4979
        %v4994 = vmul.f32 %v796, %v4979
        %v4995 = vmul.f32 %v801, %v4979
        %v4996 = vmul.f32 %v806, %v4979
        %v4997 = vmul.f32 %v811, %v4979
        %v4998 = vmul.f32 %v816, %v4979
        %v4999 = vmul.f32 %v821, %v4979
        %v5000 = vmul.f32 %v826, %v4979
        %v5001 = vmul.f32 %v831, %v4979
        %v5002 = vmul.f32 %v836, %v4979
        %v5003 = vmul.f32 %v841, %v4979
        %v5004 = vmul.f32 %v846, %v4979
        %v5005 = vmul.f32 %v851, %v4979
        %v5006 = vmul.f32 %v856, %v4979
        %v5007 = vmul.f32 %v861, %v4979
        %v5008 = vmul.f32 %v866, %v4979
        %v5009 = vmul.f32 %v871, %v4979
        %v5010 = vmul.f32 %v876, %v4979
        %v5011 = vmul.f32 %v881, %v4979
        %v5012 = vmul.f32 %v886, %v4979
        %v5013 = vmul.f32 %v891, %v4979
        %v5014 = vmul.f32 %v896, %v4979
        %v5015 = vmul.f32 %v901, %v4979
        %v5016 = vmul.f32 %v906, %v4979
        %v5017 = vmul.f32 %v911, %v4979
        %v5018 = vmul.f32 %v916, %v4979
        %v5019 = vmul.f32 %v921, %v4979
        %v5020 = vmul.f32 %v926, %v4979
        %v5021 = vmul.f32 %v931, %v4979
        %v5022 = vmul.f32 %v936, %v4979
        %v5023 = vmul.f32 %v941, %v4979
        %v5024 = vmul.f32 %v946, %v4979
        %v5025 = vmul.f32 %v951, %v4979
        %v5026 = vmul.f32 %v956, %v4979
        %v5027 = vmul.f32 %v961, %v4979
        %v5028 = vmul.f32 %v966, %v4979
        %v5029 = vmul.f32 %v971, %v4979
        %v5030 = vmul.f32 %v976, %v4979
        %v5031 = vmul.f32 %v981, %v4979
        %v5032 = vmul.f32 %v986, %v4979
        %v5033 = vmul.f32 %v991, %v4979
        %v5034 = vmul.f32 %v996, %v4979
        %v5035 = vmul.f32 %v1001, %v4979
        %v5036 = vmul.f32 %v1006, %v4979
        %v5037 = vmul.f32 %v1011, %v4979
        %v5038 = vmul.f32 %v1016, %v4979
        %v5039 = vmul.f32 %v1021, %v4979
        %v5040 = vmul.f32 %v1026, %v4979
        %v5041 = vmul.f32 %v1031, %v4979
        %v5042 = vmul.f32 %v1036, %v4979
        %v5043 = vmul.f32 %v1041, %v4979
        %v5044 = vld [vmem:[%s2] sm:$0x1]
        %v5046 = vperm.slane %v5044, 0
        %v5048 = vadd.f32 %v4980, %v5046
        %v5049 = vadd.f32 %v4981, %v5046
        %v5050 = vadd.f32 %v4982, %v5046
        %v5051 = vadd.f32 %v4983, %v5046
        %v5052 = vadd.f32 %v4984, %v5046
        %v5053 = vadd.f32 %v4985, %v5046
        %v5054 = vadd.f32 %v4986, %v5046
        %v5055 = vadd.f32 %v4987, %v5046
        %v5056 = vadd.f32 %v4988, %v5046
        %v5057 = vadd.f32 %v4989, %v5046
        %v5058 = vadd.f32 %v4990, %v5046
        %v5059 = vadd.f32 %v4991, %v5046
        %v5060 = vadd.f32 %v4992, %v5046
        %v5061 = vadd.f32 %v4993, %v5046
        %v5062 = vadd.f32 %v4994, %v5046
        %v5063 = vadd.f32 %v4995, %v5046
        %v5064 = vadd.f32 %v4996, %v5046
        %v5065 = vadd.f32 %v4997, %v5046
        %v5066 = vadd.f32 %v4998, %v5046
        %v5067 = vadd.f32 %v4999, %v5046
        %v5068 = vadd.f32 %v5000, %v5046
        %v5069 = vadd.f32 %v5001, %v5046
        %v5070 = vadd.f32 %v5002, %v5046
        %v5071 = vadd.f32 %v5003, %v5046
        %v5072 = vadd.f32 %v5004, %v5046
        %v5073 = vadd.f32 %v5005, %v5046
        %v5074 = vadd.f32 %v5006, %v5046
        %v5075 = vadd.f32 %v5007, %v5046
        %v5076 = vadd.f32 %v5008, %v5046
        %v5077 = vadd.f32 %v5009, %v5046
        %v5078 = vadd.f32 %v5010, %v5046
        %v5079 = vadd.f32 %v5011, %v5046
        %v5080 = vadd.f32 %v5012, %v5046
        %v5081 = vadd.f32 %v5013, %v5046
        %v5082 = vadd.f32 %v5014, %v5046
        %v5083 = vadd.f32 %v5015, %v5046
        %v5084 = vadd.f32 %v5016, %v5046
        %v5085 = vadd.f32 %v5017, %v5046
        %v5086 = vadd.f32 %v5018, %v5046
        %v5087 = vadd.f32 %v5019, %v5046
        %v5088 = vadd.f32 %v5020, %v5046
        %v5089 = vadd.f32 %v5021, %v5046
        %v5090 = vadd.f32 %v5022, %v5046
        %v5091 = vadd.f32 %v5023, %v5046
        %v5092 = vadd.f32 %v5024, %v5046
        %v5093 = vadd.f32 %v5025, %v5046
        %v5094 = vadd.f32 %v5026, %v5046
        %v5095 = vadd.f32 %v5027, %v5046
        %v5096 = vadd.f32 %v5028, %v5046
        %v5097 = vadd.f32 %v5029, %v5046
        %v5098 = vadd.f32 %v5030, %v5046
        %v5099 = vadd.f32 %v5031, %v5046
        %v5100 = vadd.f32 %v5032, %v5046
        %v5101 = vadd.f32 %v5033, %v5046
        %v5102 = vadd.f32 %v5034, %v5046
        %v5103 = vadd.f32 %v5035, %v5046
        %v5104 = vadd.f32 %v5036, %v5046
        %v5105 = vadd.f32 %v5037, %v5046
        %v5106 = vadd.f32 %v5038, %v5046
        %v5107 = vadd.f32 %v5039, %v5046
        %v5108 = vadd.f32 %v5040, %v5046
        %v5109 = vadd.f32 %v5041, %v5046
        %v5110 = vadd.f32 %v5042, %v5046
        %v5111 = vadd.f32 %v5043, %v5046
        %v5112 = vperm.slane %v4978, 1
        %v5113 = vmul.f32 %v1178, %v5112
        %v5114 = vmul.f32 %v1182, %v5112
        %v5115 = vmul.f32 %v1186, %v5112
        %v5116 = vmul.f32 %v1190, %v5112
        %v5117 = vmul.f32 %v1194, %v5112
        %v5118 = vmul.f32 %v1198, %v5112
        %v5119 = vmul.f32 %v1202, %v5112
        %v5120 = vmul.f32 %v1206, %v5112
        %v5121 = vmul.f32 %v1210, %v5112
        %v5122 = vmul.f32 %v1214, %v5112
        %v5123 = vmul.f32 %v1218, %v5112
        %v5124 = vmul.f32 %v1222, %v5112
        %v5125 = vmul.f32 %v1226, %v5112
        %v5126 = vmul.f32 %v1230, %v5112
        %v5127 = vmul.f32 %v1234, %v5112
        %v5128 = vmul.f32 %v1238, %v5112
        %v5129 = vmul.f32 %v1242, %v5112
        %v5130 = vmul.f32 %v1246, %v5112
        %v5131 = vmul.f32 %v1250, %v5112
        %v5132 = vmul.f32 %v1254, %v5112
        %v5133 = vmul.f32 %v1258, %v5112
        %v5134 = vmul.f32 %v1262, %v5112
        %v5135 = vmul.f32 %v1266, %v5112
        %v5136 = vmul.f32 %v1270, %v5112
        %v5137 = vmul.f32 %v1274, %v5112
        %v5138 = vmul.f32 %v1278, %v5112
        %v5139 = vmul.f32 %v1282, %v5112
        %v5140 = vmul.f32 %v1286, %v5112
        %v5141 = vmul.f32 %v1290, %v5112
        %v5142 = vmul.f32 %v1294, %v5112
        %v5143 = vmul.f32 %v1298, %v5112
        %v5144 = vmul.f32 %v1302, %v5112
        %v5145 = vmul.f32 %v1306, %v5112
        %v5146 = vmul.f32 %v1310, %v5112
        %v5147 = vmul.f32 %v1314, %v5112
        %v5148 = vmul.f32 %v1318, %v5112
        %v5149 = vmul.f32 %v1322, %v5112
        %v5150 = vmul.f32 %v1326, %v5112
        %v5151 = vmul.f32 %v1330, %v5112
        %v5152 = vmul.f32 %v1334, %v5112
        %v5153 = vmul.f32 %v1338, %v5112
        %v5154 = vmul.f32 %v1342, %v5112
        %v5155 = vmul.f32 %v1346, %v5112
        %v5156 = vmul.f32 %v1350, %v5112
        %v5157 = vmul.f32 %v1354, %v5112
        %v5158 = vmul.f32 %v1358, %v5112
        %v5159 = vmul.f32 %v1362, %v5112
        %v5160 = vmul.f32 %v1366, %v5112
        %v5161 = vmul.f32 %v1370, %v5112
        %v5162 = vmul.f32 %v1374, %v5112
        %v5163 = vmul.f32 %v1378, %v5112
        %v5164 = vmul.f32 %v1382, %v5112
        %v5165 = vmul.f32 %v1386, %v5112
        %v5166 = vmul.f32 %v1390, %v5112
        %v5167 = vmul.f32 %v1394, %v5112
        %v5168 = vmul.f32 %v1398, %v5112
        %v5169 = vmul.f32 %v1402, %v5112
        %v5170 = vmul.f32 %v1406, %v5112
        %v5171 = vmul.f32 %v1410, %v5112
        %v5172 = vmul.f32 %v1414, %v5112
        %v5173 = vmul.f32 %v1418, %v5112
        %v5174 = vmul.f32 %v1422, %v5112
        %v5175 = vmul.f32 %v1426, %v5112
        %v5176 = vmul.f32 %v1430, %v5112
        %v5177 = vadd.f32 %v5048, %v5113
        %v5178 = vadd.f32 %v5049, %v5114
        %v5179 = vadd.f32 %v5050, %v5115
        %v5180 = vadd.f32 %v5051, %v5116
        %v5181 = vadd.f32 %v5052, %v5117
        %v5182 = vadd.f32 %v5053, %v5118
        %v5183 = vadd.f32 %v5054, %v5119
        %v5184 = vadd.f32 %v5055, %v5120
        %v5185 = vadd.f32 %v5056, %v5121
        %v5186 = vadd.f32 %v5057, %v5122
        %v5187 = vadd.f32 %v5058, %v5123
        %v5188 = vadd.f32 %v5059, %v5124
        %v5189 = vadd.f32 %v5060, %v5125
        %v5190 = vadd.f32 %v5061, %v5126
        %v5191 = vadd.f32 %v5062, %v5127
        %v5192 = vadd.f32 %v5063, %v5128
        %v5193 = vadd.f32 %v5064, %v5129
        %v5194 = vadd.f32 %v5065, %v5130
        %v5195 = vadd.f32 %v5066, %v5131
        %v5196 = vadd.f32 %v5067, %v5132
        %v5197 = vadd.f32 %v5068, %v5133
        %v5198 = vadd.f32 %v5069, %v5134
        %v5199 = vadd.f32 %v5070, %v5135
        %v5200 = vadd.f32 %v5071, %v5136
        %v5201 = vadd.f32 %v5072, %v5137
        %v5202 = vadd.f32 %v5073, %v5138
        %v5203 = vadd.f32 %v5074, %v5139
        %v5204 = vadd.f32 %v5075, %v5140
        %v5205 = vadd.f32 %v5076, %v5141
        %v5206 = vadd.f32 %v5077, %v5142
        %v5207 = vadd.f32 %v5078, %v5143
        %v5208 = vadd.f32 %v5079, %v5144
        %v5209 = vadd.f32 %v5080, %v5145
        %v5210 = vadd.f32 %v5081, %v5146
        %v5211 = vadd.f32 %v5082, %v5147
        %v5212 = vadd.f32 %v5083, %v5148
        %v5213 = vadd.f32 %v5084, %v5149
        %v5214 = vadd.f32 %v5085, %v5150
        %v5215 = vadd.f32 %v5086, %v5151
        %v5216 = vadd.f32 %v5087, %v5152
        %v5217 = vadd.f32 %v5088, %v5153
        %v5218 = vadd.f32 %v5089, %v5154
        %v5219 = vadd.f32 %v5090, %v5155
        %v5220 = vadd.f32 %v5091, %v5156
        %v5221 = vadd.f32 %v5092, %v5157
        %v5222 = vadd.f32 %v5093, %v5158
        %v5223 = vadd.f32 %v5094, %v5159
        %v5224 = vadd.f32 %v5095, %v5160
        %v5225 = vadd.f32 %v5096, %v5161
        %v5226 = vadd.f32 %v5097, %v5162
        %v5227 = vadd.f32 %v5098, %v5163
        %v5228 = vadd.f32 %v5099, %v5164
        %v5229 = vadd.f32 %v5100, %v5165
        %v5230 = vadd.f32 %v5101, %v5166
        %v5231 = vadd.f32 %v5102, %v5167
        %v5232 = vadd.f32 %v5103, %v5168
        %v5233 = vadd.f32 %v5104, %v5169
        %v5234 = vadd.f32 %v5105, %v5170
        %v5235 = vadd.f32 %v5106, %v5171
        %v5236 = vadd.f32 %v5107, %v5172
        %v5237 = vadd.f32 %v5108, %v5173
        %v5238 = vadd.f32 %v5109, %v5174
        %v5239 = vadd.f32 %v5110, %v5175
        %v5240 = vadd.f32 %v5111, %v5176
        %v5241 = vperm.slane %v4978, 2
        %v5242 = vmul.f32 %v1563, %v5241
        %v5243 = vmul.f32 %v1567, %v5241
        %v5244 = vmul.f32 %v1571, %v5241
        %v5245 = vmul.f32 %v1575, %v5241
        %v5246 = vmul.f32 %v1579, %v5241
        %v5247 = vmul.f32 %v1583, %v5241
        %v5248 = vmul.f32 %v1587, %v5241
        %v5249 = vmul.f32 %v1591, %v5241
        %v5250 = vmul.f32 %v1595, %v5241
        %v5251 = vmul.f32 %v1599, %v5241
        %v5252 = vmul.f32 %v1603, %v5241
        %v5253 = vmul.f32 %v1607, %v5241
        %v5254 = vmul.f32 %v1611, %v5241
        %v5255 = vmul.f32 %v1615, %v5241
        %v5256 = vmul.f32 %v1619, %v5241
        %v5257 = vmul.f32 %v1623, %v5241
        %v5258 = vmul.f32 %v1627, %v5241
        %v5259 = vmul.f32 %v1631, %v5241
        %v5260 = vmul.f32 %v1635, %v5241
        %v5261 = vmul.f32 %v1639, %v5241
        %v5262 = vmul.f32 %v1643, %v5241
        %v5263 = vmul.f32 %v1647, %v5241
        %v5264 = vmul.f32 %v1651, %v5241
        %v5265 = vmul.f32 %v1655, %v5241
        %v5266 = vmul.f32 %v1659, %v5241
        %v5267 = vmul.f32 %v1663, %v5241
        %v5268 = vmul.f32 %v1667, %v5241
        %v5269 = vmul.f32 %v1671, %v5241
        %v5270 = vmul.f32 %v1675, %v5241
        %v5271 = vmul.f32 %v1679, %v5241
        %v5272 = vmul.f32 %v1683, %v5241
        %v5273 = vmul.f32 %v1687, %v5241
        %v5274 = vmul.f32 %v1691, %v5241
        %v5275 = vmul.f32 %v1695, %v5241
        %v5276 = vmul.f32 %v1699, %v5241
        %v5277 = vmul.f32 %v1703, %v5241
        %v5278 = vmul.f32 %v1707, %v5241
        %v5279 = vmul.f32 %v1711, %v5241
        %v5280 = vmul.f32 %v1715, %v5241
        %v5281 = vmul.f32 %v1719, %v5241
        %v5282 = vmul.f32 %v1723, %v5241
        %v5283 = vmul.f32 %v1727, %v5241
        %v5284 = vmul.f32 %v1731, %v5241
        %v5285 = vmul.f32 %v1735, %v5241
        %v5286 = vmul.f32 %v1739, %v5241
        %v5287 = vmul.f32 %v1743, %v5241
        %v5288 = vmul.f32 %v1747, %v5241
        %v5289 = vmul.f32 %v1751, %v5241
        %v5290 = vmul.f32 %v1755, %v5241
        %v5291 = vmul.f32 %v1759, %v5241
        %v5292 = vmul.f32 %v1763, %v5241
        %v5293 = vmul.f32 %v1767, %v5241
        %v5294 = vmul.f32 %v1771, %v5241
        %v5295 = vmul.f32 %v1775, %v5241
        %v5296 = vmul.f32 %v1779, %v5241
        %v5297 = vmul.f32 %v1783, %v5241
        %v5298 = vmul.f32 %v1787, %v5241
        %v5299 = vmul.f32 %v1791, %v5241
        %v5300 = vmul.f32 %v1795, %v5241
        %v5301 = vmul.f32 %v1799, %v5241
        %v5302 = vmul.f32 %v1803, %v5241
        %v5303 = vmul.f32 %v1807, %v5241
        %v5304 = vmul.f32 %v1811, %v5241
        %v5305 = vmul.f32 %v1815, %v5241
        %v5306 = vadd.f32 %v5177, %v5242
        %v5307 = vadd.f32 %v5178, %v5243
        %v5308 = vadd.f32 %v5179, %v5244
        %v5309 = vadd.f32 %v5180, %v5245
        %v5310 = vadd.f32 %v5181, %v5246
        %v5311 = vadd.f32 %v5182, %v5247
        %v5312 = vadd.f32 %v5183, %v5248
        %v5313 = vadd.f32 %v5184, %v5249
        %v5314 = vadd.f32 %v5185, %v5250
        %v5315 = vadd.f32 %v5186, %v5251
        %v5316 = vadd.f32 %v5187, %v5252
        %v5317 = vadd.f32 %v5188, %v5253
        %v5318 = vadd.f32 %v5189, %v5254
        %v5319 = vadd.f32 %v5190, %v5255
        %v5320 = vadd.f32 %v5191, %v5256
        %v5321 = vadd.f32 %v5192, %v5257
        %v5322 = vadd.f32 %v5193, %v5258
        %v5323 = vadd.f32 %v5194, %v5259
        %v5324 = vadd.f32 %v5195, %v5260
        %v5325 = vadd.f32 %v5196, %v5261
        %v5326 = vadd.f32 %v5197, %v5262
        %v5327 = vadd.f32 %v5198, %v5263
        %v5328 = vadd.f32 %v5199, %v5264
        %v5329 = vadd.f32 %v5200, %v5265
        %v5330 = vadd.f32 %v5201, %v5266
        %v5331 = vadd.f32 %v5202, %v5267
        %v5332 = vadd.f32 %v5203, %v5268
        %v5333 = vadd.f32 %v5204, %v5269
        %v5334 = vadd.f32 %v5205, %v5270
        %v5335 = vadd.f32 %v5206, %v5271
        %v5336 = vadd.f32 %v5207, %v5272
        %v5337 = vadd.f32 %v5208, %v5273
        %v5338 = vadd.f32 %v5209, %v5274
        %v5339 = vadd.f32 %v5210, %v5275
        %v5340 = vadd.f32 %v5211, %v5276
        %v5341 = vadd.f32 %v5212, %v5277
        %v5342 = vadd.f32 %v5213, %v5278
        %v5343 = vadd.f32 %v5214, %v5279
        %v5344 = vadd.f32 %v5215, %v5280
        %v5345 = vadd.f32 %v5216, %v5281
        %v5346 = vadd.f32 %v5217, %v5282
        %v5347 = vadd.f32 %v5218, %v5283
        %v5348 = vadd.f32 %v5219, %v5284
        %v5349 = vadd.f32 %v5220, %v5285
        %v5350 = vadd.f32 %v5221, %v5286
        %v5351 = vadd.f32 %v5222, %v5287
        %v5352 = vadd.f32 %v5223, %v5288
        %v5353 = vadd.f32 %v5224, %v5289
        %v5354 = vadd.f32 %v5225, %v5290
        %v5355 = vadd.f32 %v5226, %v5291
        %v5356 = vadd.f32 %v5227, %v5292
        %v5357 = vadd.f32 %v5228, %v5293
        %v5358 = vadd.f32 %v5229, %v5294
        %v5359 = vadd.f32 %v5230, %v5295
        %v5360 = vadd.f32 %v5231, %v5296
        %v5361 = vadd.f32 %v5232, %v5297
        %v5362 = vadd.f32 %v5233, %v5298
        %v5363 = vadd.f32 %v5234, %v5299
        %v5364 = vadd.f32 %v5235, %v5300
        %v5365 = vadd.f32 %v5236, %v5301
        %v5366 = vadd.f32 %v5237, %v5302
        %v5367 = vadd.f32 %v5238, %v5303
        %v5368 = vadd.f32 %v5239, %v5304
        %v5369 = vadd.f32 %v5240, %v5305
        %v5370 = vperm.slane %v4978, 3
        %v5371 = vmul.f32 %v1948, %v5370
        %v5372 = vmul.f32 %v1952, %v5370
        %v5373 = vmul.f32 %v1956, %v5370
        %v5374 = vmul.f32 %v1960, %v5370
        %v5375 = vmul.f32 %v1964, %v5370
        %v5376 = vmul.f32 %v1968, %v5370
        %v5377 = vmul.f32 %v1972, %v5370
        %v5378 = vmul.f32 %v1976, %v5370
        %v5379 = vmul.f32 %v1980, %v5370
        %v5380 = vmul.f32 %v1984, %v5370
        %v5381 = vmul.f32 %v1988, %v5370
        %v5382 = vmul.f32 %v1992, %v5370
        %v5383 = vmul.f32 %v1996, %v5370
        %v5384 = vmul.f32 %v2000, %v5370
        %v5385 = vmul.f32 %v2004, %v5370
        %v5386 = vmul.f32 %v2008, %v5370
        %v5387 = vmul.f32 %v2012, %v5370
        %v5388 = vmul.f32 %v2016, %v5370
        %v5389 = vmul.f32 %v2020, %v5370
        %v5390 = vmul.f32 %v2024, %v5370
        %v5391 = vmul.f32 %v2028, %v5370
        %v5392 = vmul.f32 %v2032, %v5370
        %v5393 = vmul.f32 %v2036, %v5370
        %v5394 = vmul.f32 %v2040, %v5370
        %v5395 = vmul.f32 %v2044, %v5370
        %v5396 = vmul.f32 %v2048, %v5370
        %v5397 = vmul.f32 %v2052, %v5370
        %v5398 = vmul.f32 %v2056, %v5370
        %v5399 = vmul.f32 %v2060, %v5370
        %v5400 = vmul.f32 %v2064, %v5370
        %v5401 = vmul.f32 %v2068, %v5370
        %v5402 = vmul.f32 %v2072, %v5370
        %v5403 = vmul.f32 %v2076, %v5370
        %v5404 = vmul.f32 %v2080, %v5370
        %v5405 = vmul.f32 %v2084, %v5370
        %v5406 = vmul.f32 %v2088, %v5370
        %v5407 = vmul.f32 %v2092, %v5370
        %v5408 = vmul.f32 %v2096, %v5370
        %v5409 = vmul.f32 %v2100, %v5370
        %v5410 = vmul.f32 %v2104, %v5370
        %v5411 = vmul.f32 %v2108, %v5370
        %v5412 = vmul.f32 %v2112, %v5370
        %v5413 = vmul.f32 %v2116, %v5370
        %v5414 = vmul.f32 %v2120, %v5370
        %v5415 = vmul.f32 %v2124, %v5370
        %v5416 = vmul.f32 %v2128, %v5370
        %v5417 = vmul.f32 %v2132, %v5370
        %v5418 = vmul.f32 %v2136, %v5370
        %v5419 = vmul.f32 %v2140, %v5370
        %v5420 = vmul.f32 %v2144, %v5370
        %v5421 = vmul.f32 %v2148, %v5370
        %v5422 = vmul.f32 %v2152, %v5370
        %v5423 = vmul.f32 %v2156, %v5370
        %v5424 = vmul.f32 %v2160, %v5370
        %v5425 = vmul.f32 %v2164, %v5370
        %v5426 = vmul.f32 %v2168, %v5370
        %v5427 = vmul.f32 %v2172, %v5370
        %v5428 = vmul.f32 %v2176, %v5370
        %v5429 = vmul.f32 %v2180, %v5370
        %v5430 = vmul.f32 %v2184, %v5370
        %v5431 = vmul.f32 %v2188, %v5370
        %v5432 = vmul.f32 %v2192, %v5370
        %v5433 = vmul.f32 %v2196, %v5370
        %v5434 = vmul.f32 %v2200, %v5370
        %v5435 = vadd.f32 %v5306, %v5371
        %v5436 = vadd.f32 %v5307, %v5372
        %v5437 = vadd.f32 %v5308, %v5373
        %v5438 = vadd.f32 %v5309, %v5374
        %v5439 = vadd.f32 %v5310, %v5375
        %v5440 = vadd.f32 %v5311, %v5376
        %v5441 = vadd.f32 %v5312, %v5377
        %v5442 = vadd.f32 %v5313, %v5378
        %v5443 = vadd.f32 %v5314, %v5379
        %v5444 = vadd.f32 %v5315, %v5380
        %v5445 = vadd.f32 %v5316, %v5381
        %v5446 = vadd.f32 %v5317, %v5382
        %v5447 = vadd.f32 %v5318, %v5383
        %v5448 = vadd.f32 %v5319, %v5384
        %v5449 = vadd.f32 %v5320, %v5385
        %v5450 = vadd.f32 %v5321, %v5386
        %v5451 = vadd.f32 %v5322, %v5387
        %v5452 = vadd.f32 %v5323, %v5388
        %v5453 = vadd.f32 %v5324, %v5389
        %v5454 = vadd.f32 %v5325, %v5390
        %v5455 = vadd.f32 %v5326, %v5391
        %v5456 = vadd.f32 %v5327, %v5392
        %v5457 = vadd.f32 %v5328, %v5393
        %v5458 = vadd.f32 %v5329, %v5394
        %v5459 = vadd.f32 %v5330, %v5395
        %v5460 = vadd.f32 %v5331, %v5396
        %v5461 = vadd.f32 %v5332, %v5397
        %v5462 = vadd.f32 %v5333, %v5398
        %v5463 = vadd.f32 %v5334, %v5399
        %v5464 = vadd.f32 %v5335, %v5400
        %v5465 = vadd.f32 %v5336, %v5401
        %v5466 = vadd.f32 %v5337, %v5402
        %v5467 = vadd.f32 %v5338, %v5403
        %v5468 = vadd.f32 %v5339, %v5404
        %v5469 = vadd.f32 %v5340, %v5405
        %v5470 = vadd.f32 %v5341, %v5406
        %v5471 = vadd.f32 %v5342, %v5407
        %v5472 = vadd.f32 %v5343, %v5408
        %v5473 = vadd.f32 %v5344, %v5409
        %v5474 = vadd.f32 %v5345, %v5410
        %v5475 = vadd.f32 %v5346, %v5411
        %v5476 = vadd.f32 %v5347, %v5412
        %v5477 = vadd.f32 %v5348, %v5413
        %v5478 = vadd.f32 %v5349, %v5414
        %v5479 = vadd.f32 %v5350, %v5415
        %v5480 = vadd.f32 %v5351, %v5416
        %v5481 = vadd.f32 %v5352, %v5417
        %v5482 = vadd.f32 %v5353, %v5418
        %v5483 = vadd.f32 %v5354, %v5419
        %v5484 = vadd.f32 %v5355, %v5420
        %v5485 = vadd.f32 %v5356, %v5421
        %v5486 = vadd.f32 %v5357, %v5422
        %v5487 = vadd.f32 %v5358, %v5423
        %v5488 = vadd.f32 %v5359, %v5424
        %v5489 = vadd.f32 %v5360, %v5425
        %v5490 = vadd.f32 %v5361, %v5426
        %v5491 = vadd.f32 %v5362, %v5427
        %v5492 = vadd.f32 %v5363, %v5428
        %v5493 = vadd.f32 %v5364, %v5429
        %v5494 = vadd.f32 %v5365, %v5430
        %v5495 = vadd.f32 %v5366, %v5431
        %v5496 = vadd.f32 %v5367, %v5432
        %v5497 = vadd.f32 %v5368, %v5433
        %v5498 = vadd.f32 %v5369, %v5434
        %v5499 = vtanh.pop %v5435
        %v5500 = vtanh.pop %v5436
        %v5501 = vtanh.pop %v5437
        %v5502 = vtanh.pop %v5438
        %v5503 = vtanh.pop %v5439
        %v5504 = vtanh.pop %v5440
        %v5505 = vtanh.pop %v5441
        %v5506 = vtanh.pop %v5442
        %v5507 = vtanh.pop %v5443
        %v5508 = vtanh.pop %v5444
        %v5509 = vtanh.pop %v5445
        %v5510 = vtanh.pop %v5446
        %v5511 = vtanh.pop %v5447
        %v5512 = vtanh.pop %v5448
        %v5513 = vtanh.pop %v5449
        %v5514 = vtanh.pop %v5450
        %v5515 = vtanh.pop %v5451
        %v5516 = vtanh.pop %v5452
        %v5517 = vtanh.pop %v5453
        %v5518 = vtanh.pop %v5454
        %v5519 = vtanh.pop %v5455
        %v5520 = vtanh.pop %v5456
        %v5521 = vtanh.pop %v5457
        %v5522 = vtanh.pop %v5458
        %v5523 = vtanh.pop %v5459
        %v5524 = vtanh.pop %v5460
        %v5525 = vtanh.pop %v5461
        %v5526 = vtanh.pop %v5462
        %v5527 = vtanh.pop %v5463
        %v5528 = vtanh.pop %v5464
        %v5529 = vtanh.pop %v5465
        %v5530 = vtanh.pop %v5466
        %v5531 = vtanh.pop %v5467
        %v5532 = vtanh.pop %v5468
        %v5533 = vtanh.pop %v5469
        %v5534 = vtanh.pop %v5470
        %v5535 = vtanh.pop %v5471
        %v5536 = vtanh.pop %v5472
        %v5537 = vtanh.pop %v5473
        %v5538 = vtanh.pop %v5474
        %v5539 = vtanh.pop %v5475
        %v5540 = vtanh.pop %v5476
        %v5541 = vtanh.pop %v5477
        %v5542 = vtanh.pop %v5478
        %v5543 = vtanh.pop %v5479
        %v5544 = vtanh.pop %v5480
        %v5545 = vtanh.pop %v5481
        %v5546 = vtanh.pop %v5482
        %v5547 = vtanh.pop %v5483
        %v5548 = vtanh.pop %v5484
        %v5549 = vtanh.pop %v5485
        %v5550 = vtanh.pop %v5486
        %v5551 = vtanh.pop %v5487
        %v5552 = vtanh.pop %v5488
        %v5553 = vtanh.pop %v5489
        %v5554 = vtanh.pop %v5490
        %v5555 = vtanh.pop %v5491
        %v5556 = vtanh.pop %v5492
        %v5557 = vtanh.pop %v5493
        %v5558 = vtanh.pop %v5494
        %v5559 = vtanh.pop %v5495
        %v5560 = vtanh.pop %v5496
        %v5561 = vtanh.pop %v5497
        %v5562 = vtanh.pop %v5498
        %v5563 = vpack.c.bf16 %v5500, %v5499
        %v5564 = vpack.c.bf16 %v5502, %v5501
        %v5565 = vpack.c.bf16 %v5504, %v5503
        %v5566 = vpack.c.bf16 %v5506, %v5505
        %v5567 = vpack.c.bf16 %v5508, %v5507
        %v5568 = vpack.c.bf16 %v5510, %v5509
        %v5569 = vpack.c.bf16 %v5512, %v5511
        %v5570 = vpack.c.bf16 %v5514, %v5513
        %v5571 = vpack.c.bf16 %v5516, %v5515
        %v5572 = vpack.c.bf16 %v5518, %v5517
        %v5573 = vpack.c.bf16 %v5520, %v5519
        %v5574 = vpack.c.bf16 %v5522, %v5521
        %v5575 = vpack.c.bf16 %v5524, %v5523
        %v5576 = vpack.c.bf16 %v5526, %v5525
        %v5577 = vpack.c.bf16 %v5528, %v5527
        %v5578 = vpack.c.bf16 %v5530, %v5529
        %v5579 = vpack.c.bf16 %v5532, %v5531
        %v5580 = vpack.c.bf16 %v5534, %v5533
        %v5581 = vpack.c.bf16 %v5536, %v5535
        %v5582 = vpack.c.bf16 %v5538, %v5537
        %v5583 = vpack.c.bf16 %v5540, %v5539
        %v5584 = vpack.c.bf16 %v5542, %v5541
        %v5585 = vpack.c.bf16 %v5544, %v5543
        %v5586 = vpack.c.bf16 %v5546, %v5545
        %v5587 = vpack.c.bf16 %v5548, %v5547
        %v5588 = vpack.c.bf16 %v5550, %v5549
        %v5589 = vpack.c.bf16 %v5552, %v5551
        %v5590 = vpack.c.bf16 %v5554, %v5553
        %v5591 = vpack.c.bf16 %v5556, %v5555
        %v5592 = vpack.c.bf16 %v5558, %v5557
        %v5593 = vpack.c.bf16 %v5560, %v5559
        %v5594 = vpack.c.bf16 %v5562, %v5561
        %v5595 = vld [vmem:[%s3] sm:$0xf]
        %v5596 = vld [vmem:[%s3 + $0x4] sm:$0xf]
        %v5597 = vld [vmem:[%s3 + $0x8] sm:$0xf]
        %v5598 = vld [vmem:[%s3 + $0xc] sm:$0xf]
        %v5599 = vld [vmem:[%s3 + $0x10] sm:$0xf]
        %v5600 = vld [vmem:[%s3 + $0x14] sm:$0xf]
        %v5601 = vld [vmem:[%s3 + $0x18] sm:$0xf]
        %v5602 = vld [vmem:[%s3 + $0x1c] sm:$0xf]
        %v5603 = vld [vmem:[%s3 + $0x20] sm:$0xf]
        %v5604 = vld [vmem:[%s3 + $0x24] sm:$0xf]
        %v5605 = vld [vmem:[%s3 + $0x28] sm:$0xf]
        %v5606 = vld [vmem:[%s3 + $0x2c] sm:$0xf]
        %v5607 = vld [vmem:[%s3 + $0x30] sm:$0xf]
        %v5608 = vld [vmem:[%s3 + $0x34] sm:$0xf]
        %v5609 = vld [vmem:[%s3 + $0x38] sm:$0xf]
        %v5610 = vld [vmem:[%s3 + $0x3c] sm:$0xf]
        %v5611 = vld [vmem:[%s4] sm:$0x1]
        %v5613 = vperm.slane %v5611, 0
        %v5631 = vunpack.c.l.b16 %v5595
        %v5632 = vunpack.c.l.b16 %v5596
        %v5633 = vunpack.c.l.b16 %v5597
        %v5634 = vunpack.c.l.b16 %v5598
        %v5635 = vunpack.c.l.b16 %v5599
        %v5636 = vunpack.c.l.b16 %v5600
        %v5637 = vunpack.c.l.b16 %v5601
        %v5638 = vunpack.c.l.b16 %v5602
        %v5639 = vunpack.c.l.b16 %v5603
        %v5640 = vunpack.c.l.b16 %v5604
        %v5641 = vunpack.c.l.b16 %v5605
        %v5642 = vunpack.c.l.b16 %v5606
        %v5643 = vunpack.c.l.b16 %v5607
        %v5644 = vunpack.c.l.b16 %v5608
        %v5645 = vunpack.c.l.b16 %v5609
        %v5646 = vunpack.c.l.b16 %v5610
        %v5647 = vpack.c.b16 %v5632, %v5631
        %v5648 = vpack.c.b16 %v5634, %v5633
        %v5649 = vpack.c.b16 %v5636, %v5635
        %v5650 = vpack.c.b16 %v5638, %v5637
        %v5651 = vpack.c.b16 %v5640, %v5639
        %v5652 = vpack.c.b16 %v5642, %v5641
        %v5653 = vpack.c.b16 %v5644, %v5643
        %v5654 = vpack.c.b16 %v5646, %v5645
        %5663 = vmatpush.bf16.msra.mxu0 %v5654
        %5664 = vmatpush.bf16.msra.mxu0 %v5653
        %5665 = vmatpush.bf16.msra.mxu0 %v5652
        %5666 = vmatpush.bf16.msra.mxu0 %v5651
        %5667 = vmatpush.bf16.msra.mxu0 %v5650
        %5668 = vmatpush.bf16.msra.mxu0 %v5649
        %5669 = vmatpush.bf16.msra.mxu0 %v5648
        %5670 = vmatpush.bf16.msra.mxu0 %v5647
        %5671 = vmatmul.bf16.gmra.mxu0 %v5563
        %v5672 = vpop.f32.mrf.mxu0
        %v5673 = vadd.f32 %v5613, %v5672
        %v5674 = vpop.f32.mrf.mxu0
        %v5675 = vadd.f32 %v5613, %v5674
        %5676 = vmatmul.bf16.gmra.mxu0 %v5564
        %v5677 = vpop.f32.mrf.mxu0
        %v5678 = vadd.f32 %v5613, %v5677
        %v5679 = vpop.f32.mrf.mxu0
        %v5680 = vadd.f32 %v5613, %v5679
        %5681 = vmatmul.bf16.gmra.mxu0 %v5565
        %v5682 = vpop.f32.mrf.mxu0
        %v5683 = vadd.f32 %v5613, %v5682
        %v5684 = vpop.f32.mrf.mxu0
        %v5685 = vadd.f32 %v5613, %v5684
        %5686 = vmatmul.bf16.gmra.mxu0 %v5566
        %v5687 = vpop.f32.mrf.mxu0
        %v5688 = vadd.f32 %v5613, %v5687
        %v5689 = vpop.f32.mrf.mxu0
        %v5690 = vadd.f32 %v5613, %v5689
        %5691 = vmatmul.bf16.gmra.mxu0 %v5567
        %v5692 = vpop.f32.mrf.mxu0
        %v5693 = vadd.f32 %v5613, %v5692
        %v5694 = vpop.f32.mrf.mxu0
        %v5695 = vadd.f32 %v5613, %v5694
        %5696 = vmatmul.bf16.gmra.mxu0 %v5568
        %v5697 = vpop.f32.mrf.mxu0
        %v5698 = vadd.f32 %v5613, %v5697
        %v5699 = vpop.f32.mrf.mxu0
        %v5700 = vadd.f32 %v5613, %v5699
        %5701 = vmatmul.bf16.gmra.mxu0 %v5569
        %v5702 = vpop.f32.mrf.mxu0
        %v5703 = vadd.f32 %v5613, %v5702
        %v5704 = vpop.f32.mrf.mxu0
        %v5705 = vadd.f32 %v5613, %v5704
        %5706 = vmatmul.bf16.gmra.mxu0 %v5570
        %v5707 = vpop.f32.mrf.mxu0
        %v5708 = vadd.f32 %v5613, %v5707
        %v5709 = vpop.f32.mrf.mxu0
        %v5710 = vadd.f32 %v5613, %v5709
        %5711 = vmatmul.bf16.gmra.mxu0 %v5571
        %v5712 = vpop.f32.mrf.mxu0
        %v5713 = vadd.f32 %v5613, %v5712
        %v5714 = vpop.f32.mrf.mxu0
        %v5715 = vadd.f32 %v5613, %v5714
        %5716 = vmatmul.bf16.gmra.mxu0 %v5572
        %v5717 = vpop.f32.mrf.mxu0
        %v5718 = vadd.f32 %v5613, %v5717
        %v5719 = vpop.f32.mrf.mxu0
        %v5720 = vadd.f32 %v5613, %v5719
        %5721 = vmatmul.bf16.gmra.mxu0 %v5573
        %v5722 = vpop.f32.mrf.mxu0
        %v5723 = vadd.f32 %v5613, %v5722
        %v5724 = vpop.f32.mrf.mxu0
        %v5725 = vadd.f32 %v5613, %v5724
        %5726 = vmatmul.bf16.gmra.mxu0 %v5574
        %v5727 = vpop.f32.mrf.mxu0
        %v5728 = vadd.f32 %v5613, %v5727
        %v5729 = vpop.f32.mrf.mxu0
        %v5730 = vadd.f32 %v5613, %v5729
        %5731 = vmatmul.bf16.gmra.mxu0 %v5575
        %v5732 = vpop.f32.mrf.mxu0
        %v5733 = vadd.f32 %v5613, %v5732
        %v5734 = vpop.f32.mrf.mxu0
        %v5735 = vadd.f32 %v5613, %v5734
        %5736 = vmatmul.bf16.gmra.mxu0 %v5576
        %v5737 = vpop.f32.mrf.mxu0
        %v5738 = vadd.f32 %v5613, %v5737
        %v5739 = vpop.f32.mrf.mxu0
        %v5740 = vadd.f32 %v5613, %v5739
        %5741 = vmatmul.bf16.gmra.mxu0 %v5577
        %v5742 = vpop.f32.mrf.mxu0
        %v5743 = vadd.f32 %v5613, %v5742
        %v5744 = vpop.f32.mrf.mxu0
        %v5745 = vadd.f32 %v5613, %v5744
        %5746 = vmatmul.bf16.gmra.mxu0 %v5578
        %v5747 = vpop.f32.mrf.mxu0
        %v5748 = vadd.f32 %v5613, %v5747
        %v5749 = vpop.f32.mrf.mxu0
        %v5750 = vadd.f32 %v5613, %v5749
        %5751 = vmatmul.bf16.gmra.mxu0 %v5579
        %v5752 = vpop.f32.mrf.mxu0
        %v5753 = vadd.f32 %v5613, %v5752
        %v5754 = vpop.f32.mrf.mxu0
        %v5755 = vadd.f32 %v5613, %v5754
        %5756 = vmatmul.bf16.gmra.mxu0 %v5580
        %v5757 = vpop.f32.mrf.mxu0
        %v5758 = vadd.f32 %v5613, %v5757
        %v5759 = vpop.f32.mrf.mxu0
        %v5760 = vadd.f32 %v5613, %v5759
        %5761 = vmatmul.bf16.gmra.mxu0 %v5581
        %v5762 = vpop.f32.mrf.mxu0
        %v5763 = vadd.f32 %v5613, %v5762
        %v5764 = vpop.f32.mrf.mxu0
        %v5765 = vadd.f32 %v5613, %v5764
        %5766 = vmatmul.bf16.gmra.mxu0 %v5582
        %v5767 = vpop.f32.mrf.mxu0
        %v5768 = vadd.f32 %v5613, %v5767
        %v5769 = vpop.f32.mrf.mxu0
        %v5770 = vadd.f32 %v5613, %v5769
        %5771 = vmatmul.bf16.gmra.mxu0 %v5583
        %v5772 = vpop.f32.mrf.mxu0
        %v5773 = vadd.f32 %v5613, %v5772
        %v5774 = vpop.f32.mrf.mxu0
        %v5775 = vadd.f32 %v5613, %v5774
        %5776 = vmatmul.bf16.gmra.mxu0 %v5584
        %v5777 = vpop.f32.mrf.mxu0
        %v5778 = vadd.f32 %v5613, %v5777
        %v5779 = vpop.f32.mrf.mxu0
        %v5780 = vadd.f32 %v5613, %v5779
        %5781 = vmatmul.bf16.gmra.mxu0 %v5585
        %v5782 = vpop.f32.mrf.mxu0
        %v5783 = vadd.f32 %v5613, %v5782
        %v5784 = vpop.f32.mrf.mxu0
        %v5785 = vadd.f32 %v5613, %v5784
        %5786 = vmatmul.bf16.gmra.mxu0 %v5586
        %v5787 = vpop.f32.mrf.mxu0
        %v5788 = vadd.f32 %v5613, %v5787
        %v5789 = vpop.f32.mrf.mxu0
        %v5790 = vadd.f32 %v5613, %v5789
        %5791 = vmatmul.bf16.gmra.mxu0 %v5587
        %v5792 = vpop.f32.mrf.mxu0
        %v5793 = vadd.f32 %v5613, %v5792
        %v5794 = vpop.f32.mrf.mxu0
        %v5795 = vadd.f32 %v5613, %v5794
        %5796 = vmatmul.bf16.gmra.mxu0 %v5588
        %v5797 = vpop.f32.mrf.mxu0
        %v5798 = vadd.f32 %v5613, %v5797
        %v5799 = vpop.f32.mrf.mxu0
        %v5800 = vadd.f32 %v5613, %v5799
        %5801 = vmatmul.bf16.gmra.mxu0 %v5589
        %v5802 = vpop.f32.mrf.mxu0
        %v5803 = vadd.f32 %v5613, %v5802
        %v5804 = vpop.f32.mrf.mxu0
        %v5805 = vadd.f32 %v5613, %v5804
        %5806 = vmatmul.bf16.gmra.mxu0 %v5590
        %v5807 = vpop.f32.mrf.mxu0
        %v5808 = vadd.f32 %v5613, %v5807
        %v5809 = vpop.f32.mrf.mxu0
        %v5810 = vadd.f32 %v5613, %v5809
        %5811 = vmatmul.bf16.gmra.mxu0 %v5591
        %v5812 = vpop.f32.mrf.mxu0
        %v5813 = vadd.f32 %v5613, %v5812
        %v5814 = vpop.f32.mrf.mxu0
        %v5815 = vadd.f32 %v5613, %v5814
        %5816 = vmatmul.bf16.gmra.mxu0 %v5592
        %v5817 = vpop.f32.mrf.mxu0
        %v5818 = vadd.f32 %v5613, %v5817
        %v5819 = vpop.f32.mrf.mxu0
        %v5820 = vadd.f32 %v5613, %v5819
        %5821 = vmatmul.bf16.gmra.mxu0 %v5593
        %v5822 = vpop.f32.mrf.mxu0
        %v5823 = vadd.f32 %v5613, %v5822
        %v5824 = vpop.f32.mrf.mxu0
        %v5825 = vadd.f32 %v5613, %v5824
        %5826 = vmatmul.bf16.gmra.mxu0 %v5594
        %v5827 = vpop.f32.mrf.mxu0
        %v5828 = vadd.f32 %v5613, %v5827
        %v5829 = vpop.f32.mrf.mxu0
        %v5830 = vadd.f32 %v5613, %v5829
        %5831 = vdwg.mxu0
        %v5832 = vadd.f32 %v5673, %v4914
        %v5833 = vadd.f32 %v5675, %v4915
        %v5834 = vadd.f32 %v5678, %v4916
        %v5835 = vadd.f32 %v5680, %v4917
        %v5836 = vadd.f32 %v5683, %v4918
        %v5837 = vadd.f32 %v5685, %v4919
        %v5838 = vadd.f32 %v5688, %v4920
        %v5839 = vadd.f32 %v5690, %v4921
        %v5840 = vadd.f32 %v5693, %v4922
        %v5841 = vadd.f32 %v5695, %v4923
        %v5842 = vadd.f32 %v5698, %v4924
        %v5843 = vadd.f32 %v5700, %v4925
        %v5844 = vadd.f32 %v5703, %v4926
        %v5845 = vadd.f32 %v5705, %v4927
        %v5846 = vadd.f32 %v5708, %v4928
        %v5847 = vadd.f32 %v5710, %v4929
        %v5848 = vadd.f32 %v5713, %v4930
        %v5849 = vadd.f32 %v5715, %v4931
        %v5850 = vadd.f32 %v5718, %v4932
        %v5851 = vadd.f32 %v5720, %v4933
        %v5852 = vadd.f32 %v5723, %v4934
        %v5853 = vadd.f32 %v5725, %v4935
        %v5854 = vadd.f32 %v5728, %v4936
        %v5855 = vadd.f32 %v5730, %v4937
        %v5856 = vadd.f32 %v5733, %v4938
        %v5857 = vadd.f32 %v5735, %v4939
        %v5858 = vadd.f32 %v5738, %v4940
        %v5859 = vadd.f32 %v5740, %v4941
        %v5860 = vadd.f32 %v5743, %v4942
        %v5861 = vadd.f32 %v5745, %v4943
        %v5862 = vadd.f32 %v5748, %v4944
        %v5863 = vadd.f32 %v5750, %v4945
        %v5864 = vadd.f32 %v5753, %v4946
        %v5865 = vadd.f32 %v5755, %v4947
        %v5866 = vadd.f32 %v5758, %v4948
        %v5867 = vadd.f32 %v5760, %v4949
        %v5868 = vadd.f32 %v5763, %v4950
        %v5869 = vadd.f32 %v5765, %v4951
        %v5870 = vadd.f32 %v5768, %v4952
        %v5871 = vadd.f32 %v5770, %v4953
        %v5872 = vadd.f32 %v5773, %v4954
        %v5873 = vadd.f32 %v5775, %v4955
        %v5874 = vadd.f32 %v5778, %v4956
        %v5875 = vadd.f32 %v5780, %v4957
        %v5876 = vadd.f32 %v5783, %v4958
        %v5877 = vadd.f32 %v5785, %v4959
        %v5878 = vadd.f32 %v5788, %v4960
        %v5879 = vadd.f32 %v5790, %v4961
        %v5880 = vadd.f32 %v5793, %v4962
        %v5881 = vadd.f32 %v5795, %v4963
        %v5882 = vadd.f32 %v5798, %v4964
        %v5883 = vadd.f32 %v5800, %v4965
        %v5884 = vadd.f32 %v5803, %v4966
        %v5885 = vadd.f32 %v5805, %v4967
        %v5886 = vadd.f32 %v5808, %v4968
        %v5887 = vadd.f32 %v5810, %v4969
        %v5888 = vadd.f32 %v5813, %v4970
        %v5889 = vadd.f32 %v5815, %v4971
        %v5890 = vadd.f32 %v5818, %v4972
        %v5891 = vadd.f32 %v5820, %v4973
        %v5892 = vadd.f32 %v5823, %v4974
        %v5893 = vadd.f32 %v5825, %v4975
        %v5894 = vadd.f32 %v5828, %v4976
        %v5895 = vadd.f32 %v5830, %v4977
        %5896 = vxpose.xlu0.b32.start [1/16] %v5832, 128
        %5897 = vxpose.xlu0.b32.cont [2/16] %v5833, 128
        %5898 = vxpose.xlu0.b32.cont [3/16] %v5834, 128
        %5899 = vxpose.xlu0.b32.cont [4/16] %v5835, 128
        %5900 = vxpose.xlu0.b32.cont [5/16] %v5836, 128
        %5901 = vxpose.xlu0.b32.cont [6/16] %v5837, 128
        %5902 = vxpose.xlu0.b32.cont [7/16] %v5838, 128
        %5903 = vxpose.xlu0.b32.cont [8/16] %v5839, 128
        %5904 = vxpose.xlu0.b32.cont [9/16] %v5840, 128
        %5905 = vxpose.xlu0.b32.cont [10/16] %v5841, 128
        %5906 = vxpose.xlu0.b32.cont [11/16] %v5842, 128
        %5907 = vxpose.xlu0.b32.cont [12/16] %v5843, 128
        %5908 = vxpose.xlu0.b32.cont [13/16] %v5844, 128
        %5909 = vxpose.xlu0.b32.cont [14/16] %v5845, 128
        %5910 = vxpose.xlu0.b32.cont [15/16] %v5846, 128
        %5911 = vxpose.xlu0.b32.end [16/16] %v5847, 128
        %v5912 = vpop.trf.xlu0
        %v5913 = vpop.trf.xlu0
        %v5914 = vpop.trf.xlu0
        %v5915 = vpop.trf.xlu0
        %v5916 = vpop.trf.xlu0
        %v5917 = vpop.trf.xlu0
        %v5918 = vpop.trf.xlu0
        %v5919 = vpop.trf.xlu0
        %v5920 = vpop.trf.xlu0
        %v5921 = vpop.trf.xlu0
        %v5922 = vpop.trf.xlu0
        %v5923 = vpop.trf.xlu0
        %v5924 = vpop.trf.xlu0
        %v5925 = vpop.trf.xlu0
        %v5926 = vpop.trf.xlu0
        %v5927 = vpop.trf.xlu0
        %5928 = vxpose.xlu0.b32.start [1/16] %v5848, 128
        %5929 = vxpose.xlu0.b32.cont [2/16] %v5849, 128
        %5930 = vxpose.xlu0.b32.cont [3/16] %v5850, 128
        %5931 = vxpose.xlu0.b32.cont [4/16] %v5851, 128
        %5932 = vxpose.xlu0.b32.cont [5/16] %v5852, 128
        %5933 = vxpose.xlu0.b32.cont [6/16] %v5853, 128
        %5934 = vxpose.xlu0.b32.cont [7/16] %v5854, 128
        %5935 = vxpose.xlu0.b32.cont [8/16] %v5855, 128
        %5936 = vxpose.xlu0.b32.cont [9/16] %v5856, 128
        %5937 = vxpose.xlu0.b32.cont [10/16] %v5857, 128
        %5938 = vxpose.xlu0.b32.cont [11/16] %v5858, 128
        %5939 = vxpose.xlu0.b32.cont [12/16] %v5859, 128
        %5940 = vxpose.xlu0.b32.cont [13/16] %v5860, 128
        %5941 = vxpose.xlu0.b32.cont [14/16] %v5861, 128
        %5942 = vxpose.xlu0.b32.cont [15/16] %v5862, 128
        %5943 = vxpose.xlu0.b32.end [16/16] %v5863, 128
        %v5944 = vpop.trf.xlu0
        %v5945 = vpop.trf.xlu0
        %v5946 = vpop.trf.xlu0
        %v5947 = vpop.trf.xlu0
        %v5948 = vpop.trf.xlu0
        %v5949 = vpop.trf.xlu0
        %v5950 = vpop.trf.xlu0
        %v5951 = vpop.trf.xlu0
        %v5952 = vpop.trf.xlu0
        %v5953 = vpop.trf.xlu0
        %v5954 = vpop.trf.xlu0
        %v5955 = vpop.trf.xlu0
        %v5956 = vpop.trf.xlu0
        %v5957 = vpop.trf.xlu0
        %v5958 = vpop.trf.xlu0
        %v5959 = vpop.trf.xlu0
        %5960 = vxpose.xlu0.b32.start [1/16] %v5864, 128
        %5961 = vxpose.xlu0.b32.cont [2/16] %v5865, 128
        %5962 = vxpose.xlu0.b32.cont [3/16] %v5866, 128
        %5963 = vxpose.xlu0.b32.cont [4/16] %v5867, 128
        %5964 = vxpose.xlu0.b32.cont [5/16] %v5868, 128
        %5965 = vxpose.xlu0.b32.cont [6/16] %v5869, 128
        %5966 = vxpose.xlu0.b32.cont [7/16] %v5870, 128
        %5967 = vxpose.xlu0.b32.cont [8/16] %v5871, 128
        %5968 = vxpose.xlu0.b32.cont [9/16] %v5872, 128
        %5969 = vxpose.xlu0.b32.cont [10/16] %v5873, 128
        %5970 = vxpose.xlu0.b32.cont [11/16] %v5874, 128
        %5971 = vxpose.xlu0.b32.cont [12/16] %v5875, 128
        %5972 = vxpose.xlu0.b32.cont [13/16] %v5876, 128
        %5973 = vxpose.xlu0.b32.cont [14/16] %v5877, 128
        %5974 = vxpose.xlu0.b32.cont [15/16] %v5878, 128
        %5975 = vxpose.xlu0.b32.end [16/16] %v5879, 128
        %v5976 = vpop.trf.xlu0
        %v5977 = vpop.trf.xlu0
        %v5978 = vpop.trf.xlu0
        %v5979 = vpop.trf.xlu0
        %v5980 = vpop.trf.xlu0
        %v5981 = vpop.trf.xlu0
        %v5982 = vpop.trf.xlu0
        %v5983 = vpop.trf.xlu0
        %v5984 = vpop.trf.xlu0
        %v5985 = vpop.trf.xlu0
        %v5986 = vpop.trf.xlu0
        %v5987 = vpop.trf.xlu0
        %v5988 = vpop.trf.xlu0
        %v5989 = vpop.trf.xlu0
        %v5990 = vpop.trf.xlu0
        %v5991 = vpop.trf.xlu0
        %5992 = vxpose.xlu0.b32.start [1/16] %v5880, 128
        %5993 = vxpose.xlu0.b32.cont [2/16] %v5881, 128
        %5994 = vxpose.xlu0.b32.cont [3/16] %v5882, 128
        %5995 = vxpose.xlu0.b32.cont [4/16] %v5883, 128
        %5996 = vxpose.xlu0.b32.cont [5/16] %v5884, 128
        %5997 = vxpose.xlu0.b32.cont [6/16] %v5885, 128
        %5998 = vxpose.xlu0.b32.cont [7/16] %v5886, 128
        %5999 = vxpose.xlu0.b32.cont [8/16] %v5887, 128
        %6000 = vxpose.xlu0.b32.cont [9/16] %v5888, 128
        %6001 = vxpose.xlu0.b32.cont [10/16] %v5889, 128
        %6002 = vxpose.xlu0.b32.cont [11/16] %v5890, 128
        %6003 = vxpose.xlu0.b32.cont [12/16] %v5891, 128
        %6004 = vxpose.xlu0.b32.cont [13/16] %v5892, 128
        %6005 = vxpose.xlu0.b32.cont [14/16] %v5893, 128
        %6006 = vxpose.xlu0.b32.cont [15/16] %v5894, 128
        %6007 = vxpose.xlu0.b32.end [16/16] %v5895, 128
        %v6008 = vpop.trf.xlu0
        %v6009 = vpop.trf.xlu0
        %v6010 = vpop.trf.xlu0
        %v6011 = vpop.trf.xlu0
        %v6012 = vpop.trf.xlu0
        %v6013 = vpop.trf.xlu0
        %v6014 = vpop.trf.xlu0
        %v6015 = vpop.trf.xlu0
        %v6016 = vpop.trf.xlu0
        %v6017 = vpop.trf.xlu0
        %v6018 = vpop.trf.xlu0
        %v6019 = vpop.trf.xlu0
        %v6020 = vpop.trf.xlu0
        %v6021 = vpop.trf.xlu0
        %v6022 = vpop.trf.xlu0
        %v6023 = vpop.trf.xlu0
        %v6028 = vrot.slane %v5944, 7
        %v6029 = vrot.slane %v5976, 6
        %v6030 = vrot.slane %v6008, 5
        %vm6031 = vcmask 1040384
        %v6032 = vsel %vm6031, %v5912, %v6028
        %vm6033 = vcmask 1042434
        %v6034 = vsel %vm6033, %v6029, %v6030
        %vm6035 = vcmask 1041408
        %v6036 = vsel %vm6035, %v6032, %v6034
        %v6038 = vlaneseq
        %vm6039 = vcmp.ge.s32.totalorder %v6038, 0
        %vm6040 = vcmp.lt.s32.totalorder %v6038, 512
        %vm6041 = vmand %vm6039, %vm6040
        %6042 = vst.msk [vmem:[%s650] sm:$0xf] %vm6041, %v6036
        %s6043 = sand.u32 %s489, 1
        %s6044 = scalar_lea.sflag [#allocation3], %s6043
        %s6045 = sand.u32 %s489, 1
        %s6046 = smul.addr %s6045, 4
        %s6047 = scalar_lea.vmem [#allocation2], %s6046
        // Predicated region
        $region105: #{multilevel_forward.1} parent=103 // pred_check
          %p6048 = pneg %p499
        $region106: #{multilevel_forward.1} parent=103 // pred_check_branch
          %6050 = sbr.rel (%p6048) target = $region108
        $region107: #{multilevel_forward.1} parent=103 // pred_region
          %s6051 = smul.u32 4, %s35
          %6053 = vsyncadd %s6044, 0
          %s6054 = scalar_lea.hbm %s21, %s6051
          %s6056 = sshll.u32 %s6047, 4
          %s6057 = int_to_ptr.vmem [resolvable:$true] %s6056
          %s6058 = sshll.u32 %s6054, 4
          %s6059 = int_to_ptr.hbm [resolvable:$true] %s6058
          %6061 = dma.vmem_to_hbm [thread:$0]  %s6057, 64, %s6059, %s6044
        $region108: #{multilevel_forward.1} parent=103 // pred_fallthru
          _
      $region104: #{multilevel_forward.1} parent=5 // pred_fallthru
        _
      %p6062 = scmp.le.s32.totalorder 2, %s30
      // Predicated region
      $region109: #{multilevel_forward.1} parent=5 // pred_check
        %p6063 = pneg %p6062
      $region110: #{multilevel_forward.1} parent=5 // pred_check_branch
        %6065 = sbr.rel (%p6063) target = $region112
      $region111: #{multilevel_forward.1} parent=5 // pred_region
        %s6066 = ssub.s32 %s30, 2
        // Predicated region
        $region113: #{multilevel_forward.1} parent=111 // pred_check
          %p6067 = pneg %p505
        $region114: #{multilevel_forward.1} parent=111 // pred_check_branch
          %6069 = sbr.rel (%p6067) target = $region116
        $region115: #{multilevel_forward.1} parent=111 // pred_region
          %s6070 = sand.u32 %s490, 1
          %s6071 = scalar_lea.sflag [#allocation3], %s6070
          %s6072 = sand.u32 %s490, 1
          %s6073 = smul.addr %s6072, 4
          %s6074 = scalar_lea.vmem [#allocation2], %s6073
          %6076 = dma.done %s6071, 64
        $region116: #{multilevel_forward.1} parent=111 // pred_fallthru
          _
      $region112: #{multilevel_forward.1} parent=5 // pred_fallthru
        _
    $region6: #{multilevel_forward.1} parent=1 // loop_footer
      %s34 = sadd.s32 1, %s30
    $region7: #{multilevel_forward.1} parent=1 // loop_footer_branch
      %29 = sbr.rel target = $region3
    $region8: #{multilevel_forward.1} parent=1 // loop_exit
      _
    %6077 = vsyncpa [#allocation3], 1
    %s6078 = scalar_lea.sflag [#allocation3], 1
    %6079 = vsyncpa %s6078, 1

</llo_original>
